<compile_context>
chip_gen: v6e
topology: v6e:2x2x1
jax: 0.10.0
libtpu: 0.0.40
codegen_flags: <defaults>
</compile_context>

<pallas_src>
import math

import numpy as np
import jax
import jax.numpy as jnp
from jax import lax
from jax.experimental import pallas as pl
from jax.experimental.pallas import tpu as pltpu


# ----------------------------------------------------------------------------
# Positional encoding, reproduced exactly from the PyTorch module's
# generate_positional_encoding (returns shape (input_channels, seq_length)).
# ----------------------------------------------------------------------------
def generate_positional_encoding(seq_len, d_model):
    position = np.arange(0, seq_len, dtype=np.float32)[:, None]          # (L, 1)
    div_term = np.exp(
        np.arange(0, d_model, 2, dtype=np.float32) * -(math.log(10000.0) / d_model)
    )
    cols = [np.sin(position * div_term[0])]                               # (L, 1)
    for i in range(1, d_model):
        if i % 2 == 0:
            cols.append(np.sin(position * div_term[int(i % 2)]))
        else:
            cols.append(np.cos(position * div_term[int(i % 2)]))
    pe = np.concatenate(cols, axis=1)                                     # (L, C)
    return pe.T                                                           # (C, L)


# ----------------------------------------------------------------------------
# Pallas kernel: full forward pass, everything resident in VMEM, single program.
# ----------------------------------------------------------------------------
def timeseries_net_kernel(
    x_ref, pe_ref, mask_ref,
    ipw_ref, ipb_ref, opw_ref, opb_ref,
    ln1w_ref, ln1b_ref, ln2w_ref, ln2b_ref,
    f1w_ref, f1b_ref, f2w_ref, f2b_ref,
    p1w_ref, p1b_ref, p2w_ref, p2b_ref,
    out_ref,
):
    C, B, L = x_ref.shape                      # (channels, batch, seq_len==d_model)
    N = C * B                                  # rows of the residual slab
    n_layers = ipw_ref.shape[0]
    cdt = ipw_ref.dtype                        # matmul operand dtype (bf16 or f32)

    def matmul_t(a, w):                        # a @ w.T on the MXU, f32 accumulate
        return lax.dot_general(a.astype(w.dtype), w, (((1,), (1,)), ((), ())),
                               preferred_element_type=jnp.float32)

    def layer_norm(v, w, b):                   # PyTorch LayerNorm over last dim
        mu = jnp.mean(v, axis=-1, keepdims=True)
        var = jnp.mean(jnp.square(v - mu), axis=-1, keepdims=True)
        return (v - mu) * lax.rsqrt(var + 1e-5) * w + b

    # x + positional encoding (pe broadcast over the torch "seq" dim == B),
    # flattened to the lane-dense residual slab (row r = c*B + b).
    x = x_ref[...] + pe_ref[...]               # (C, B, L) + (C, 1, L)
    x2 = x.reshape(N, L)

    # Block-diagonal channel mask (0 in-block, -1e9 off-block), precomputed on
    # the host; reused by both layers.
    mask_bias = mask_ref[...]                  # (N, N) f32

    for layer in range(n_layers):
        # ---- single-head self-attention (1/sqrt(L) folded into Q proj) ----
        qkv = matmul_t(x2, ipw_ref[layer]) + ipb_ref[layer]        # (N, 3L) f32
        q = qkv[:, :L]
        k = qkv[:, L:2 * L]
        v = qkv[:, 2 * L:]

        s = lax.dot_general(q.astype(cdt), k.astype(cdt),          # q @ k.T
                            (((1,), (1,)), ((), ())),
                            preferred_element_type=jnp.float32)    # (N, N)
        s = s + mask_bias
        s = s - jnp.max(s, axis=-1, keepdims=True)
        p = jnp.exp(s)
        attn = p * pl.reciprocal(jnp.sum(p, axis=-1, keepdims=True), approx=True)
        ctx = lax.dot_general(attn.astype(cdt), v.astype(cdt),     # attn @ v
                              (((1,), (0,)), ((), ())),
                              preferred_element_type=jnp.float32)  # (N, L)

        sa = matmul_t(ctx, opw_ref[layer]) + opb_ref[layer]        # out_proj
        x2 = layer_norm(x2 + sa, ln1w_ref[layer], ln1b_ref[layer])

        # ---- feed-forward block ----
        ff = matmul_t(x2, f1w_ref[layer]) + f1b_ref[layer]         # (N, 2L)
        ff = jnp.maximum(ff, 0.0)
        ff = matmul_t(ff, f2w_ref[layer]) + f2b_ref[layer]         # (N, L)
        x2 = layer_norm(x2 + ff, ln2w_ref[layer], ln2b_ref[layer])

    # ---- projector: Linear(C*L, 256) [BN(eval) folded in] -> ReLU -> Linear --
    # h[b, c*L + l] = x2[c*B + b, l]: one lane concat of contiguous per-channel
    # row blocks gives the lane-dense (B, C*L) slab -> a single MXU push.
    h = jnp.concatenate([x2[c * B:(c + 1) * B, :] for c in range(C)], axis=-1)
    z1 = matmul_t(h, p1w_ref[...]) + p1b_ref[...]                  # (B, 256)
    z1 = jnp.maximum(z1, 0.0)
    out_ref[...] = matmul_t(z1, p2w_ref[...]) + p2b_ref[...]       # (B, 128) padded


# ----------------------------------------------------------------------------
# Host-side parameter prep + wrapper
# ----------------------------------------------------------------------------
def prepare_params(params, compute_dtype):
    """Fold the 1/sqrt(L) attention scale into the Q projection, fold the
    eval-mode BatchNorm1d into the first projector Linear, cast matmul weights
    to the MXU compute dtype, and pad the final projection to 128 output lanes
    (lane-dense stores)."""
    L = params['ipw'].shape[2]
    scale = 1.0 / math.sqrt(L)
    ipw = params['ipw'].at[:, :L, :].multiply(scale)     # scale Q weights ...
    ipb = params['ipb'].at[:, :, :L].multiply(scale)     # ... and Q bias

    # Fold BN(eval): y = (z - m) * g / sqrt(v + eps) + b  ==  z * s + t
    bn_s = params['bng'] * lax.rsqrt(params['bnv'] + 1e-5)          # (1, hidden)
    bn_t = params['bnb'] - params['bnm'] * bn_s
    p1w = params['p1w'] * bn_s.reshape(-1, 1)                       # scale rows
    p1b = params['p1b'] * bn_s + bn_t

    rep_dim = params['p2w'].shape[0]
    out_pad = max(128, rep_dim)
    p2w = jnp.pad(params['p2w'], ((0, out_pad - rep_dim), (0, 0)))
    p2b = jnp.pad(params['p2b'], ((0, 0), (0, out_pad - rep_dim)))

    cast = lambda a: a.astype(compute_dtype)
    prepped = dict(
        pe=params['pe'][:, None, :].astype(jnp.float32),            # (C, 1, L)
        ipw=cast(ipw), ipb=ipb,
        opw=cast(params['opw']), opb=params['opb'],
        ln1w=params['ln1w'], ln1b=params['ln1b'],
        ln2w=params['ln2w'], ln2b=params['ln2b'],
        f1w=cast(params['f1w']), f1b=params['f1b'],
        f2w=cast(params['f2w']), f2b=params['f2b'],
        p1w=cast(p1w), p1b=p1b,
        p2w=cast(p2w), p2b=p2b,
    )
    return prepped, rep_dim, out_pad


def make_channel_mask(B, C):
    """(C*B, C*B) additive mask: 0 within a channel block, -1e9 across blocks."""
    blk = np.arange(C * B) // B
    return jnp.asarray(np.where(blk[:, None] == blk[None, :], 0.0, -1e9),
                       dtype=jnp.float32)


def timeseries_net_forward(x, params, compute_dtype=jnp.bfloat16):
    """x: (B, C, L) float32 — same convention as the PyTorch module.
    compute_dtype: dtype of MXU matmul operands (accumulation is always f32)."""
    B, C, L = x.shape
    prepped, rep_dim, out_pad = prepare_params(params, compute_dtype)
    x_t = jnp.transpose(x, (1, 0, 2)).astype(jnp.float32)          # (C, B, L)
    mask = make_channel_mask(B, C)

    inputs = [
        x_t, prepped['pe'], mask,
        prepped['ipw'], prepped['ipb'], prepped['opw'], prepped['opb'],
        prepped['ln1w'], prepped['ln1b'], prepped['ln2w'], prepped['ln2b'],
        prepped['f1w'], prepped['f1b'], prepped['f2w'], prepped['f2b'],
        prepped['p1w'], prepped['p1b'],
        prepped['p2w'], prepped['p2b'],
    ]

    n_layers = params['ipw'].shape[0]
    hidden = params['p1w'].shape[0]
    N = B * C
    flops = (2 * n_layers * (N * L * 3 * L          # qkv projection
                             + 2 * N * N * L        # scores + context
                             + N * L * L            # attention out-proj
                             + 2 * N * L * 2 * L)   # feed-forward
             + 2 * (B * C * L * hidden + B * hidden * out_pad))
    transcendentals = n_layers * (N * N + 5 * N)    # exp + rsqrt + recip
    bytes_accessed = sum(int(a.size) * a.dtype.itemsize for a in inputs) \
        + B * out_pad * 4

    vmem = pltpu.MemorySpace.VMEM
    out = pl.pallas_call(
        timeseries_net_kernel,
        out_shape=jax.ShapeDtypeStruct((B, out_pad), jnp.float32),
        in_specs=[pl.BlockSpec(memory_space=vmem)] * len(inputs),
        out_specs=pl.BlockSpec(memory_space=vmem),
        cost_estimate=pl.CostEstimate(flops=int(flops),
                                      transcendentals=int(transcendentals),
                                      bytes_accessed=int(bytes_accessed)),
    )(*inputs)
    return out[:, :rep_dim]


# ----------------------------------------------------------------------------
# Deterministic parameter init (shapes follow the PyTorch module's __init__).
# ----------------------------------------------------------------------------
def init_params(key, seq_length, input_channels, hidden=256, rep_dim=32, n_layers=2):
    L, C = seq_length, input_channels
    ks = jax.random.split(key, 14)

    def w(k, shape, s=0.05):
        return s * jax.random.normal(k, shape, dtype=jnp.float32)

    return dict(
        pe=jnp.asarray(generate_positional_encoding(L, C), dtype=jnp.float32),  # (C, L)
        # TransformerEncoderLayer params, stacked over the 2 layers
        ipw=w(ks[0], (n_layers, 3 * L, L)),          # MHA in_proj_weight
        ipb=w(ks[1], (n_layers, 1, 3 * L), 0.01),    # MHA in_proj_bias
        opw=w(ks[2], (n_layers, L, L)),              # MHA out_proj weight
        opb=w(ks[3], (n_layers, 1, L), 0.01),
        ln1w=jnp.ones((n_layers, 1, L), jnp.float32),
        ln1b=jnp.zeros((n_layers, 1, L), jnp.float32),
        ln2w=jnp.ones((n_layers, 1, L), jnp.float32),
        ln2b=jnp.zeros((n_layers, 1, L), jnp.float32),
        f1w=w(ks[4], (n_layers, 2 * L, L)),          # linear1 (dim_feedforward = 2L)
        f1b=w(ks[5], (n_layers, 1, 2 * L), 0.01),
        f2w=w(ks[6], (n_layers, L, 2 * L)),          # linear2
        f2b=w(ks[7], (n_layers, 1, L), 0.01),
        # projector (non-trivial BN running stats so the host-side folding is
        # actually exercised against the explicit-BN reference)
        p1w=w(ks[8], (hidden, L * C)),
        p1b=w(ks[9], (1, hidden), 0.01),
        bng=1.0 + 0.1 * jax.random.normal(ks[12], (1, hidden), jnp.float32),
        bnb=0.05 * jax.random.normal(ks[13], (1, hidden), jnp.float32),
        bnm=0.05 * jax.random.normal(ks[10], (1, hidden), jnp.float32),   # running_mean
        bnv=1.0 + 0.2 * jax.random.uniform(ks[11], (1, hidden), jnp.float32),  # running_var
        p2w=w(ks[10], (rep_dim, hidden)),
        p2b=w(ks[11], (1, rep_dim), 0.01),
    )


# ----------------------------------------------------------------------------
# Pure-JAX reference (mirrors the PyTorch eval-mode forward).  compute_dtype
# emulates the kernel's matmul-operand cast (f32 accumulation in both).
# ----------------------------------------------------------------------------
def reference_forward(x, params, compute_dtype=jnp.float32):
    hp = lax.Precision.HIGHEST
    B, C, L = x.shape
    scale = 1.0 / math.sqrt(L)
    c = lambda a: a.astype(compute_dtype)

    def mm(eq, a, b):
        return jnp.einsum(eq, c(a), c(b), precision=hp,
                          preferred_element_type=jnp.float32)

    def ln(v, w, b):
        mu = jnp.mean(v, axis=-1, keepdims=True)
        var = jnp.mean(jnp.square(v - mu), axis=-1, keepdims=True)
        return (v - mu) / jnp.sqrt(var + 1e-5) * w + b

    h = x + params['pe'][None, :, :]             # (B, C, L) == torch (seq, batch, embed)
    for i in range(params['ipw'].shape[0]):
        qkv = mm('bce,fe->bcf', h, params['ipw'][i]) + params['ipb'][i]
        q, k, v = qkv[..., :L], qkv[..., L:2 * L], qkv[..., 2 * L:]
        s = mm('qce,kce->cqk', q, k) * scale
        attn = jax.nn.softmax(s, axis=-1)
        ctx = mm('cqk,kce->qce', attn, v)
        sa = mm('qce,fe->qcf', ctx, params['opw'][i]) + params['opb'][i]
        h = ln(h + sa, params['ln1w'][i], params['ln1b'][i])
        ff = mm('qce,fe->qcf', h, params['f1w'][i]) + params['f1b'][i]
        ff = jnp.maximum(ff, 0.0)
        ff = mm('qcf,ef->qce', ff, params['f2w'][i]) + params['f2b'][i]
        h = ln(h + ff, params['ln2w'][i], params['ln2b'][i])

    hh = h.reshape(B, -1)
    z1 = mm('bf,hf->bh', hh, params['p1w']) + params['p1b']
    z1 = (z1 - params['bnm']) / jnp.sqrt(params['bnv'] + 1e-5) * params['bng'] + params['bnb']
    z1 = jnp.maximum(z1, 0.0)
    return mm('bh,rh->br', z1, params['p2w']) + params['p2b']


if __name__ == "__main__":
    # seq_length (== transformer d_model) = 128, input_channels = 4, batch = 8.
    # Input layout (B, C, L) matches the PyTorch module.
    B, C, L = 8, 4, 128

    key = jax.random.PRNGKey(0)
    kx, kp = jax.random.split(key)
    x = jax.random.normal(kx, (B, C, L), dtype=jnp.float32)
    params = init_params(kp, seq_length=L, input_channels=C)

    # 1) f32-operand kernel vs exact f32 reference: validates the algorithm
    #    (masked attention rewrite, folded scale, folded BN, fused projector,
    #    padded lane-dense output).
    z_f32 = jax.block_until_ready(
        timeseries_net_forward(x, params, compute_dtype=jnp.float32))
    ref_f32 = reference_forward(x, params, compute_dtype=jnp.float32)
    err_f32 = float(jnp.max(jnp.abs(z_f32 - ref_f32)))
    assert z_f32.shape == (B, 32), z_f32.shape
    assert err_f32 < 1e-2, f"f32 kernel max abs error vs reference: {err_f32}"

    # 2) default bf16-operand kernel (MXU-native path) vs bf16-emulating ref.
    z = jax.block_until_ready(timeseries_net_forward(x, params))
    ref_bf16 = reference_forward(x, params, compute_dtype=jnp.bfloat16)
    err_bf16 = float(jnp.max(jnp.abs(z - ref_bf16)))
    assert z.shape == (B, 32), z.shape
    assert err_bf16 < 2e-2, f"bf16 kernel max abs error vs reference: {err_bf16}"

    print("KERNEL_OK")
</pallas_src>

<mosaic_0001>
module attributes {stable_mosaic.version = 11 : i64} {
  func.func @timeseries_net_kernel(%arg0: memref<4x8x128xf32, #tpu.memory_space<vmem>>, %arg1: memref<4x1x128xf32, #tpu.memory_space<vmem>>, %arg2: memref<32x32xf32, #tpu.memory_space<vmem>>, %arg3: memref<2x384x128xf32, #tpu.memory_space<vmem>>, %arg4: memref<2x1x384xf32, #tpu.memory_space<vmem>>, %arg5: memref<2x128x128xf32, #tpu.memory_space<vmem>>, %arg6: memref<2x1x128xf32, #tpu.memory_space<vmem>>, %arg7: memref<2x1x128xf32, #tpu.memory_space<vmem>>, %arg8: memref<2x1x128xf32, #tpu.memory_space<vmem>>, %arg9: memref<2x1x128xf32, #tpu.memory_space<vmem>>, %arg10: memref<2x1x128xf32, #tpu.memory_space<vmem>>, %arg11: memref<2x256x128xf32, #tpu.memory_space<vmem>>, %arg12: memref<2x1x256xf32, #tpu.memory_space<vmem>>, %arg13: memref<2x128x256xf32, #tpu.memory_space<vmem>>, %arg14: memref<2x1x128xf32, #tpu.memory_space<vmem>>, %arg15: memref<256x512xf32, #tpu.memory_space<vmem>>, %arg16: memref<1x256xf32, #tpu.memory_space<vmem>>, %arg17: memref<128x256xf32, #tpu.memory_space<vmem>>, %arg18: memref<1x128xf32, #tpu.memory_space<vmem>>, %arg19: memref<8x128xf32, #tpu.memory_space<vmem>>) attributes {dimension_semantics = [], scalar_prefetch = 0 : i64, scratch_operands = 0 : i64, tpu.core_type = #tpu.core_type<tc>} {
    %c0 = arith.constant 0 : index
    %c0_0 = arith.constant 0 : index
    %c0_1 = arith.constant 0 : index
    %0 = vector.load %arg0[%c0, %c0_0, %c0_1] : memref<4x8x128xf32, #tpu.memory_space<vmem>>, vector<4x8x128xf32>
    %c0_2 = arith.constant 0 : index
    %c0_3 = arith.constant 0 : index
    %c0_4 = arith.constant 0 : index
    %1 = vector.load %arg1[%c0_2, %c0_3, %c0_4] : memref<4x1x128xf32, #tpu.memory_space<vmem>>, vector<4x1x128xf32>
    %2 = vector.broadcast %1 : vector<4x1x128xf32> to vector<4x8x128xf32>
    %3 = arith.addf %0, %2 : vector<4x8x128xf32>
    %4 = vector.shape_cast %3 : vector<4x8x128xf32> to vector<32x128xf32>
    %c0_5 = arith.constant 0 : index
    %c0_6 = arith.constant 0 : index
    %5 = vector.load %arg2[%c0_5, %c0_6] : memref<32x32xf32, #tpu.memory_space<vmem>>, vector<32x32xf32>
    %c0_7 = arith.constant 0 : index
    %c0_8 = arith.constant 0 : index
    %c0_9 = arith.constant 0 : index
    %6 = vector.load %arg3[%c0_7, %c0_8, %c0_9] : memref<2x384x128xf32, #tpu.memory_space<vmem>>, vector<1x384x128xf32>
    %7 = vector.shape_cast %6 : vector<1x384x128xf32> to vector<384x128xf32>
    %cst = arith.constant dense<0.000000e+00> : vector<32x384xf32>
    %8 = tpu.matmul %4, %7, %cst {dimension_numbers = #tpu.dot_dimension_numbers<[1], [1], [0], [0], [0, 0, 1, 0], [], []>} : vector<32x128xf32>, vector<384x128xf32>, vector<32x384xf32> -> vector<32x384xf32>
    %c0_10 = arith.constant 0 : index
    %c0_11 = arith.constant 0 : index
    %c0_12 = arith.constant 0 : index
    %9 = vector.load %arg4[%c0_10, %c0_11, %c0_12] : memref<2x1x384xf32, #tpu.memory_space<vmem>>, vector<1x1x384xf32>
    %10 = vector.shape_cast %9 : vector<1x1x384xf32> to vector<1x384xf32>
    %11 = vector.broadcast %10 : vector<1x384xf32> to vector<32x384xf32>
    %12 = arith.addf %8, %11 : vector<32x384xf32>
    %13 = vector.extract_strided_slice %12 {offsets = [0, 0], sizes = [32, 128], strides = [1, 1]} : vector<32x384xf32> to vector<32x128xf32>
    %14 = vector.extract_strided_slice %12 {offsets = [0, 128], sizes = [32, 128], strides = [1, 1]} : vector<32x384xf32> to vector<32x128xf32>
    %15 = vector.extract_strided_slice %12 {offsets = [0, 256], sizes = [32, 128], strides = [1, 1]} : vector<32x384xf32> to vector<32x128xf32>
    %cst_13 = arith.constant dense<0.000000e+00> : vector<32x32xf32>
    %16 = tpu.matmul %13, %14, %cst_13 {dimension_numbers = #tpu.dot_dimension_numbers<[1], [1], [0], [0], [0, 0, 1, 0], [], []>} : vector<32x128xf32>, vector<32x128xf32>, vector<32x32xf32> -> vector<32x32xf32>
    %17 = arith.addf %16, %5 : vector<32x32xf32>
    %cst_14 = arith.constant dense<0xFF800000> : vector<32xf32>
    %18 = vector.multi_reduction <maximumf>, %17, %cst_14 [1] : vector<32x32xf32> to vector<32xf32>
    %19 = vector.shape_cast %18 : vector<32xf32> to vector<32x1xf32>
    %20 = vector.broadcast %19 : vector<32x1xf32> to vector<32x32xf32>
    %21 = arith.subf %17, %20 : vector<32x32xf32>
    %22 = math.exp %21 : vector<32x32xf32>
    %cst_15 = arith.constant dense<0.000000e+00> : vector<32xf32>
    %23 = vector.multi_reduction <add>, %22, %cst_15 [1] : vector<32x32xf32> to vector<32xf32>
    %24 = vector.shape_cast %23 : vector<32xf32> to vector<32x1xf32>
    %25 = tpu.reciprocal %24 {approx = true} : vector<32x1xf32> -> vector<32x1xf32>
    %26 = vector.broadcast %25 : vector<32x1xf32> to vector<32x32xf32>
    %27 = arith.mulf %22, %26 : vector<32x32xf32>
    %cst_16 = arith.constant dense<0.000000e+00> : vector<32x128xf32>
    %28 = tpu.matmul %27, %15, %cst_16 {dimension_numbers = #tpu.dot_dimension_numbers<[1], [0], [0], [1], [0, 0, 1, 1], [], []>} : vector<32x32xf32>, vector<32x128xf32>, vector<32x128xf32> -> vector<32x128xf32>
    %c0_17 = arith.constant 0 : index
    %c0_18 = arith.constant 0 : index
    %c0_19 = arith.constant 0 : index
    %29 = vector.load %arg5[%c0_17, %c0_18, %c0_19] : memref<2x128x128xf32, #tpu.memory_space<vmem>>, vector<1x128x128xf32>
    %30 = vector.shape_cast %29 : vector<1x128x128xf32> to vector<128x128xf32>
    %cst_20 = arith.constant dense<0.000000e+00> : vector<32x128xf32>
    %31 = tpu.matmul %28, %30, %cst_20 {dimension_numbers = #tpu.dot_dimension_numbers<[1], [1], [0], [0], [0, 0, 1, 0], [], []>} : vector<32x128xf32>, vector<128x128xf32>, vector<32x128xf32> -> vector<32x128xf32>
    %c0_21 = arith.constant 0 : index
    %c0_22 = arith.constant 0 : index
    %c0_23 = arith.constant 0 : index
    %32 = vector.load %arg6[%c0_21, %c0_22, %c0_23] : memref<2x1x128xf32, #tpu.memory_space<vmem>>, vector<1x1x128xf32>
    %33 = vector.shape_cast %32 : vector<1x1x128xf32> to vector<1x128xf32>
    %34 = vector.broadcast %33 : vector<1x128xf32> to vector<32x128xf32>
    %35 = arith.addf %31, %34 : vector<32x128xf32>
    %36 = arith.addf %4, %35 : vector<32x128xf32>
    %c0_24 = arith.constant 0 : index
    %c0_25 = arith.constant 0 : index
    %c0_26 = arith.constant 0 : index
    %37 = vector.load %arg7[%c0_24, %c0_25, %c0_26] : memref<2x1x128xf32, #tpu.memory_space<vmem>>, vector<1x1x128xf32>
    %38 = vector.shape_cast %37 : vector<1x1x128xf32> to vector<1x128xf32>
    %c0_27 = arith.constant 0 : index
    %c0_28 = arith.constant 0 : index
    %c0_29 = arith.constant 0 : index
    %39 = vector.load %arg8[%c0_27, %c0_28, %c0_29] : memref<2x1x128xf32, #tpu.memory_space<vmem>>, vector<1x1x128xf32>
    %40 = vector.shape_cast %39 : vector<1x1x128xf32> to vector<1x128xf32>
    %cst_30 = arith.constant dense<0.000000e+00> : vector<32xf32>
    %41 = vector.multi_reduction <add>, %36, %cst_30 [1] : vector<32x128xf32> to vector<32xf32>
    %42 = vector.shape_cast %41 : vector<32xf32> to vector<32x1xf32>
    %cst_31 = arith.constant 1.280000e+02 : f32
    %43 = vector.broadcast %cst_31 : f32 to vector<32x1xf32>
    %44 = arith.divf %42, %43 : vector<32x1xf32>
    %45 = vector.broadcast %44 : vector<32x1xf32> to vector<32x128xf32>
    %46 = arith.subf %36, %45 : vector<32x128xf32>
    %47 = arith.mulf %46, %46 : vector<32x128xf32>
    %cst_32 = arith.constant dense<0.000000e+00> : vector<32xf32>
    %48 = vector.multi_reduction <add>, %47, %cst_32 [1] : vector<32x128xf32> to vector<32xf32>
    %49 = vector.shape_cast %48 : vector<32xf32> to vector<32x1xf32>
    %cst_33 = arith.constant 1.280000e+02 : f32
    %50 = vector.broadcast %cst_33 : f32 to vector<32x1xf32>
    %51 = arith.divf %49, %50 : vector<32x1xf32>
    %52 = vector.broadcast %44 : vector<32x1xf32> to vector<32x128xf32>
    %53 = arith.subf %36, %52 : vector<32x128xf32>
    %cst_34 = arith.constant 9.99999974E-6 : f32
    %54 = vector.broadcast %cst_34 : f32 to vector<32x1xf32>
    %55 = arith.addf %51, %54 : vector<32x1xf32>
    %56 = math.rsqrt %55 : vector<32x1xf32>
    %57 = vector.broadcast %56 : vector<32x1xf32> to vector<32x128xf32>
    %58 = arith.mulf %53, %57 : vector<32x128xf32>
    %59 = vector.broadcast %38 : vector<1x128xf32> to vector<32x128xf32>
    %60 = arith.mulf %58, %59 : vector<32x128xf32>
    %61 = vector.broadcast %40 : vector<1x128xf32> to vector<32x128xf32>
    %62 = arith.addf %60, %61 : vector<32x128xf32>
    %c0_35 = arith.constant 0 : index
    %c0_36 = arith.constant 0 : index
    %c0_37 = arith.constant 0 : index
    %63 = vector.load %arg11[%c0_35, %c0_36, %c0_37] : memref<2x256x128xf32, #tpu.memory_space<vmem>>, vector<1x256x128xf32>
    %64 = vector.shape_cast %63 : vector<1x256x128xf32> to vector<256x128xf32>
    %cst_38 = arith.constant dense<0.000000e+00> : vector<32x256xf32>
    %65 = tpu.matmul %62, %64, %cst_38 {dimension_numbers = #tpu.dot_dimension_numbers<[1], [1], [0], [0], [0, 0, 1, 0], [], []>} : vector<32x128xf32>, vector<256x128xf32>, vector<32x256xf32> -> vector<32x256xf32>
    %c0_39 = arith.constant 0 : index
    %c0_40 = arith.constant 0 : index
    %c0_41 = arith.constant 0 : index
    %66 = vector.load %arg12[%c0_39, %c0_40, %c0_41] : memref<2x1x256xf32, #tpu.memory_space<vmem>>, vector<1x1x256xf32>
    %67 = vector.shape_cast %66 : vector<1x1x256xf32> to vector<1x256xf32>
    %68 = vector.broadcast %67 : vector<1x256xf32> to vector<32x256xf32>
    %69 = arith.addf %65, %68 : vector<32x256xf32>
    %cst_42 = arith.constant 0.000000e+00 : f32
    %70 = vector.broadcast %cst_42 : f32 to vector<32x256xf32>
    %71 = arith.maximumf %69, %70 : vector<32x256xf32>
    %c0_43 = arith.constant 0 : index
    %c0_44 = arith.constant 0 : index
    %c0_45 = arith.constant 0 : index
    %72 = vector.load %arg13[%c0_43, %c0_44, %c0_45] : memref<2x128x256xf32, #tpu.memory_space<vmem>>, vector<1x128x256xf32>
    %73 = vector.shape_cast %72 : vector<1x128x256xf32> to vector<128x256xf32>
    %cst_46 = arith.constant dense<0.000000e+00> : vector<32x128xf32>
    %74 = tpu.matmul %71, %73, %cst_46 {dimension_numbers = #tpu.dot_dimension_numbers<[1], [1], [0], [0], [0, 0, 1, 0], [], []>} : vector<32x256xf32>, vector<128x256xf32>, vector<32x128xf32> -> vector<32x128xf32>
    %c0_47 = arith.constant 0 : index
    %c0_48 = arith.constant 0 : index
    %c0_49 = arith.constant 0 : index
    %75 = vector.load %arg14[%c0_47, %c0_48, %c0_49] : memref<2x1x128xf32, #tpu.memory_space<vmem>>, vector<1x1x128xf32>
    %76 = vector.shape_cast %75 : vector<1x1x128xf32> to vector<1x128xf32>
    %77 = vector.broadcast %76 : vector<1x128xf32> to vector<32x128xf32>
    %78 = arith.addf %74, %77 : vector<32x128xf32>
    %79 = arith.addf %62, %78 : vector<32x128xf32>
    %c0_50 = arith.constant 0 : index
    %c0_51 = arith.constant 0 : index
    %c0_52 = arith.constant 0 : index
    %80 = vector.load %arg9[%c0_50, %c0_51, %c0_52] : memref<2x1x128xf32, #tpu.memory_space<vmem>>, vector<1x1x128xf32>
    %81 = vector.shape_cast %80 : vector<1x1x128xf32> to vector<1x128xf32>
    %c0_53 = arith.constant 0 : index
    %c0_54 = arith.constant 0 : index
    %c0_55 = arith.constant 0 : index
    %82 = vector.load %arg10[%c0_53, %c0_54, %c0_55] : memref<2x1x128xf32, #tpu.memory_space<vmem>>, vector<1x1x128xf32>
    %83 = vector.shape_cast %82 : vector<1x1x128xf32> to vector<1x128xf32>
    %cst_56 = arith.constant dense<0.000000e+00> : vector<32xf32>
    %84 = vector.multi_reduction <add>, %79, %cst_56 [1] : vector<32x128xf32> to vector<32xf32>
    %85 = vector.shape_cast %84 : vector<32xf32> to vector<32x1xf32>
    %cst_57 = arith.constant 1.280000e+02 : f32
    %86 = vector.broadcast %cst_57 : f32 to vector<32x1xf32>
    %87 = arith.divf %85, %86 : vector<32x1xf32>
    %88 = vector.broadcast %87 : vector<32x1xf32> to vector<32x128xf32>
    %89 = arith.subf %79, %88 : vector<32x128xf32>
    %90 = arith.mulf %89, %89 : vector<32x128xf32>
    %cst_58 = arith.constant dense<0.000000e+00> : vector<32xf32>
    %91 = vector.multi_reduction <add>, %90, %cst_58 [1] : vector<32x128xf32> to vector<32xf32>
    %92 = vector.shape_cast %91 : vector<32xf32> to vector<32x1xf32>
    %cst_59 = arith.constant 1.280000e+02 : f32
    %93 = vector.broadcast %cst_59 : f32 to vector<32x1xf32>
    %94 = arith.divf %92, %93 : vector<32x1xf32>
    %95 = vector.broadcast %87 : vector<32x1xf32> to vector<32x128xf32>
    %96 = arith.subf %79, %95 : vector<32x128xf32>
    %cst_60 = arith.constant 9.99999974E-6 : f32
    %97 = vector.broadcast %cst_60 : f32 to vector<32x1xf32>
    %98 = arith.addf %94, %97 : vector<32x1xf32>
    %99 = math.rsqrt %98 : vector<32x1xf32>
    %100 = vector.broadcast %99 : vector<32x1xf32> to vector<32x128xf32>
    %101 = arith.mulf %96, %100 : vector<32x128xf32>
    %102 = vector.broadcast %81 : vector<1x128xf32> to vector<32x128xf32>
    %103 = arith.mulf %101, %102 : vector<32x128xf32>
    %104 = vector.broadcast %83 : vector<1x128xf32> to vector<32x128xf32>
    %105 = arith.addf %103, %104 : vector<32x128xf32>
    %c1 = arith.constant 1 : index
    %c0_61 = arith.constant 0 : index
    %c0_62 = arith.constant 0 : index
    %106 = vector.load %arg3[%c1, %c0_61, %c0_62] : memref<2x384x128xf32, #tpu.memory_space<vmem>>, vector<1x384x128xf32>
    %107 = vector.shape_cast %106 : vector<1x384x128xf32> to vector<384x128xf32>
    %cst_63 = arith.constant dense<0.000000e+00> : vector<32x384xf32>
    %108 = tpu.matmul %105, %107, %cst_63 {dimension_numbers = #tpu.dot_dimension_numbers<[1], [1], [0], [0], [0, 0, 1, 0], [], []>} : vector<32x128xf32>, vector<384x128xf32>, vector<32x384xf32> -> vector<32x384xf32>
    %c1_64 = arith.constant 1 : index
    %c0_65 = arith.constant 0 : index
    %c0_66 = arith.constant 0 : index
    %109 = vector.load %arg4[%c1_64, %c0_65, %c0_66] : memref<2x1x384xf32, #tpu.memory_space<vmem>>, vector<1x1x384xf32>
    %110 = vector.shape_cast %109 : vector<1x1x384xf32> to vector<1x384xf32>
    %111 = vector.broadcast %110 : vector<1x384xf32> to vector<32x384xf32>
    %112 = arith.addf %108, %111 : vector<32x384xf32>
    %113 = vector.extract_strided_slice %112 {offsets = [0, 0], sizes = [32, 128], strides = [1, 1]} : vector<32x384xf32> to vector<32x128xf32>
    %114 = vector.extract_strided_slice %112 {offsets = [0, 128], sizes = [32, 128], strides = [1, 1]} : vector<32x384xf32> to vector<32x128xf32>
    %115 = vector.extract_strided_slice %112 {offsets = [0, 256], sizes = [32, 128], strides = [1, 1]} : vector<32x384xf32> to vector<32x128xf32>
    %cst_67 = arith.constant dense<0.000000e+00> : vector<32x32xf32>
    %116 = tpu.matmul %113, %114, %cst_67 {dimension_numbers = #tpu.dot_dimension_numbers<[1], [1], [0], [0], [0, 0, 1, 0], [], []>} : vector<32x128xf32>, vector<32x128xf32>, vector<32x32xf32> -> vector<32x32xf32>
    %117 = arith.addf %116, %5 : vector<32x32xf32>
    %cst_68 = arith.constant dense<0xFF800000> : vector<32xf32>
    %118 = vector.multi_reduction <maximumf>, %117, %cst_68 [1] : vector<32x32xf32> to vector<32xf32>
    %119 = vector.shape_cast %118 : vector<32xf32> to vector<32x1xf32>
    %120 = vector.broadcast %119 : vector<32x1xf32> to vector<32x32xf32>
    %121 = arith.subf %117, %120 : vector<32x32xf32>
    %122 = math.exp %121 : vector<32x32xf32>
    %cst_69 = arith.constant dense<0.000000e+00> : vector<32xf32>
    %123 = vector.multi_reduction <add>, %122, %cst_69 [1] : vector<32x32xf32> to vector<32xf32>
    %124 = vector.shape_cast %123 : vector<32xf32> to vector<32x1xf32>
    %125 = tpu.reciprocal %124 {approx = true} : vector<32x1xf32> -> vector<32x1xf32>
    %126 = vector.broadcast %125 : vector<32x1xf32> to vector<32x32xf32>
    %127 = arith.mulf %122, %126 : vector<32x32xf32>
    %cst_70 = arith.constant dense<0.000000e+00> : vector<32x128xf32>
    %128 = tpu.matmul %127, %115, %cst_70 {dimension_numbers = #tpu.dot_dimension_numbers<[1], [0], [0], [1], [0, 0, 1, 1], [], []>} : vector<32x32xf32>, vector<32x128xf32>, vector<32x128xf32> -> vector<32x128xf32>
    %c1_71 = arith.constant 1 : index
    %c0_72 = arith.constant 0 : index
    %c0_73 = arith.constant 0 : index
    %129 = vector.load %arg5[%c1_71, %c0_72, %c0_73] : memref<2x128x128xf32, #tpu.memory_space<vmem>>, vector<1x128x128xf32>
    %130 = vector.shape_cast %129 : vector<1x128x128xf32> to vector<128x128xf32>
    %cst_74 = arith.constant dense<0.000000e+00> : vector<32x128xf32>
    %131 = tpu.matmul %128, %130, %cst_74 {dimension_numbers = #tpu.dot_dimension_numbers<[1], [1], [0], [0], [0, 0, 1, 0], [], []>} : vector<32x128xf32>, vector<128x128xf32>, vector<32x128xf32> -> vector<32x128xf32>
    %c1_75 = arith.constant 1 : index
    %c0_76 = arith.constant 0 : index
    %c0_77 = arith.constant 0 : index
    %132 = vector.load %arg6[%c1_75, %c0_76, %c0_77] : memref<2x1x128xf32, #tpu.memory_space<vmem>>, vector<1x1x128xf32>
    %133 = vector.shape_cast %132 : vector<1x1x128xf32> to vector<1x128xf32>
    %134 = vector.broadcast %133 : vector<1x128xf32> to vector<32x128xf32>
    %135 = arith.addf %131, %134 : vector<32x128xf32>
    %136 = arith.addf %105, %135 : vector<32x128xf32>
    %c1_78 = arith.constant 1 : index
    %c0_79 = arith.constant 0 : index
    %c0_80 = arith.constant 0 : index
    %137 = vector.load %arg7[%c1_78, %c0_79, %c0_80] : memref<2x1x128xf32, #tpu.memory_space<vmem>>, vector<1x1x128xf32>
    %138 = vector.shape_cast %137 : vector<1x1x128xf32> to vector<1x128xf32>
    %c1_81 = arith.constant 1 : index
    %c0_82 = arith.constant 0 : index
    %c0_83 = arith.constant 0 : index
    %139 = vector.load %arg8[%c1_81, %c0_82, %c0_83] : memref<2x1x128xf32, #tpu.memory_space<vmem>>, vector<1x1x128xf32>
    %140 = vector.shape_cast %139 : vector<1x1x128xf32> to vector<1x128xf32>
    %cst_84 = arith.constant dense<0.000000e+00> : vector<32xf32>
    %141 = vector.multi_reduction <add>, %136, %cst_84 [1] : vector<32x128xf32> to vector<32xf32>
    %142 = vector.shape_cast %141 : vector<32xf32> to vector<32x1xf32>
    %cst_85 = arith.constant 1.280000e+02 : f32
    %143 = vector.broadcast %cst_85 : f32 to vector<32x1xf32>
    %144 = arith.divf %142, %143 : vector<32x1xf32>
    %145 = vector.broadcast %144 : vector<32x1xf32> to vector<32x128xf32>
    %146 = arith.subf %136, %145 : vector<32x128xf32>
    %147 = arith.mulf %146, %146 : vector<32x128xf32>
    %cst_86 = arith.constant dense<0.000000e+00> : vector<32xf32>
    %148 = vector.multi_reduction <add>, %147, %cst_86 [1] : vector<32x128xf32> to vector<32xf32>
    %149 = vector.shape_cast %148 : vector<32xf32> to vector<32x1xf32>
    %cst_87 = arith.constant 1.280000e+02 : f32
    %150 = vector.broadcast %cst_87 : f32 to vector<32x1xf32>
    %151 = arith.divf %149, %150 : vector<32x1xf32>
    %152 = vector.broadcast %144 : vector<32x1xf32> to vector<32x128xf32>
    %153 = arith.subf %136, %152 : vector<32x128xf32>
    %cst_88 = arith.constant 9.99999974E-6 : f32
    %154 = vector.broadcast %cst_88 : f32 to vector<32x1xf32>
    %155 = arith.addf %151, %154 : vector<32x1xf32>
    %156 = math.rsqrt %155 : vector<32x1xf32>
    %157 = vector.broadcast %156 : vector<32x1xf32> to vector<32x128xf32>
    %158 = arith.mulf %153, %157 : vector<32x128xf32>
    %159 = vector.broadcast %138 : vector<1x128xf32> to vector<32x128xf32>
    %160 = arith.mulf %158, %159 : vector<32x128xf32>
    %161 = vector.broadcast %140 : vector<1x128xf32> to vector<32x128xf32>
    %162 = arith.addf %160, %161 : vector<32x128xf32>
    %c1_89 = arith.constant 1 : index
    %c0_90 = arith.constant 0 : index
    %c0_91 = arith.constant 0 : index
    %163 = vector.load %arg11[%c1_89, %c0_90, %c0_91] : memref<2x256x128xf32, #tpu.memory_space<vmem>>, vector<1x256x128xf32>
    %164 = vector.shape_cast %163 : vector<1x256x128xf32> to vector<256x128xf32>
    %cst_92 = arith.constant dense<0.000000e+00> : vector<32x256xf32>
    %165 = tpu.matmul %162, %164, %cst_92 {dimension_numbers = #tpu.dot_dimension_numbers<[1], [1], [0], [0], [0, 0, 1, 0], [], []>} : vector<32x128xf32>, vector<256x128xf32>, vector<32x256xf32> -> vector<32x256xf32>
    %c1_93 = arith.constant 1 : index
    %c0_94 = arith.constant 0 : index
    %c0_95 = arith.constant 0 : index
    %166 = vector.load %arg12[%c1_93, %c0_94, %c0_95] : memref<2x1x256xf32, #tpu.memory_space<vmem>>, vector<1x1x256xf32>
    %167 = vector.shape_cast %166 : vector<1x1x256xf32> to vector<1x256xf32>
    %168 = vector.broadcast %167 : vector<1x256xf32> to vector<32x256xf32>
    %169 = arith.addf %165, %168 : vector<32x256xf32>
    %cst_96 = arith.constant 0.000000e+00 : f32
    %170 = vector.broadcast %cst_96 : f32 to vector<32x256xf32>
    %171 = arith.maximumf %169, %170 : vector<32x256xf32>
    %c1_97 = arith.constant 1 : index
    %c0_98 = arith.constant 0 : index
    %c0_99 = arith.constant 0 : index
    %172 = vector.load %arg13[%c1_97, %c0_98, %c0_99] : memref<2x128x256xf32, #tpu.memory_space<vmem>>, vector<1x128x256xf32>
    %173 = vector.shape_cast %172 : vector<1x128x256xf32> to vector<128x256xf32>
    %cst_100 = arith.constant dense<0.000000e+00> : vector<32x128xf32>
    %174 = tpu.matmul %171, %173, %cst_100 {dimension_numbers = #tpu.dot_dimension_numbers<[1], [1], [0], [0], [0, 0, 1, 0], [], []>} : vector<32x256xf32>, vector<128x256xf32>, vector<32x128xf32> -> vector<32x128xf32>
    %c1_101 = arith.constant 1 : index
    %c0_102 = arith.constant 0 : index
    %c0_103 = arith.constant 0 : index
    %175 = vector.load %arg14[%c1_101, %c0_102, %c0_103] : memref<2x1x128xf32, #tpu.memory_space<vmem>>, vector<1x1x128xf32>
    %176 = vector.shape_cast %175 : vector<1x1x128xf32> to vector<1x128xf32>
    %177 = vector.broadcast %176 : vector<1x128xf32> to vector<32x128xf32>
    %178 = arith.addf %174, %177 : vector<32x128xf32>
    %179 = arith.addf %162, %178 : vector<32x128xf32>
    %c1_104 = arith.constant 1 : index
    %c0_105 = arith.constant 0 : index
    %c0_106 = arith.constant 0 : index
    %180 = vector.load %arg9[%c1_104, %c0_105, %c0_106] : memref<2x1x128xf32, #tpu.memory_space<vmem>>, vector<1x1x128xf32>
    %181 = vector.shape_cast %180 : vector<1x1x128xf32> to vector<1x128xf32>
    %c1_107 = arith.constant 1 : index
    %c0_108 = arith.constant 0 : index
    %c0_109 = arith.constant 0 : index
    %182 = vector.load %arg10[%c1_107, %c0_108, %c0_109] : memref<2x1x128xf32, #tpu.memory_space<vmem>>, vector<1x1x128xf32>
    %183 = vector.shape_cast %182 : vector<1x1x128xf32> to vector<1x128xf32>
    %cst_110 = arith.constant dense<0.000000e+00> : vector<32xf32>
    %184 = vector.multi_reduction <add>, %179, %cst_110 [1] : vector<32x128xf32> to vector<32xf32>
    %185 = vector.shape_cast %184 : vector<32xf32> to vector<32x1xf32>
    %cst_111 = arith.constant 1.280000e+02 : f32
    %186 = vector.broadcast %cst_111 : f32 to vector<32x1xf32>
    %187 = arith.divf %185, %186 : vector<32x1xf32>
    %188 = vector.broadcast %187 : vector<32x1xf32> to vector<32x128xf32>
    %189 = arith.subf %179, %188 : vector<32x128xf32>
    %190 = arith.mulf %189, %189 : vector<32x128xf32>
    %cst_112 = arith.constant dense<0.000000e+00> : vector<32xf32>
    %191 = vector.multi_reduction <add>, %190, %cst_112 [1] : vector<32x128xf32> to vector<32xf32>
    %192 = vector.shape_cast %191 : vector<32xf32> to vector<32x1xf32>
    %cst_113 = arith.constant 1.280000e+02 : f32
    %193 = vector.broadcast %cst_113 : f32 to vector<32x1xf32>
    %194 = arith.divf %192, %193 : vector<32x1xf32>
    %195 = vector.broadcast %187 : vector<32x1xf32> to vector<32x128xf32>
    %196 = arith.subf %179, %195 : vector<32x128xf32>
    %cst_114 = arith.constant 9.99999974E-6 : f32
    %197 = vector.broadcast %cst_114 : f32 to vector<32x1xf32>
    %198 = arith.addf %194, %197 : vector<32x1xf32>
    %199 = math.rsqrt %198 : vector<32x1xf32>
    %200 = vector.broadcast %199 : vector<32x1xf32> to vector<32x128xf32>
    %201 = arith.mulf %196, %200 : vector<32x128xf32>
    %202 = vector.broadcast %181 : vector<1x128xf32> to vector<32x128xf32>
    %203 = arith.mulf %201, %202 : vector<32x128xf32>
    %204 = vector.broadcast %183 : vector<1x128xf32> to vector<32x128xf32>
    %205 = arith.addf %203, %204 : vector<32x128xf32>
    %206 = vector.extract_strided_slice %205 {offsets = [0, 0], sizes = [8, 128], strides = [1, 1]} : vector<32x128xf32> to vector<8x128xf32>
    %207 = vector.extract_strided_slice %205 {offsets = [8, 0], sizes = [8, 128], strides = [1, 1]} : vector<32x128xf32> to vector<8x128xf32>
    %208 = vector.extract_strided_slice %205 {offsets = [16, 0], sizes = [8, 128], strides = [1, 1]} : vector<32x128xf32> to vector<8x128xf32>
    %209 = vector.extract_strided_slice %205 {offsets = [24, 0], sizes = [8, 128], strides = [1, 1]} : vector<32x128xf32> to vector<8x128xf32>
    %210 = tpu.concatenate %206, %207, %208, %209 in 1 : vector<8x128xf32>, vector<8x128xf32>, vector<8x128xf32>, vector<8x128xf32> -> vector<8x512xf32>
    %c0_115 = arith.constant 0 : index
    %c0_116 = arith.constant 0 : index
    %211 = vector.load %arg15[%c0_115, %c0_116] : memref<256x512xf32, #tpu.memory_space<vmem>>, vector<256x512xf32>
    %cst_117 = arith.constant dense<0.000000e+00> : vector<8x256xf32>
    %212 = tpu.matmul %210, %211, %cst_117 {dimension_numbers = #tpu.dot_dimension_numbers<[1], [1], [0], [0], [0, 0, 1, 0], [], []>} : vector<8x512xf32>, vector<256x512xf32>, vector<8x256xf32> -> vector<8x256xf32>
    %c0_118 = arith.constant 0 : index
    %c0_119 = arith.constant 0 : index
    %213 = vector.load %arg16[%c0_118, %c0_119] : memref<1x256xf32, #tpu.memory_space<vmem>>, vector<1x256xf32>
    %214 = vector.broadcast %213 : vector<1x256xf32> to vector<8x256xf32>
    %215 = arith.addf %212, %214 : vector<8x256xf32>
    %cst_120 = arith.constant 0.000000e+00 : f32
    %216 = vector.broadcast %cst_120 : f32 to vector<8x256xf32>
    %217 = arith.maximumf %215, %216 : vector<8x256xf32>
    %c0_121 = arith.constant 0 : index
    %c0_122 = arith.constant 0 : index
    %218 = vector.load %arg17[%c0_121, %c0_122] : memref<128x256xf32, #tpu.memory_space<vmem>>, vector<128x256xf32>
    %cst_123 = arith.constant dense<0.000000e+00> : vector<8x128xf32>
    %219 = tpu.matmul %217, %218, %cst_123 {dimension_numbers = #tpu.dot_dimension_numbers<[1], [1], [0], [0], [0, 0, 1, 0], [], []>} : vector<8x256xf32>, vector<128x256xf32>, vector<8x128xf32> -> vector<8x128xf32>
    %c0_124 = arith.constant 0 : index
    %c0_125 = arith.constant 0 : index
    %220 = vector.load %arg18[%c0_124, %c0_125] : memref<1x128xf32, #tpu.memory_space<vmem>>, vector<1x128xf32>
    %221 = vector.broadcast %220 : vector<1x128xf32> to vector<8x128xf32>
    %222 = arith.addf %219, %221 : vector<8x128xf32>
    %c0_126 = arith.constant 0 : index
    %c0_127 = arith.constant 0 : index
    %223 = vector.load %arg19[%c0_126, %c0_127] : memref<8x128xf32, #tpu.memory_space<vmem>>, vector<8x128xf32>
    tpu.vector_store %arg19[%c0_126, %c0_127], %222 {strides = array<i32>} : memref<8x128xf32, #tpu.memory_space<vmem>>, vector<8x128xf32>,
    return
  }
}

</mosaic_0001>

<llo_original>
// kernel: tpu_custom_call.1
$region0: #{tpu_custom_call.1}
  #allocation0 [shape = 'u32[]', space=smem, size = 0x4, offset = 0x4, fixed_abs, tag = 'smem constant byte address 0x4 - core index']
  #allocation1 [shape = 'u32[144,128]{1,0:T(1,128)}', space=vmem, size = 0x12000, scoped, tag = 'internal scratch']
  %s0 = inlined_call_operand.hbm [shape: f32[4,8,128], index: 0, kind: input, shape index: {}]
  %s1 = inlined_call_operand.hbm [shape: f32[4,1,128], index: 1, kind: input, shape index: {}]
  %s2 = inlined_call_operand.hbm [shape: f32[32,32], index: 2, kind: input, shape index: {}]
  %s3 = inlined_call_operand.hbm [shape: f32[2,384,128], index: 3, kind: input, shape index: {}]
  %s4 = inlined_call_operand.vmem [shape: f32[2,1,384], index: 4, kind: input, shape index: {}]
  %s5 = inlined_call_operand.hbm [shape: f32[2,128,128], index: 5, kind: input, shape index: {}]
  %s6 = inlined_call_operand.hbm [shape: f32[2,1,128], index: 6, kind: input, shape index: {}]
  %s7 = inlined_call_operand.vmem [shape: f32[2,1,128], index: 7, kind: input, shape index: {}]
  %s8 = inlined_call_operand.vmem [shape: f32[2,1,128], index: 8, kind: input, shape index: {}]
  %s9 = inlined_call_operand.vmem [shape: f32[2,1,128], index: 9, kind: input, shape index: {}]
  %s10 = inlined_call_operand.vmem [shape: f32[2,1,128], index: 10, kind: input, shape index: {}]
  %s11 = inlined_call_operand.hbm [shape: f32[2,256,128], index: 11, kind: input, shape index: {}]
  %s12 = inlined_call_operand.vmem [shape: f32[2,1,256], index: 12, kind: input, shape index: {}]
  %s13 = inlined_call_operand.hbm [shape: f32[2,128,256], index: 13, kind: input, shape index: {}]
  %s14 = inlined_call_operand.vmem [shape: f32[2,1,128], index: 14, kind: input, shape index: {}]
  %s15 = inlined_call_operand.hbm [shape: f32[256,512], index: 15, kind: input, shape index: {}]
  %s16 = inlined_call_operand.vmem [shape: f32[1,256], index: 16, kind: input, shape index: {}]
  %s17 = inlined_call_operand.hbm [shape: f32[128,256], index: 17, kind: input, shape index: {}]
  %s18 = inlined_call_operand.vmem [shape: f32[1,128], index: 18, kind: input, shape index: {}]
  %s19 = inlined_call_operand.hbm [shape: f32[8,128], index: 19, kind: output, shape index: {}]
  %s20 = sld [smem:[#allocation0]]
  $region126: #{tpu_custom_call.1} parent=0
    _
  %s22 = ssub.s32 1, %s20
  %s23 = scalar_select 0, %s22, %s20
  $region1: #{tpu_custom_call.1} parent=0
    #allocation2 [shape = 'u8[16384]{0}', space=vmem, size = 0x4000, scoped, tag = 'input window, operand 0, single buffered']
    #allocation3 [shape = 's32[1]{0}', space=sflag, size = 0x4, scoped, tag = 'scoped memory for tpu_custom_call.1']
    #allocation4 [shape = 's32[1]{0}', space=sflag, size = 0x4, scoped, tag = 'scoped memory for tpu_custom_call.1']
    #allocation5 [shape = 'u8[2048]{0}', space=vmem, size = 0x800, scoped, tag = 'input window, operand 1, single buffered']
    #allocation6 [shape = 's32[1]{0}', space=sflag, size = 0x4, scoped, tag = 'scoped memory for tpu_custom_call.1']
    #allocation7 [shape = 'u8[16384]{0}', space=vmem, size = 0x4000, scoped, tag = 'input window, operand 2, single buffered']
    #allocation8 [shape = 'u8[393216]{0}', space=vmem, size = 0x60000, scoped, tag = 'input window, operand 3, single buffered']
    #allocation9 [shape = 's32[1]{0}', space=sflag, size = 0x4, scoped, tag = 'scoped memory for tpu_custom_call.1']
    #allocation10 [shape = 'u8[131072]{0}', space=vmem, size = 0x20000, scoped, tag = 'input window, operand 5, single buffered']
    #allocation11 [shape = 'u8[1024]{0}', space=vmem, size = 0x400, scoped, tag = 'input window, operand 6, single buffered']
    #allocation12 [shape = 's32[1]{0}', space=sflag, size = 0x4, scoped, tag = 'scoped memory for tpu_custom_call.1']
    #allocation13 [shape = 'u8[262144]{0}', space=vmem, size = 0x40000, scoped, tag = 'input window, operand 11, single buffered']
    #allocation14 [shape = 'u8[262144]{0}', space=vmem, size = 0x40000, scoped, tag = 'input window, operand 13, single buffered']
    #allocation15 [shape = 's32[1]{0}', space=sflag, size = 0x4, scoped, tag = 'scoped memory for tpu_custom_call.1']
    #allocation16 [shape = 'u8[524288]{0}', space=vmem, size = 0x80000, scoped, tag = 'input window, operand 15, single buffered']
    #allocation17 [shape = 'u8[131072]{0}', space=vmem, size = 0x20000, scoped, tag = 'input window, operand 17, single buffered']
    #allocation18 [shape = 's32[1]{0}', space=sflag, size = 0x4, scoped, tag = 'scoped memory for tpu_custom_call.1']
    #allocation19 [shape = 'u8[4096]{0}', space=vmem, size = 0x1000, scoped, tag = 'output window, operand 0, single buffered']
    %24 = vsyncpa [#allocation3], 0
    %25 = vsyncpa [#allocation6], 0
    %26 = vsyncpa [#allocation9], 0
    %27 = vsyncpa [#allocation12], 0
    %28 = vsyncpa [#allocation15], 0
    %29 = vsyncpa [#allocation18], 0
    %30 = vsyncpa [#allocation4], 0
    // Predicated region
    $region2: #{tpu_custom_call.1} parent=1 // pred_check
      _
    $region3: #{tpu_custom_call.1} parent=1 // pred_check_branch
      %32 = sbr.rel (0) target = $region5
    $region4: #{tpu_custom_call.1} parent=1 // pred_region
      %s34 = ssub.s32 512, 512
      %35 = vsyncadd [#allocation3], %s34
      %s36 = sshll.u32 [#allocation2], 4
      %s37 = int_to_ptr.vmem [resolvable:$true] %s36
      %42 = dma.hbm_to_vmem [thread:$0]  %s0, 512, %s37, [#allocation3], 128, 128, 8
    $region5: #{tpu_custom_call.1} parent=1 // pred_fallthru
      _
    // Predicated region
    $region6: #{tpu_custom_call.1} parent=1 // pred_check
      _
    $region7: #{tpu_custom_call.1} parent=1 // pred_check_branch
      %44 = sbr.rel (0) target = $region9
    $region8: #{tpu_custom_call.1} parent=1 // pred_region
      %s46 = ssub.s32 64, 64
      %47 = vsyncadd [#allocation6], %s46
      %s48 = sshll.u32 [#allocation5], 4
      %s49 = int_to_ptr.vmem [resolvable:$true] %s48
      %54 = dma.hbm_to_vmem [thread:$0]  %s1, 64, %s49, [#allocation6], 16, 16, 1
    $region9: #{tpu_custom_call.1} parent=1 // pred_fallthru
      _
    // Predicated region
    $region10: #{tpu_custom_call.1} parent=1 // pred_check
      _
    $region11: #{tpu_custom_call.1} parent=1 // pred_check_branch
      %56 = sbr.rel (0) target = $region13
    $region12: #{tpu_custom_call.1} parent=1 // pred_region
      %s58 = ssub.s32 512, 512
      %59 = vsyncadd [#allocation6], %s58
      %s60 = sshll.u32 [#allocation7], 4
      %s61 = int_to_ptr.vmem [resolvable:$true] %s60
      %66 = dma.hbm_to_vmem [thread:$0]  %s2, 512, %s61, [#allocation6], 128, 128, 8
    $region13: #{tpu_custom_call.1} parent=1 // pred_fallthru
      _
    // Predicated region
    $region14: #{tpu_custom_call.1} parent=1 // pred_check
      _
    $region15: #{tpu_custom_call.1} parent=1 // pred_check_branch
      %68 = sbr.rel (0) target = $region17
    $region16: #{tpu_custom_call.1} parent=1 // pred_region
      %s70 = ssub.s32 12288, 12288
      %71 = vsyncadd [#allocation9], %s70
      %s72 = sshll.u32 [#allocation8], 4
      %s73 = int_to_ptr.vmem [resolvable:$true] %s72
      %78 = dma.hbm_to_vmem [thread:$0]  %s3, 12288, %s73, [#allocation9], 128, 128, 8
    $region17: #{tpu_custom_call.1} parent=1 // pred_fallthru
      _
    // Predicated region
    $region18: #{tpu_custom_call.1} parent=1 // pred_check
      _
    $region19: #{tpu_custom_call.1} parent=1 // pred_check_branch
      %80 = sbr.rel (0) target = $region21
    $region20: #{tpu_custom_call.1} parent=1 // pred_region
      _
    $region21: #{tpu_custom_call.1} parent=1 // pred_fallthru
      _
    // Predicated region
    $region22: #{tpu_custom_call.1} parent=1 // pred_check
      _
    $region23: #{tpu_custom_call.1} parent=1 // pred_check_branch
      %82 = sbr.rel (0) target = $region25
    $region24: #{tpu_custom_call.1} parent=1 // pred_region
      %s84 = ssub.s32 4096, 4096
      %85 = vsyncadd [#allocation9], %s84
      %s86 = sshll.u32 [#allocation10], 4
      %s87 = int_to_ptr.vmem [resolvable:$true] %s86
      %92 = dma.hbm_to_vmem [thread:$0]  %s5, 4096, %s87, [#allocation9], 128, 128, 8
    $region25: #{tpu_custom_call.1} parent=1 // pred_fallthru
      _
    // Predicated region
    $region26: #{tpu_custom_call.1} parent=1 // pred_check
      _
    $region27: #{tpu_custom_call.1} parent=1 // pred_check_branch
      %94 = sbr.rel (0) target = $region29
    $region28: #{tpu_custom_call.1} parent=1 // pred_region
      %s96 = ssub.s32 32, 32
      %97 = vsyncadd [#allocation12], %s96
      %s98 = sshll.u32 [#allocation11], 4
      %s99 = int_to_ptr.vmem [resolvable:$true] %s98
      %104 = dma.hbm_to_vmem [thread:$0]  %s6, 32, %s99, [#allocation12], 16, 16, 1
    $region29: #{tpu_custom_call.1} parent=1 // pred_fallthru
      _
    // Predicated region
    $region30: #{tpu_custom_call.1} parent=1 // pred_check
      _
    $region31: #{tpu_custom_call.1} parent=1 // pred_check_branch
      %106 = sbr.rel (0) target = $region33
    $region32: #{tpu_custom_call.1} parent=1 // pred_region
      _
    $region33: #{tpu_custom_call.1} parent=1 // pred_fallthru
      _
    // Predicated region
    $region34: #{tpu_custom_call.1} parent=1 // pred_check
      _
    $region35: #{tpu_custom_call.1} parent=1 // pred_check_branch
      %108 = sbr.rel (0) target = $region37
    $region36: #{tpu_custom_call.1} parent=1 // pred_region
      _
    $region37: #{tpu_custom_call.1} parent=1 // pred_fallthru
      _
    // Predicated region
    $region38: #{tpu_custom_call.1} parent=1 // pred_check
      _
    $region39: #{tpu_custom_call.1} parent=1 // pred_check_branch
      %110 = sbr.rel (0) target = $region41
    $region40: #{tpu_custom_call.1} parent=1 // pred_region
      _
    $region41: #{tpu_custom_call.1} parent=1 // pred_fallthru
      _
    // Predicated region
    $region42: #{tpu_custom_call.1} parent=1 // pred_check
      _
    $region43: #{tpu_custom_call.1} parent=1 // pred_check_branch
      %112 = sbr.rel (0) target = $region45
    $region44: #{tpu_custom_call.1} parent=1 // pred_region
      _
    $region45: #{tpu_custom_call.1} parent=1 // pred_fallthru
      _
    // Predicated region
    $region46: #{tpu_custom_call.1} parent=1 // pred_check
      _
    $region47: #{tpu_custom_call.1} parent=1 // pred_check_branch
      %114 = sbr.rel (0) target = $region49
    $region48: #{tpu_custom_call.1} parent=1 // pred_region
      %s116 = ssub.s32 8192, 8192
      %117 = vsyncadd [#allocation12], %s116
      %s118 = sshll.u32 [#allocation13], 4
      %s119 = int_to_ptr.vmem [resolvable:$true] %s118
      %124 = dma.hbm_to_vmem [thread:$0]  %s11, 8192, %s119, [#allocation12], 128, 128, 8
    $region49: #{tpu_custom_call.1} parent=1 // pred_fallthru
      _
    // Predicated region
    $region50: #{tpu_custom_call.1} parent=1 // pred_check
      _
    $region51: #{tpu_custom_call.1} parent=1 // pred_check_branch
      %126 = sbr.rel (0) target = $region53
    $region52: #{tpu_custom_call.1} parent=1 // pred_region
      _
    $region53: #{tpu_custom_call.1} parent=1 // pred_fallthru
      _
    // Predicated region
    $region54: #{tpu_custom_call.1} parent=1 // pred_check
      _
    $region55: #{tpu_custom_call.1} parent=1 // pred_check_branch
      %128 = sbr.rel (0) target = $region57
    $region56: #{tpu_custom_call.1} parent=1 // pred_region
      %s130 = ssub.s32 8192, 8192
      %131 = vsyncadd [#allocation15], %s130
      %s132 = sshll.u32 [#allocation14], 4
      %s133 = int_to_ptr.vmem [resolvable:$true] %s132
      %138 = dma.hbm_to_vmem [thread:$0]  %s13, 8192, %s133, [#allocation15], 256, 256, 16
    $region57: #{tpu_custom_call.1} parent=1 // pred_fallthru
      _
    // Predicated region
    $region58: #{tpu_custom_call.1} parent=1 // pred_check
      _
    $region59: #{tpu_custom_call.1} parent=1 // pred_check_branch
      %140 = sbr.rel (0) target = $region61
    $region60: #{tpu_custom_call.1} parent=1 // pred_region
      _
    $region61: #{tpu_custom_call.1} parent=1 // pred_fallthru
      _
    // Predicated region
    $region62: #{tpu_custom_call.1} parent=1 // pred_check
      _
    $region63: #{tpu_custom_call.1} parent=1 // pred_check_branch
      %142 = sbr.rel (0) target = $region65
    $region64: #{tpu_custom_call.1} parent=1 // pred_region
      %s144 = ssub.s32 16384, 16384
      %145 = vsyncadd [#allocation15], %s144
      %s146 = sshll.u32 [#allocation16], 4
      %s147 = int_to_ptr.vmem [resolvable:$true] %s146
      %152 = dma.hbm_to_vmem [thread:$0]  %s15, 16384, %s147, [#allocation15], 512, 512, 32
    $region65: #{tpu_custom_call.1} parent=1 // pred_fallthru
      _
    // Predicated region
    $region66: #{tpu_custom_call.1} parent=1 // pred_check
      _
    $region67: #{tpu_custom_call.1} parent=1 // pred_check_branch
      %154 = sbr.rel (0) target = $region69
    $region68: #{tpu_custom_call.1} parent=1 // pred_region
      _
    $region69: #{tpu_custom_call.1} parent=1 // pred_fallthru
      _
    // Predicated region
    $region70: #{tpu_custom_call.1} parent=1 // pred_check
      _
    $region71: #{tpu_custom_call.1} parent=1 // pred_check_branch
      %156 = sbr.rel (0) target = $region73
    $region72: #{tpu_custom_call.1} parent=1 // pred_region
      %s158 = ssub.s32 4096, 4096
      %159 = vsyncadd [#allocation18], %s158
      %s160 = sshll.u32 [#allocation17], 4
      %s161 = int_to_ptr.vmem [resolvable:$true] %s160
      %166 = dma.hbm_to_vmem [thread:$0]  %s17, 4096, %s161, [#allocation18], 256, 256, 16
    $region73: #{tpu_custom_call.1} parent=1 // pred_fallthru
      _
    // Predicated region
    $region74: #{tpu_custom_call.1} parent=1 // pred_check
      _
    $region75: #{tpu_custom_call.1} parent=1 // pred_check_branch
      %168 = sbr.rel (0) target = $region77
    $region76: #{tpu_custom_call.1} parent=1 // pred_region
      _
    $region77: #{tpu_custom_call.1} parent=1 // pred_fallthru
      _
    // Predicated region
    $region78: #{tpu_custom_call.1} parent=1 // pred_check
      _
    $region79: #{tpu_custom_call.1} parent=1 // pred_check_branch
      %170 = sbr.rel (0) target = $region81
    $region80: #{tpu_custom_call.1} parent=1 // pred_region
      %171 = dma.done [#allocation3], 512
    $region81: #{tpu_custom_call.1} parent=1 // pred_fallthru
      _
    // Predicated region
    $region82: #{tpu_custom_call.1} parent=1 // pred_check
      _
    $region83: #{tpu_custom_call.1} parent=1 // pred_check_branch
      %173 = sbr.rel (0) target = $region85
    $region84: #{tpu_custom_call.1} parent=1 // pred_region
      %174 = dma.done [#allocation6], 64
    $region85: #{tpu_custom_call.1} parent=1 // pred_fallthru
      _
    // Predicated region
    $region86: #{tpu_custom_call.1} parent=1 // pred_check
      _
    $region87: #{tpu_custom_call.1} parent=1 // pred_check_branch
      %176 = sbr.rel (0) target = $region89
    $region88: #{tpu_custom_call.1} parent=1 // pred_region
      %177 = dma.done [#allocation6], 512
    $region89: #{tpu_custom_call.1} parent=1 // pred_fallthru
      _
    // Predicated region
    $region90: #{tpu_custom_call.1} parent=1 // pred_check
      _
    $region91: #{tpu_custom_call.1} parent=1 // pred_check_branch
      %179 = sbr.rel (0) target = $region93
    $region92: #{tpu_custom_call.1} parent=1 // pred_region
      %180 = dma.done [#allocation9], 12288
    $region93: #{tpu_custom_call.1} parent=1 // pred_fallthru
      _
    // Predicated region
    $region94: #{tpu_custom_call.1} parent=1 // pred_check
      _
    $region95: #{tpu_custom_call.1} parent=1 // pred_check_branch
      %182 = sbr.rel (0) target = $region97
    $region96: #{tpu_custom_call.1} parent=1 // pred_region
      %183 = dma.done [#allocation9], 4096
    $region97: #{tpu_custom_call.1} parent=1 // pred_fallthru
      _
    // Predicated region
    $region98: #{tpu_custom_call.1} parent=1 // pred_check
      _
    $region99: #{tpu_custom_call.1} parent=1 // pred_check_branch
      %185 = sbr.rel (0) target = $region101
    $region100: #{tpu_custom_call.1} parent=1 // pred_region
      %186 = dma.done [#allocation12], 32
    $region101: #{tpu_custom_call.1} parent=1 // pred_fallthru
      _
    // Predicated region
    $region102: #{tpu_custom_call.1} parent=1 // pred_check
      _
    $region103: #{tpu_custom_call.1} parent=1 // pred_check_branch
      %188 = sbr.rel (0) target = $region105
    $region104: #{tpu_custom_call.1} parent=1 // pred_region
      %189 = dma.done [#allocation12], 8192
    $region105: #{tpu_custom_call.1} parent=1 // pred_fallthru
      _
    // Predicated region
    $region106: #{tpu_custom_call.1} parent=1 // pred_check
      _
    $region107: #{tpu_custom_call.1} parent=1 // pred_check_branch
      %191 = sbr.rel (0) target = $region109
    $region108: #{tpu_custom_call.1} parent=1 // pred_region
      %192 = dma.done [#allocation15], 8192
    $region109: #{tpu_custom_call.1} parent=1 // pred_fallthru
      _
    // Predicated region
    $region110: #{tpu_custom_call.1} parent=1 // pred_check
      _
    $region111: #{tpu_custom_call.1} parent=1 // pred_check_branch
      %194 = sbr.rel (0) target = $region113
    $region112: #{tpu_custom_call.1} parent=1 // pred_region
      %195 = dma.done [#allocation15], 16384
    $region113: #{tpu_custom_call.1} parent=1 // pred_fallthru
      _
    // Predicated region
    $region114: #{tpu_custom_call.1} parent=1 // pred_check
      _
    $region115: #{tpu_custom_call.1} parent=1 // pred_check_branch
      %197 = sbr.rel (0) target = $region117
    $region116: #{tpu_custom_call.1} parent=1 // pred_region
      %198 = dma.done [#allocation18], 4096
    $region117: #{tpu_custom_call.1} parent=1 // pred_fallthru
      _
    %v199 = vld [vmem:[#allocation2] sm:$0xff]
    %v200 = vld [vmem:[#allocation2 + $0x8] sm:$0xff]
    %v201 = vld [vmem:[#allocation2 + $0x10] sm:$0xff]
    %v202 = vld [vmem:[#allocation2 + $0x18] sm:$0xff]
    %v203 = vld [vmem:[#allocation5] sm:$0x1]
    %v204 = vld [vmem:[#allocation5 + $0x1] sm:$0x1]
    %v205 = vld [vmem:[#allocation5 + $0x2] sm:$0x1]
    %v206 = vld [vmem:[#allocation5 + $0x3] sm:$0x1]
    %v211 = vlaneseq
    %v212 = vshrl.u32 %v211, 7
    %v213 = vsub.s32 0, %v212
    %v214 = vrot.slane %v203, %v213
    %v215 = vlaneseq
    %v216 = vshrl.u32 %v215, 7
    %v217 = vsub.s32 0, %v216
    %v218 = vrot.slane %v204, %v217
    %v219 = vlaneseq
    %v220 = vshrl.u32 %v219, 7
    %v221 = vsub.s32 0, %v220
    %v222 = vrot.slane %v205, %v221
    %v223 = vlaneseq
    %v224 = vshrl.u32 %v223, 7
    %v225 = vsub.s32 0, %v224
    %v226 = vrot.slane %v206, %v225
    %v231 = vadd.f32 %v199, %v214
    %v232 = vadd.f32 %v200, %v218
    %v233 = vadd.f32 %v201, %v222
    %v234 = vadd.f32 %v202, %v226
    %v235 = vld [vmem:[#allocation7] sm:$0xff]
    %v236 = vld [vmem:[#allocation7 + $0x8] sm:$0xff]
    %v237 = vld [vmem:[#allocation7 + $0x10] sm:$0xff]
    %v238 = vld [vmem:[#allocation7 + $0x18] sm:$0xff]
    %v239 = vld [vmem:[#allocation8] sm:$0xff]
    %v240 = vld [vmem:[#allocation8 + $0x8] sm:$0xff]
    %v241 = vld [vmem:[#allocation8 + $0x10] sm:$0xff]
    %v242 = vld [vmem:[#allocation8 + $0x18] sm:$0xff]
    %v243 = vld [vmem:[#allocation8 + $0x20] sm:$0xff]
    %v244 = vld [vmem:[#allocation8 + $0x28] sm:$0xff]
    %v245 = vld [vmem:[#allocation8 + $0x30] sm:$0xff]
    %v246 = vld [vmem:[#allocation8 + $0x38] sm:$0xff]
    %v247 = vld [vmem:[#allocation8 + $0x40] sm:$0xff]
    %v248 = vld [vmem:[#allocation8 + $0x48] sm:$0xff]
    %v249 = vld [vmem:[#allocation8 + $0x50] sm:$0xff]
    %v250 = vld [vmem:[#allocation8 + $0x58] sm:$0xff]
    %v251 = vld [vmem:[#allocation8 + $0x60] sm:$0xff]
    %v252 = vld [vmem:[#allocation8 + $0x68] sm:$0xff]
    %v253 = vld [vmem:[#allocation8 + $0x70] sm:$0xff]
    %v254 = vld [vmem:[#allocation8 + $0x78] sm:$0xff]
    %v255 = vld [vmem:[#allocation8 + $0x80] sm:$0xff]
    %v256 = vld [vmem:[#allocation8 + $0x88] sm:$0xff]
    %v257 = vld [vmem:[#allocation8 + $0x90] sm:$0xff]
    %v258 = vld [vmem:[#allocation8 + $0x98] sm:$0xff]
    %v259 = vld [vmem:[#allocation8 + $0xa0] sm:$0xff]
    %v260 = vld [vmem:[#allocation8 + $0xa8] sm:$0xff]
    %v261 = vld [vmem:[#allocation8 + $0xb0] sm:$0xff]
    %v262 = vld [vmem:[#allocation8 + $0xb8] sm:$0xff]
    %v263 = vld [vmem:[#allocation8 + $0xc0] sm:$0xff]
    %v264 = vld [vmem:[#allocation8 + $0xc8] sm:$0xff]
    %v265 = vld [vmem:[#allocation8 + $0xd0] sm:$0xff]
    %v266 = vld [vmem:[#allocation8 + $0xd8] sm:$0xff]
    %v267 = vld [vmem:[#allocation8 + $0xe0] sm:$0xff]
    %v268 = vld [vmem:[#allocation8 + $0xe8] sm:$0xff]
    %v269 = vld [vmem:[#allocation8 + $0xf0] sm:$0xff]
    %v270 = vld [vmem:[#allocation8 + $0xf8] sm:$0xff]
    %v271 = vld [vmem:[#allocation8 + $0x100] sm:$0xff]
    %v272 = vld [vmem:[#allocation8 + $0x108] sm:$0xff]
    %v273 = vld [vmem:[#allocation8 + $0x110] sm:$0xff]
    %v274 = vld [vmem:[#allocation8 + $0x118] sm:$0xff]
    %v275 = vld [vmem:[#allocation8 + $0x120] sm:$0xff]
    %v276 = vld [vmem:[#allocation8 + $0x128] sm:$0xff]
    %v277 = vld [vmem:[#allocation8 + $0x130] sm:$0xff]
    %v278 = vld [vmem:[#allocation8 + $0x138] sm:$0xff]
    %v279 = vld [vmem:[#allocation8 + $0x140] sm:$0xff]
    %v280 = vld [vmem:[#allocation8 + $0x148] sm:$0xff]
    %v281 = vld [vmem:[#allocation8 + $0x150] sm:$0xff]
    %v282 = vld [vmem:[#allocation8 + $0x158] sm:$0xff]
    %v283 = vld [vmem:[#allocation8 + $0x160] sm:$0xff]
    %v284 = vld [vmem:[#allocation8 + $0x168] sm:$0xff]
    %v285 = vld [vmem:[#allocation8 + $0x170] sm:$0xff]
    %v286 = vld [vmem:[#allocation8 + $0x178] sm:$0xff]
    %v287 = vld [vmem:[%s4] sm:$0x7]
    %v289 = vlaneseq
    %v290 = vshrl.u32 %v289, 7
    %v291 = vsub.s32 0, %v290
    %v292 = vrot.slane %v287, %v291
    %v293 = vlaneseq
    %v294 = vshrl.u32 %v293, 7
    %v295 = vsub.s32 1, %v294
    %v296 = vrot.slane %v287, %v295
    %v297 = vlaneseq
    %v298 = vshrl.u32 %v297, 7
    %v299 = vsub.s32 2, %v298
    %v300 = vrot.slane %v287, %v299
    %304 = vmatprep.subr.mxu0 0.0
    %305 = vmatpush1.xpose.msra.mxu0 %v254
    %306 = vmatprep.subr.mxu0 0.0
    %307 = vmatpush1.xpose.msra.mxu0 %v253
    %308 = vmatprep.subr.mxu0 0.0
    %309 = vmatpush1.xpose.msra.mxu0 %v252
    %310 = vmatprep.subr.mxu0 0.0
    %311 = vmatpush1.xpose.msra.mxu0 %v251
    %312 = vmatprep.subr.mxu0 0.0
    %313 = vmatpush1.xpose.msra.mxu0 %v250
    %314 = vmatprep.subr.mxu0 0.0
    %315 = vmatpush1.xpose.msra.mxu0 %v249
    %316 = vmatprep.subr.mxu0 0.0
    %317 = vmatpush1.xpose.msra.mxu0 %v248
    %318 = vmatprep.subr.mxu0 0.0
    %319 = vmatpush1.xpose.msra.mxu0 %v247
    %320 = vmatprep.subr.mxu0 0.0
    %321 = vmatpush1.xpose.msra.mxu0 %v246
    %322 = vmatprep.subr.mxu0 0.0
    %323 = vmatpush1.xpose.msra.mxu0 %v245
    %324 = vmatprep.subr.mxu0 0.0
    %325 = vmatpush1.xpose.msra.mxu0 %v244
    %326 = vmatprep.subr.mxu0 0.0
    %327 = vmatpush1.xpose.msra.mxu0 %v243
    %328 = vmatprep.subr.mxu0 0.0
    %329 = vmatpush1.xpose.msra.mxu0 %v242
    %330 = vmatprep.subr.mxu0 0.0
    %331 = vmatpush1.xpose.msra.mxu0 %v241
    %332 = vmatprep.subr.mxu0 0.0
    %333 = vmatpush1.xpose.msra.mxu0 %v240
    %334 = vmatprep.subr.mxu0 0.0
    %335 = vmatpush1.xpose.msra.mxu0 %v239
    %336 = vmatprep.subr.mxu0 0.0
    %337 = vmatpush2.xpose.msra.mxu0 %v270
    %338 = vmatprep.subr.mxu0 0.0
    %339 = vmatpush2.xpose.msra.mxu0 %v269
    %340 = vmatprep.subr.mxu0 0.0
    %341 = vmatpush2.xpose.msra.mxu0 %v268
    %342 = vmatprep.subr.mxu0 0.0
    %343 = vmatpush2.xpose.msra.mxu0 %v267
    %344 = vmatprep.subr.mxu0 0.0
    %345 = vmatpush2.xpose.msra.mxu0 %v266
    %346 = vmatprep.subr.mxu0 0.0
    %347 = vmatpush2.xpose.msra.mxu0 %v265
    %348 = vmatprep.subr.mxu0 0.0
    %349 = vmatpush2.xpose.msra.mxu0 %v264
    %350 = vmatprep.subr.mxu0 0.0
    %351 = vmatpush2.xpose.msra.mxu0 %v263
    %352 = vmatprep.subr.mxu0 0.0
    %353 = vmatpush2.xpose.msra.mxu0 %v262
    %354 = vmatprep.subr.mxu0 0.0
    %355 = vmatpush2.xpose.msra.mxu0 %v261
    %356 = vmatprep.subr.mxu0 0.0
    %357 = vmatpush2.xpose.msra.mxu0 %v260
    %358 = vmatprep.subr.mxu0 0.0
    %359 = vmatpush2.xpose.msra.mxu0 %v259
    %360 = vmatprep.subr.mxu0 0.0
    %361 = vmatpush2.xpose.msra.mxu0 %v258
    %362 = vmatprep.subr.mxu0 0.0
    %363 = vmatpush2.xpose.msra.mxu0 %v257
    %364 = vmatprep.subr.mxu0 0.0
    %365 = vmatpush2.xpose.msra.mxu0 %v256
    %366 = vmatprep.subr.mxu0 0.0
    %367 = vmatpush2.xpose.msra.mxu0 %v255
    %368 = vmatprep.mubr.f32.mxu0 0.0
    %369 = vmatmul.mubr.f32.gmra.mxu0 %v231
    %v370 = vpop.f32.mrf.mxu0
    %v371 = vadd.f32 %v292, %v370
    %v372 = vpop.f32.mrf.mxu0
    %v373 = vadd.f32 %v296, %v372
    %374 = vmatprep.mubr.f32.mxu0 0.0
    %375 = vmatmul.mubr.f32.gmra.mxu0 %v232
    %v376 = vpop.f32.mrf.mxu0
    %v377 = vadd.f32 %v292, %v376
    %v378 = vpop.f32.mrf.mxu0
    %v379 = vadd.f32 %v296, %v378
    %380 = vmatprep.mubr.f32.mxu0 0.0
    %381 = vmatmul.mubr.f32.gmra.mxu0 %v233
    %v382 = vpop.f32.mrf.mxu0
    %v383 = vadd.f32 %v292, %v382
    %v384 = vpop.f32.mrf.mxu0
    %v385 = vadd.f32 %v296, %v384
    %386 = vmatprep.mubr.f32.mxu0 0.0
    %387 = vmatmul.mubr.f32.gmra.mxu0 %v234
    %v388 = vpop.f32.mrf.mxu0
    %v389 = vadd.f32 %v292, %v388
    %v390 = vpop.f32.mrf.mxu0
    %v391 = vadd.f32 %v296, %v390
    %392 = vdwg.mxu0
    %393 = vmatprep.subr.mxu0 0.0
    %394 = vmatpush1.xpose.msra.mxu0 %v286
    %395 = vmatprep.subr.mxu0 0.0
    %396 = vmatpush1.xpose.msra.mxu0 %v285
    %397 = vmatprep.subr.mxu0 0.0
    %398 = vmatpush1.xpose.msra.mxu0 %v284
    %399 = vmatprep.subr.mxu0 0.0
    %400 = vmatpush1.xpose.msra.mxu0 %v283
    %401 = vmatprep.subr.mxu0 0.0
    %402 = vmatpush1.xpose.msra.mxu0 %v282
    %403 = vmatprep.subr.mxu0 0.0
    %404 = vmatpush1.xpose.msra.mxu0 %v281
    %405 = vmatprep.subr.mxu0 0.0
    %406 = vmatpush1.xpose.msra.mxu0 %v280
    %407 = vmatprep.subr.mxu0 0.0
    %408 = vmatpush1.xpose.msra.mxu0 %v279
    %409 = vmatprep.subr.mxu0 0.0
    %410 = vmatpush1.xpose.msra.mxu0 %v278
    %411 = vmatprep.subr.mxu0 0.0
    %412 = vmatpush1.xpose.msra.mxu0 %v277
    %413 = vmatprep.subr.mxu0 0.0
    %414 = vmatpush1.xpose.msra.mxu0 %v276
    %415 = vmatprep.subr.mxu0 0.0
    %416 = vmatpush1.xpose.msra.mxu0 %v275
    %417 = vmatprep.subr.mxu0 0.0
    %418 = vmatpush1.xpose.msra.mxu0 %v274
    %419 = vmatprep.subr.mxu0 0.0
    %420 = vmatpush1.xpose.msra.mxu0 %v273
    %421 = vmatprep.subr.mxu0 0.0
    %422 = vmatpush1.xpose.msra.mxu0 %v272
    %423 = vmatprep.subr.mxu0 0.0
    %424 = vmatpush1.xpose.msra.mxu0 %v271
    %425 = vmatprep.subr.mxu0 0.0
    %426 = vmatpush2.xpose.msra.mxu0 0.0
    %427 = vmatprep.subr.mxu0 0.0
    %428 = vmatpush2.xpose.msra.mxu0 0.0
    %429 = vmatprep.subr.mxu0 0.0
    %430 = vmatpush2.xpose.msra.mxu0 0.0
    %431 = vmatprep.subr.mxu0 0.0
    %432 = vmatpush2.xpose.msra.mxu0 0.0
    %433 = vmatprep.subr.mxu0 0.0
    %434 = vmatpush2.xpose.msra.mxu0 0.0
    %435 = vmatprep.subr.mxu0 0.0
    %436 = vmatpush2.xpose.msra.mxu0 0.0
    %437 = vmatprep.subr.mxu0 0.0
    %438 = vmatpush2.xpose.msra.mxu0 0.0
    %439 = vmatprep.subr.mxu0 0.0
    %440 = vmatpush2.xpose.msra.mxu0 0.0
    %441 = vmatprep.subr.mxu0 0.0
    %442 = vmatpush2.xpose.msra.mxu0 0.0
    %443 = vmatprep.subr.mxu0 0.0
    %444 = vmatpush2.xpose.msra.mxu0 0.0
    %445 = vmatprep.subr.mxu0 0.0
    %446 = vmatpush2.xpose.msra.mxu0 0.0
    %447 = vmatprep.subr.mxu0 0.0
    %448 = vmatpush2.xpose.msra.mxu0 0.0
    %449 = vmatprep.subr.mxu0 0.0
    %450 = vmatpush2.xpose.msra.mxu0 0.0
    %451 = vmatprep.subr.mxu0 0.0
    %452 = vmatpush2.xpose.msra.mxu0 0.0
    %453 = vmatprep.subr.mxu0 0.0
    %454 = vmatpush2.xpose.msra.mxu0 0.0
    %455 = vmatprep.subr.mxu0 0.0
    %456 = vmatpush2.xpose.msra.mxu0 0.0
    %457 = vmatprep.mubr.f32.mxu0 0.0
    %458 = vmatmul.mubr.f32.gmra.mxu0 %v231
    %v459 = vpop.f32.mrf.mxu0
    %v460 = vadd.f32 %v300, %v459
    %v461 = vpop.f32.mrf.mxu0
    %462 = vmatprep.mubr.f32.mxu0 0.0
    %463 = vmatmul.mubr.f32.gmra.mxu0 %v232
    %v464 = vpop.f32.mrf.mxu0
    %v465 = vadd.f32 %v300, %v464
    %v466 = vpop.f32.mrf.mxu0
    %467 = vmatprep.mubr.f32.mxu0 0.0
    %468 = vmatmul.mubr.f32.gmra.mxu0 %v233
    %v469 = vpop.f32.mrf.mxu0
    %v470 = vadd.f32 %v300, %v469
    %v471 = vpop.f32.mrf.mxu0
    %472 = vmatprep.mubr.f32.mxu0 0.0
    %473 = vmatmul.mubr.f32.gmra.mxu0 %v234
    %v474 = vpop.f32.mrf.mxu0
    %v475 = vadd.f32 %v300, %v474
    %v476 = vpop.f32.mrf.mxu0
    %477 = vdwg.mxu0
    %478 = vmatprep.subr.mxu0 0.0
    %479 = vmatpush1.xpose.msra.mxu0 0.0
    %480 = vmatprep.subr.mxu0 0.0
    %481 = vmatpush1.xpose.msra.mxu0 0.0
    %482 = vmatprep.subr.mxu0 0.0
    %483 = vmatpush1.xpose.msra.mxu0 0.0
    %484 = vmatprep.subr.mxu0 0.0
    %485 = vmatpush1.xpose.msra.mxu0 0.0
    %486 = vmatprep.subr.mxu0 0.0
    %487 = vmatpush1.xpose.msra.mxu0 0.0
    %488 = vmatprep.subr.mxu0 0.0
    %489 = vmatpush1.xpose.msra.mxu0 0.0
    %490 = vmatprep.subr.mxu0 0.0
    %491 = vmatpush1.xpose.msra.mxu0 0.0
    %492 = vmatprep.subr.mxu0 0.0
    %493 = vmatpush1.xpose.msra.mxu0 0.0
    %494 = vmatprep.subr.mxu0 0.0
    %495 = vmatpush1.xpose.msra.mxu0 0.0
    %496 = vmatprep.subr.mxu0 0.0
    %497 = vmatpush1.xpose.msra.mxu0 0.0
    %498 = vmatprep.subr.mxu0 0.0
    %499 = vmatpush1.xpose.msra.mxu0 0.0
    %500 = vmatprep.subr.mxu0 0.0
    %501 = vmatpush1.xpose.msra.mxu0 0.0
    %502 = vmatprep.subr.mxu0 0.0
    %503 = vmatpush1.xpose.msra.mxu0 %v391
    %504 = vmatprep.subr.mxu0 0.0
    %505 = vmatpush1.xpose.msra.mxu0 %v385
    %506 = vmatprep.subr.mxu0 0.0
    %507 = vmatpush1.xpose.msra.mxu0 %v379
    %508 = vmatprep.subr.mxu0 0.0
    %509 = vmatpush1.xpose.msra.mxu0 %v373
    %510 = vmatprep.subr.mxu0 0.0
    %511 = vmatpush2.xpose.msra.mxu0 0.0
    %512 = vmatprep.subr.mxu0 0.0
    %513 = vmatpush2.xpose.msra.mxu0 0.0
    %514 = vmatprep.subr.mxu0 0.0
    %515 = vmatpush2.xpose.msra.mxu0 0.0
    %516 = vmatprep.subr.mxu0 0.0
    %517 = vmatpush2.xpose.msra.mxu0 0.0
    %518 = vmatprep.subr.mxu0 0.0
    %519 = vmatpush2.xpose.msra.mxu0 0.0
    %520 = vmatprep.subr.mxu0 0.0
    %521 = vmatpush2.xpose.msra.mxu0 0.0
    %522 = vmatprep.subr.mxu0 0.0
    %523 = vmatpush2.xpose.msra.mxu0 0.0
    %524 = vmatprep.subr.mxu0 0.0
    %525 = vmatpush2.xpose.msra.mxu0 0.0
    %526 = vmatprep.subr.mxu0 0.0
    %527 = vmatpush2.xpose.msra.mxu0 0.0
    %528 = vmatprep.subr.mxu0 0.0
    %529 = vmatpush2.xpose.msra.mxu0 0.0
    %530 = vmatprep.subr.mxu0 0.0
    %531 = vmatpush2.xpose.msra.mxu0 0.0
    %532 = vmatprep.subr.mxu0 0.0
    %533 = vmatpush2.xpose.msra.mxu0 0.0
    %534 = vmatprep.subr.mxu0 0.0
    %535 = vmatpush2.xpose.msra.mxu0 0.0
    %536 = vmatprep.subr.mxu0 0.0
    %537 = vmatpush2.xpose.msra.mxu0 0.0
    %538 = vmatprep.subr.mxu0 0.0
    %539 = vmatpush2.xpose.msra.mxu0 0.0
    %540 = vmatprep.subr.mxu0 0.0
    %541 = vmatpush2.xpose.msra.mxu0 0.0
    %542 = vmatprep.mubr.f32.mxu0 0.0
    %543 = vmatmul.mubr.f32.gmra.mxu0 %v371
    %v544 = vpop.f32.mrf.mxu0
    %v545 = vadd.f32 %v235, %v544
    %v546 = vpop.f32.mrf.mxu0
    %547 = vmatprep.mubr.f32.mxu0 0.0
    %548 = vmatmul.mubr.f32.gmra.mxu0 %v377
    %v549 = vpop.f32.mrf.mxu0
    %v550 = vadd.f32 %v236, %v549
    %v551 = vpop.f32.mrf.mxu0
    %552 = vmatprep.mubr.f32.mxu0 0.0
    %553 = vmatmul.mubr.f32.gmra.mxu0 %v383
    %v554 = vpop.f32.mrf.mxu0
    %v555 = vadd.f32 %v237, %v554
    %v556 = vpop.f32.mrf.mxu0
    %557 = vmatprep.mubr.f32.mxu0 0.0
    %558 = vmatmul.mubr.f32.gmra.mxu0 %v389
    %v559 = vpop.f32.mrf.mxu0
    %v560 = vadd.f32 %v238, %v559
    %v561 = vpop.f32.mrf.mxu0
    %562 = vdwg.mxu0
    %vm563 = vcmask 261120
    %v564 = vsel %vm563, %v545, -inf
    %565 = vmax.xlane.f32.xlu0 %v564
    %v566 = vpop.xlane.xlu0 %565
    %v567 = vsel %vm563, %v550, -inf
    %568 = vmax.xlane.f32.xlu0 %v567
    %v569 = vpop.xlane.xlu0 %568
    %v570 = vsel %vm563, %v555, -inf
    %571 = vmax.xlane.f32.xlu0 %v570
    %v572 = vpop.xlane.xlu0 %571
    %v573 = vsel %vm563, %v560, -inf
    %574 = vmax.xlane.f32.xlu0 %v573
    %v575 = vpop.xlane.xlu0 %574
    %v576 = vsub.f32 %v545, %v566
    %v577 = vsub.f32 %v550, %v569
    %v578 = vsub.f32 %v555, %v572
    %v579 = vsub.f32 %v560, %v575
    %v580 = vmul.f32 %v576, 1.442695
    %v581 = vpow.pop %v580
    %v582 = vmul.f32 %v577, 1.442695
    %v583 = vpow.pop %v582
    %v584 = vmul.f32 %v578, 1.442695
    %v585 = vpow.pop %v584
    %v586 = vmul.f32 %v579, 1.442695
    %v587 = vpow.pop %v586
    %v588 = vsel %vm563, %v581, 0.0
    %589 = vadd.xlane.f32.xlu0 %v588
    %v590 = vpop.xlane.xlu0 %589
    %v591 = vsel %vm563, %v583, 0.0
    %592 = vadd.xlane.f32.xlu0 %v591
    %v593 = vpop.xlane.xlu0 %592
    %v594 = vsel %vm563, %v585, 0.0
    %595 = vadd.xlane.f32.xlu0 %v594
    %v596 = vpop.xlane.xlu0 %595
    %v597 = vsel %vm563, %v587, 0.0
    %598 = vadd.xlane.f32.xlu0 %v597
    %v599 = vpop.xlane.xlu0 %598
    %v600 = vrcp.pop %v590
    %v601 = vrcp.pop %v593
    %v602 = vrcp.pop %v596
    %v603 = vrcp.pop %v599
    %v604 = vmul.f32 %v581, %v600
    %v605 = vmul.f32 %v583, %v601
    %v606 = vmul.f32 %v585, %v602
    %v607 = vmul.f32 %v587, %v603
    %v609 = vsel %vm563, %v604, 0
    %v612 = vsel %vm563, %v605, 0
    %v615 = vsel %vm563, %v606, 0
    %v618 = vsel %vm563, %v607, 0
    %620 = vmatprep.subr.mxu0 0.0
    %621 = vmatpush1.msra.mxu0 0.0
    %622 = vmatprep.subr.mxu0 0.0
    %623 = vmatpush1.msra.mxu0 0.0
    %624 = vmatprep.subr.mxu0 0.0
    %625 = vmatpush1.msra.mxu0 0.0
    %626 = vmatprep.subr.mxu0 0.0
    %627 = vmatpush1.msra.mxu0 0.0
    %628 = vmatprep.subr.mxu0 0.0
    %629 = vmatpush1.msra.mxu0 0.0
    %630 = vmatprep.subr.mxu0 0.0
    %631 = vmatpush1.msra.mxu0 0.0
    %632 = vmatprep.subr.mxu0 0.0
    %633 = vmatpush1.msra.mxu0 0.0
    %634 = vmatprep.subr.mxu0 0.0
    %635 = vmatpush1.msra.mxu0 0.0
    %636 = vmatprep.subr.mxu0 0.0
    %637 = vmatpush1.msra.mxu0 0.0
    %638 = vmatprep.subr.mxu0 0.0
    %639 = vmatpush1.msra.mxu0 0.0
    %640 = vmatprep.subr.mxu0 0.0
    %641 = vmatpush1.msra.mxu0 0.0
    %642 = vmatprep.subr.mxu0 0.0
    %643 = vmatpush1.msra.mxu0 0.0
    %644 = vmatprep.subr.mxu0 0.0
    %645 = vmatpush1.msra.mxu0 %v475
    %646 = vmatprep.subr.mxu0 0.0
    %647 = vmatpush1.msra.mxu0 %v470
    %648 = vmatprep.subr.mxu0 0.0
    %649 = vmatpush1.msra.mxu0 %v465
    %650 = vmatprep.subr.mxu0 0.0
    %651 = vmatpush1.msra.mxu0 %v460
    %652 = vmatprep.subr.mxu0 0.0
    %653 = vmatpush2.msra.mxu0 0.0
    %654 = vmatprep.subr.mxu0 0.0
    %655 = vmatpush2.msra.mxu0 0.0
    %656 = vmatprep.subr.mxu0 0.0
    %657 = vmatpush2.msra.mxu0 0.0
    %658 = vmatprep.subr.mxu0 0.0
    %659 = vmatpush2.msra.mxu0 0.0
    %660 = vmatprep.subr.mxu0 0.0
    %661 = vmatpush2.msra.mxu0 0.0
    %662 = vmatprep.subr.mxu0 0.0
    %663 = vmatpush2.msra.mxu0 0.0
    %664 = vmatprep.subr.mxu0 0.0
    %665 = vmatpush2.msra.mxu0 0.0
    %666 = vmatprep.subr.mxu0 0.0
    %667 = vmatpush2.msra.mxu0 0.0
    %668 = vmatprep.subr.mxu0 0.0
    %669 = vmatpush2.msra.mxu0 0.0
    %670 = vmatprep.subr.mxu0 0.0
    %671 = vmatpush2.msra.mxu0 0.0
    %672 = vmatprep.subr.mxu0 0.0
    %673 = vmatpush2.msra.mxu0 0.0
    %674 = vmatprep.subr.mxu0 0.0
    %675 = vmatpush2.msra.mxu0 0.0
    %676 = vmatprep.subr.mxu0 0.0
    %677 = vmatpush2.msra.mxu0 0.0
    %678 = vmatprep.subr.mxu0 0.0
    %679 = vmatpush2.msra.mxu0 0.0
    %680 = vmatprep.subr.mxu0 0.0
    %681 = vmatpush2.msra.mxu0 0.0
    %682 = vmatprep.subr.mxu0 0.0
    %683 = vmatpush2.msra.mxu0 0.0
    %684 = vmatprep.mubr.f32.mxu0 0.0
    %685 = vmatmul.mubr.f32.gmra.mxu0 %v609
    %v686 = vpop.f32.mrf.mxu0
    %v687 = vadd.f32 0.0, %v686
    %v688 = vpop.f32.mrf.mxu0
    %689 = vmatprep.mubr.f32.mxu0 0.0
    %690 = vmatmul.mubr.f32.gmra.mxu0 %v612
    %v691 = vpop.f32.mrf.mxu0
    %v692 = vadd.f32 0.0, %v691
    %v693 = vpop.f32.mrf.mxu0
    %694 = vmatprep.mubr.f32.mxu0 0.0
    %695 = vmatmul.mubr.f32.gmra.mxu0 %v615
    %v696 = vpop.f32.mrf.mxu0
    %v697 = vadd.f32 0.0, %v696
    %v698 = vpop.f32.mrf.mxu0
    %699 = vmatprep.mubr.f32.mxu0 0.0
    %700 = vmatmul.mubr.f32.gmra.mxu0 %v618
    %v701 = vpop.f32.mrf.mxu0
    %v702 = vadd.f32 0.0, %v701
    %v703 = vpop.f32.mrf.mxu0
    %704 = vdwg.mxu0
    %v705 = vld [vmem:[#allocation10] sm:$0xff]
    %v706 = vld [vmem:[#allocation10 + $0x8] sm:$0xff]
    %v707 = vld [vmem:[#allocation10 + $0x10] sm:$0xff]
    %v708 = vld [vmem:[#allocation10 + $0x18] sm:$0xff]
    %v709 = vld [vmem:[#allocation10 + $0x20] sm:$0xff]
    %v710 = vld [vmem:[#allocation10 + $0x28] sm:$0xff]
    %v711 = vld [vmem:[#allocation10 + $0x30] sm:$0xff]
    %v712 = vld [vmem:[#allocation10 + $0x38] sm:$0xff]
    %v713 = vld [vmem:[#allocation10 + $0x40] sm:$0xff]
    %v714 = vld [vmem:[#allocation10 + $0x48] sm:$0xff]
    %v715 = vld [vmem:[#allocation10 + $0x50] sm:$0xff]
    %v716 = vld [vmem:[#allocation10 + $0x58] sm:$0xff]
    %v717 = vld [vmem:[#allocation10 + $0x60] sm:$0xff]
    %v718 = vld [vmem:[#allocation10 + $0x68] sm:$0xff]
    %v719 = vld [vmem:[#allocation10 + $0x70] sm:$0xff]
    %v720 = vld [vmem:[#allocation10 + $0x78] sm:$0xff]
    %v721 = vld [vmem:[#allocation11] sm:$0x1]
    %v723 = vlaneseq
    %v724 = vshrl.u32 %v723, 7
    %v725 = vsub.s32 0, %v724
    %v726 = vrot.slane %v721, %v725
    %728 = vmatprep.subr.mxu0 0.0
    %729 = vmatpush1.xpose.msra.mxu0 %v720
    %730 = vmatprep.subr.mxu0 0.0
    %731 = vmatpush1.xpose.msra.mxu0 %v719
    %732 = vmatprep.subr.mxu0 0.0
    %733 = vmatpush1.xpose.msra.mxu0 %v718
    %734 = vmatprep.subr.mxu0 0.0
    %735 = vmatpush1.xpose.msra.mxu0 %v717
    %736 = vmatprep.subr.mxu0 0.0
    %737 = vmatpush1.xpose.msra.mxu0 %v716
    %738 = vmatprep.subr.mxu0 0.0
    %739 = vmatpush1.xpose.msra.mxu0 %v715
    %740 = vmatprep.subr.mxu0 0.0
    %741 = vmatpush1.xpose.msra.mxu0 %v714
    %742 = vmatprep.subr.mxu0 0.0
    %743 = vmatpush1.xpose.msra.mxu0 %v713
    %744 = vmatprep.subr.mxu0 0.0
    %745 = vmatpush1.xpose.msra.mxu0 %v712
    %746 = vmatprep.subr.mxu0 0.0
    %747 = vmatpush1.xpose.msra.mxu0 %v711
    %748 = vmatprep.subr.mxu0 0.0
    %749 = vmatpush1.xpose.msra.mxu0 %v710
    %750 = vmatprep.subr.mxu0 0.0
    %751 = vmatpush1.xpose.msra.mxu0 %v709
    %752 = vmatprep.subr.mxu0 0.0
    %753 = vmatpush1.xpose.msra.mxu0 %v708
    %754 = vmatprep.subr.mxu0 0.0
    %755 = vmatpush1.xpose.msra.mxu0 %v707
    %756 = vmatprep.subr.mxu0 0.0
    %757 = vmatpush1.xpose.msra.mxu0 %v706
    %758 = vmatprep.subr.mxu0 0.0
    %759 = vmatpush1.xpose.msra.mxu0 %v705
    %760 = vmatprep.subr.mxu0 0.0
    %761 = vmatpush2.xpose.msra.mxu0 0.0
    %762 = vmatprep.subr.mxu0 0.0
    %763 = vmatpush2.xpose.msra.mxu0 0.0
    %764 = vmatprep.subr.mxu0 0.0
    %765 = vmatpush2.xpose.msra.mxu0 0.0
    %766 = vmatprep.subr.mxu0 0.0
    %767 = vmatpush2.xpose.msra.mxu0 0.0
    %768 = vmatprep.subr.mxu0 0.0
    %769 = vmatpush2.xpose.msra.mxu0 0.0
    %770 = vmatprep.subr.mxu0 0.0
    %771 = vmatpush2.xpose.msra.mxu0 0.0
    %772 = vmatprep.subr.mxu0 0.0
    %773 = vmatpush2.xpose.msra.mxu0 0.0
    %774 = vmatprep.subr.mxu0 0.0
    %775 = vmatpush2.xpose.msra.mxu0 0.0
    %776 = vmatprep.subr.mxu0 0.0
    %777 = vmatpush2.xpose.msra.mxu0 0.0
    %778 = vmatprep.subr.mxu0 0.0
    %779 = vmatpush2.xpose.msra.mxu0 0.0
    %780 = vmatprep.subr.mxu0 0.0
    %781 = vmatpush2.xpose.msra.mxu0 0.0
    %782 = vmatprep.subr.mxu0 0.0
    %783 = vmatpush2.xpose.msra.mxu0 0.0
    %784 = vmatprep.subr.mxu0 0.0
    %785 = vmatpush2.xpose.msra.mxu0 0.0
    %786 = vmatprep.subr.mxu0 0.0
    %787 = vmatpush2.xpose.msra.mxu0 0.0
    %788 = vmatprep.subr.mxu0 0.0
    %789 = vmatpush2.xpose.msra.mxu0 0.0
    %790 = vmatprep.subr.mxu0 0.0
    %791 = vmatpush2.xpose.msra.mxu0 0.0
    %792 = vmatprep.mubr.f32.mxu0 0.0
    %793 = vmatmul.mubr.f32.gmra.mxu0 %v687
    %v794 = vpop.f32.mrf.mxu0
    %v795 = vadd.f32 %v726, %v794
    %v796 = vpop.f32.mrf.mxu0
    %797 = vmatprep.mubr.f32.mxu0 0.0
    %798 = vmatmul.mubr.f32.gmra.mxu0 %v692
    %v799 = vpop.f32.mrf.mxu0
    %v800 = vadd.f32 %v726, %v799
    %v801 = vpop.f32.mrf.mxu0
    %802 = vmatprep.mubr.f32.mxu0 0.0
    %803 = vmatmul.mubr.f32.gmra.mxu0 %v697
    %v804 = vpop.f32.mrf.mxu0
    %v805 = vadd.f32 %v726, %v804
    %v806 = vpop.f32.mrf.mxu0
    %807 = vmatprep.mubr.f32.mxu0 0.0
    %808 = vmatmul.mubr.f32.gmra.mxu0 %v702
    %v809 = vpop.f32.mrf.mxu0
    %v810 = vadd.f32 %v726, %v809
    %v811 = vpop.f32.mrf.mxu0
    %812 = vdwg.mxu0
    %v813 = vadd.f32 %v231, %v795
    %v814 = vadd.f32 %v232, %v800
    %v815 = vadd.f32 %v233, %v805
    %v816 = vadd.f32 %v234, %v810
    %v817 = vld [vmem:[%s7] sm:$0x1]
    %v818 = vld [vmem:[%s8] sm:$0x1]
    %819 = vadd.xlane.f32.xlu0 %v813
    %v820 = vpop.xlane.xlu0 %819
    %821 = vadd.xlane.f32.xlu0 %v814
    %v822 = vpop.xlane.xlu0 %821
    %823 = vadd.xlane.f32.xlu0 %v815
    %v824 = vpop.xlane.xlu0 %823
    %825 = vadd.xlane.f32.xlu0 %v816
    %v826 = vpop.xlane.xlu0 %825
    %v827 = vrcp.pop 128.0
    %v828 = vmul.f32 %v820, %v827
    %v829 = vmul.f32 %v822, %v827
    %v830 = vmul.f32 %v824, %v827
    %v831 = vmul.f32 %v826, %v827
    %v832 = vsub.f32 %v813, %v828
    %v833 = vsub.f32 %v814, %v829
    %v834 = vsub.f32 %v815, %v830
    %v835 = vsub.f32 %v816, %v831
    %v836 = vmul.f32 %v832, %v832
    %v837 = vmul.f32 %v833, %v833
    %v838 = vmul.f32 %v834, %v834
    %v839 = vmul.f32 %v835, %v835
    %840 = vadd.xlane.f32.xlu0 %v836
    %v841 = vpop.xlane.xlu0 %840
    %842 = vadd.xlane.f32.xlu0 %v837
    %v843 = vpop.xlane.xlu0 %842
    %844 = vadd.xlane.f32.xlu0 %v838
    %v845 = vpop.xlane.xlu0 %844
    %846 = vadd.xlane.f32.xlu0 %v839
    %v847 = vpop.xlane.xlu0 %846
    %v848 = vmul.f32 %v841, %v827
    %v849 = vmul.f32 %v843, %v827
    %v850 = vmul.f32 %v845, %v827
    %v851 = vmul.f32 %v847, %v827
    %v852 = vadd.f32 %v848, 1e-05
    %v853 = vadd.f32 %v849, 1e-05
    %v854 = vadd.f32 %v850, 1e-05
    %v855 = vadd.f32 %v851, 1e-05
    %v856 = vrsqrt.pop %v852
    %v857 = vrsqrt.pop %v853
    %v858 = vrsqrt.pop %v854
    %v859 = vrsqrt.pop %v855
    %v860 = vmul.f32 %v832, %v856
    %v861 = vmul.f32 %v833, %v857
    %v862 = vmul.f32 %v834, %v858
    %v863 = vmul.f32 %v835, %v859
    %v865 = vlaneseq
    %v866 = vshrl.u32 %v865, 7
    %v867 = vsub.s32 0, %v866
    %v868 = vrot.slane %v817, %v867
    %v870 = vmul.f32 %v860, %v868
    %v871 = vmul.f32 %v861, %v868
    %v872 = vmul.f32 %v862, %v868
    %v873 = vmul.f32 %v863, %v868
    %v875 = vlaneseq
    %v876 = vshrl.u32 %v875, 7
    %v877 = vsub.s32 0, %v876
    %v878 = vrot.slane %v818, %v877
    %v880 = vadd.f32 %v870, %v878
    %v881 = vadd.f32 %v871, %v878
    %v882 = vadd.f32 %v872, %v878
    %v883 = vadd.f32 %v873, %v878
    %v884 = vld [vmem:[#allocation13] sm:$0xff]
    %v885 = vld [vmem:[#allocation13 + $0x8] sm:$0xff]
    %v886 = vld [vmem:[#allocation13 + $0x10] sm:$0xff]
    %v887 = vld [vmem:[#allocation13 + $0x18] sm:$0xff]
    %v888 = vld [vmem:[#allocation13 + $0x20] sm:$0xff]
    %v889 = vld [vmem:[#allocation13 + $0x28] sm:$0xff]
    %v890 = vld [vmem:[#allocation13 + $0x30] sm:$0xff]
    %v891 = vld [vmem:[#allocation13 + $0x38] sm:$0xff]
    %v892 = vld [vmem:[#allocation13 + $0x40] sm:$0xff]
    %v893 = vld [vmem:[#allocation13 + $0x48] sm:$0xff]
    %v894 = vld [vmem:[#allocation13 + $0x50] sm:$0xff]
    %v895 = vld [vmem:[#allocation13 + $0x58] sm:$0xff]
    %v896 = vld [vmem:[#allocation13 + $0x60] sm:$0xff]
    %v897 = vld [vmem:[#allocation13 + $0x68] sm:$0xff]
    %v898 = vld [vmem:[#allocation13 + $0x70] sm:$0xff]
    %v899 = vld [vmem:[#allocation13 + $0x78] sm:$0xff]
    %v900 = vld [vmem:[#allocation13 + $0x80] sm:$0xff]
    %v901 = vld [vmem:[#allocation13 + $0x88] sm:$0xff]
    %v902 = vld [vmem:[#allocation13 + $0x90] sm:$0xff]
    %v903 = vld [vmem:[#allocation13 + $0x98] sm:$0xff]
    %v904 = vld [vmem:[#allocation13 + $0xa0] sm:$0xff]
    %v905 = vld [vmem:[#allocation13 + $0xa8] sm:$0xff]
    %v906 = vld [vmem:[#allocation13 + $0xb0] sm:$0xff]
    %v907 = vld [vmem:[#allocation13 + $0xb8] sm:$0xff]
    %v908 = vld [vmem:[#allocation13 + $0xc0] sm:$0xff]
    %v909 = vld [vmem:[#allocation13 + $0xc8] sm:$0xff]
    %v910 = vld [vmem:[#allocation13 + $0xd0] sm:$0xff]
    %v911 = vld [vmem:[#allocation13 + $0xd8] sm:$0xff]
    %v912 = vld [vmem:[#allocation13 + $0xe0] sm:$0xff]
    %v913 = vld [vmem:[#allocation13 + $0xe8] sm:$0xff]
    %v914 = vld [vmem:[#allocation13 + $0xf0] sm:$0xff]
    %v915 = vld [vmem:[#allocation13 + $0xf8] sm:$0xff]
    %v916 = vld [vmem:[%s12] sm:$0x3]
    %v918 = vlaneseq
    %v919 = vshrl.u32 %v918, 7
    %v920 = vsub.s32 0, %v919
    %v921 = vrot.slane %v916, %v920
    %v922 = vlaneseq
    %v923 = vshrl.u32 %v922, 7
    %v924 = vsub.s32 1, %v923
    %v925 = vrot.slane %v916, %v924
    %928 = vmatprep.subr.mxu0 0.0
    %929 = vmatpush1.xpose.msra.mxu0 %v899
    %930 = vmatprep.subr.mxu0 0.0
    %931 = vmatpush1.xpose.msra.mxu0 %v898
    %932 = vmatprep.subr.mxu0 0.0
    %933 = vmatpush1.xpose.msra.mxu0 %v897
    %934 = vmatprep.subr.mxu0 0.0
    %935 = vmatpush1.xpose.msra.mxu0 %v896
    %936 = vmatprep.subr.mxu0 0.0
    %937 = vmatpush1.xpose.msra.mxu0 %v895
    %938 = vmatprep.subr.mxu0 0.0
    %939 = vmatpush1.xpose.msra.mxu0 %v894
    %940 = vmatprep.subr.mxu0 0.0
    %941 = vmatpush1.xpose.msra.mxu0 %v893
    %942 = vmatprep.subr.mxu0 0.0
    %943 = vmatpush1.xpose.msra.mxu0 %v892
    %944 = vmatprep.subr.mxu0 0.0
    %945 = vmatpush1.xpose.msra.mxu0 %v891
    %946 = vmatprep.subr.mxu0 0.0
    %947 = vmatpush1.xpose.msra.mxu0 %v890
    %948 = vmatprep.subr.mxu0 0.0
    %949 = vmatpush1.xpose.msra.mxu0 %v889
    %950 = vmatprep.subr.mxu0 0.0
    %951 = vmatpush1.xpose.msra.mxu0 %v888
    %952 = vmatprep.subr.mxu0 0.0
    %953 = vmatpush1.xpose.msra.mxu0 %v887
    %954 = vmatprep.subr.mxu0 0.0
    %955 = vmatpush1.xpose.msra.mxu0 %v886
    %956 = vmatprep.subr.mxu0 0.0
    %957 = vmatpush1.xpose.msra.mxu0 %v885
    %958 = vmatprep.subr.mxu0 0.0
    %959 = vmatpush1.xpose.msra.mxu0 %v884
    %960 = vmatprep.subr.mxu0 0.0
    %961 = vmatpush2.xpose.msra.mxu0 %v915
    %962 = vmatprep.subr.mxu0 0.0
    %963 = vmatpush2.xpose.msra.mxu0 %v914
    %964 = vmatprep.subr.mxu0 0.0
    %965 = vmatpush2.xpose.msra.mxu0 %v913
    %966 = vmatprep.subr.mxu0 0.0
    %967 = vmatpush2.xpose.msra.mxu0 %v912
    %968 = vmatprep.subr.mxu0 0.0
    %969 = vmatpush2.xpose.msra.mxu0 %v911
    %970 = vmatprep.subr.mxu0 0.0
    %971 = vmatpush2.xpose.msra.mxu0 %v910
    %972 = vmatprep.subr.mxu0 0.0
    %973 = vmatpush2.xpose.msra.mxu0 %v909
    %974 = vmatprep.subr.mxu0 0.0
    %975 = vmatpush2.xpose.msra.mxu0 %v908
    %976 = vmatprep.subr.mxu0 0.0
    %977 = vmatpush2.xpose.msra.mxu0 %v907
    %978 = vmatprep.subr.mxu0 0.0
    %979 = vmatpush2.xpose.msra.mxu0 %v906
    %980 = vmatprep.subr.mxu0 0.0
    %981 = vmatpush2.xpose.msra.mxu0 %v905
    %982 = vmatprep.subr.mxu0 0.0
    %983 = vmatpush2.xpose.msra.mxu0 %v904
    %984 = vmatprep.subr.mxu0 0.0
    %985 = vmatpush2.xpose.msra.mxu0 %v903
    %986 = vmatprep.subr.mxu0 0.0
    %987 = vmatpush2.xpose.msra.mxu0 %v902
    %988 = vmatprep.subr.mxu0 0.0
    %989 = vmatpush2.xpose.msra.mxu0 %v901
    %990 = vmatprep.subr.mxu0 0.0
    %991 = vmatpush2.xpose.msra.mxu0 %v900
    %992 = vmatprep.mubr.f32.mxu0 0.0
    %993 = vmatmul.mubr.f32.gmra.mxu0 %v880
    %v994 = vpop.f32.mrf.mxu0
    %v995 = vadd.f32 %v921, %v994
    %v996 = vpop.f32.mrf.mxu0
    %v997 = vadd.f32 %v925, %v996
    %998 = vmatprep.mubr.f32.mxu0 0.0
    %999 = vmatmul.mubr.f32.gmra.mxu0 %v881
    %v1000 = vpop.f32.mrf.mxu0
    %v1001 = vadd.f32 %v921, %v1000
    %v1002 = vpop.f32.mrf.mxu0
    %v1003 = vadd.f32 %v925, %v1002
    %1004 = vmatprep.mubr.f32.mxu0 0.0
    %1005 = vmatmul.mubr.f32.gmra.mxu0 %v882
    %v1006 = vpop.f32.mrf.mxu0
    %v1007 = vadd.f32 %v921, %v1006
    %v1008 = vpop.f32.mrf.mxu0
    %v1009 = vadd.f32 %v925, %v1008
    %1010 = vmatprep.mubr.f32.mxu0 0.0
    %1011 = vmatmul.mubr.f32.gmra.mxu0 %v883
    %v1012 = vpop.f32.mrf.mxu0
    %v1013 = vadd.f32 %v921, %v1012
    %v1014 = vpop.f32.mrf.mxu0
    %v1015 = vadd.f32 %v925, %v1014
    %1016 = vdwg.mxu0
    %v1017 = vmax.f32 %v995, 0.0
    %v1018 = vmax.f32 %v997, 0.0
    %v1019 = vmax.f32 %v1001, 0.0
    %v1020 = vmax.f32 %v1003, 0.0
    %v1021 = vmax.f32 %v1007, 0.0
    %v1022 = vmax.f32 %v1009, 0.0
    %v1023 = vmax.f32 %v1013, 0.0
    %v1024 = vmax.f32 %v1015, 0.0
    %v1025 = vld [vmem:[#allocation14] sm:$0xff]
    %v1026 = vld [vmem:[#allocation14 + $0x8] sm:$0xff]
    %v1027 = vld [vmem:[#allocation14 + $0x10] sm:$0xff]
    %v1028 = vld [vmem:[#allocation14 + $0x18] sm:$0xff]
    %v1029 = vld [vmem:[#allocation14 + $0x20] sm:$0xff]
    %v1030 = vld [vmem:[#allocation14 + $0x28] sm:$0xff]
    %v1031 = vld [vmem:[#allocation14 + $0x30] sm:$0xff]
    %v1032 = vld [vmem:[#allocation14 + $0x38] sm:$0xff]
    %v1033 = vld [vmem:[#allocation14 + $0x40] sm:$0xff]
    %v1034 = vld [vmem:[#allocation14 + $0x48] sm:$0xff]
    %v1035 = vld [vmem:[#allocation14 + $0x50] sm:$0xff]
    %v1036 = vld [vmem:[#allocation14 + $0x58] sm:$0xff]
    %v1037 = vld [vmem:[#allocation14 + $0x60] sm:$0xff]
    %v1038 = vld [vmem:[#allocation14 + $0x68] sm:$0xff]
    %v1039 = vld [vmem:[#allocation14 + $0x70] sm:$0xff]
    %v1040 = vld [vmem:[#allocation14 + $0x78] sm:$0xff]
    %v1041 = vld [vmem:[#allocation14 + $0x80] sm:$0xff]
    %v1042 = vld [vmem:[#allocation14 + $0x88] sm:$0xff]
    %v1043 = vld [vmem:[#allocation14 + $0x90] sm:$0xff]
    %v1044 = vld [vmem:[#allocation14 + $0x98] sm:$0xff]
    %v1045 = vld [vmem:[#allocation14 + $0xa0] sm:$0xff]
    %v1046 = vld [vmem:[#allocation14 + $0xa8] sm:$0xff]
    %v1047 = vld [vmem:[#allocation14 + $0xb0] sm:$0xff]
    %v1048 = vld [vmem:[#allocation14 + $0xb8] sm:$0xff]
    %v1049 = vld [vmem:[#allocation14 + $0xc0] sm:$0xff]
    %v1050 = vld [vmem:[#allocation14 + $0xc8] sm:$0xff]
    %v1051 = vld [vmem:[#allocation14 + $0xd0] sm:$0xff]
    %v1052 = vld [vmem:[#allocation14 + $0xd8] sm:$0xff]
    %v1053 = vld [vmem:[#allocation14 + $0xe0] sm:$0xff]
    %v1054 = vld [vmem:[#allocation14 + $0xe8] sm:$0xff]
    %v1055 = vld [vmem:[#allocation14 + $0xf0] sm:$0xff]
    %v1056 = vld [vmem:[#allocation14 + $0xf8] sm:$0xff]
    %v1057 = vld [vmem:[%s14] sm:$0x1]
    %v1059 = vlaneseq
    %v1060 = vshrl.u32 %v1059, 7
    %v1061 = vsub.s32 0, %v1060
    %v1062 = vrot.slane %v1057, %v1061
    %1064 = vmatprep.subr.mxu0 %v1056
    %1065 = vmatpush1.xpose.msra.mxu0 %v1055
    %1066 = vmatprep.subr.mxu0 %v1054
    %1067 = vmatpush1.xpose.msra.mxu0 %v1053
    %1068 = vmatprep.subr.mxu0 %v1052
    %1069 = vmatpush1.xpose.msra.mxu0 %v1051
    %1070 = vmatprep.subr.mxu0 %v1050
    %1071 = vmatpush1.xpose.msra.mxu0 %v1049
    %1072 = vmatprep.subr.mxu0 %v1048
    %1073 = vmatpush1.xpose.msra.mxu0 %v1047
    %1074 = vmatprep.subr.mxu0 %v1046
    %1075 = vmatpush1.xpose.msra.mxu0 %v1045
    %1076 = vmatprep.subr.mxu0 %v1044
    %1077 = vmatpush1.xpose.msra.mxu0 %v1043
    %1078 = vmatprep.subr.mxu0 %v1042
    %1079 = vmatpush1.xpose.msra.mxu0 %v1041
    %1080 = vmatprep.subr.mxu0 %v1040
    %1081 = vmatpush1.xpose.msra.mxu0 %v1039
    %1082 = vmatprep.subr.mxu0 %v1038
    %1083 = vmatpush1.xpose.msra.mxu0 %v1037
    %1084 = vmatprep.subr.mxu0 %v1036
    %1085 = vmatpush1.xpose.msra.mxu0 %v1035
    %1086 = vmatprep.subr.mxu0 %v1034
    %1087 = vmatpush1.xpose.msra.mxu0 %v1033
    %1088 = vmatprep.subr.mxu0 %v1032
    %1089 = vmatpush1.xpose.msra.mxu0 %v1031
    %1090 = vmatprep.subr.mxu0 %v1030
    %1091 = vmatpush1.xpose.msra.mxu0 %v1029
    %1092 = vmatprep.subr.mxu0 %v1028
    %1093 = vmatpush1.xpose.msra.mxu0 %v1027
    %1094 = vmatprep.subr.mxu0 %v1026
    %1095 = vmatpush1.xpose.msra.mxu0 %v1025
    %1096 = vmatprep.subr.mxu0 0.0
    %1097 = vmatpush2.xpose.msra.mxu0 0.0
    %1098 = vmatprep.subr.mxu0 0.0
    %1099 = vmatpush2.xpose.msra.mxu0 0.0
    %1100 = vmatprep.subr.mxu0 0.0
    %1101 = vmatpush2.xpose.msra.mxu0 0.0
    %1102 = vmatprep.subr.mxu0 0.0
    %1103 = vmatpush2.xpose.msra.mxu0 0.0
    %1104 = vmatprep.subr.mxu0 0.0
    %1105 = vmatpush2.xpose.msra.mxu0 0.0
    %1106 = vmatprep.subr.mxu0 0.0
    %1107 = vmatpush2.xpose.msra.mxu0 0.0
    %1108 = vmatprep.subr.mxu0 0.0
    %1109 = vmatpush2.xpose.msra.mxu0 0.0
    %1110 = vmatprep.subr.mxu0 0.0
    %1111 = vmatpush2.xpose.msra.mxu0 0.0
    %1112 = vmatprep.subr.mxu0 0.0
    %1113 = vmatpush2.xpose.msra.mxu0 0.0
    %1114 = vmatprep.subr.mxu0 0.0
    %1115 = vmatpush2.xpose.msra.mxu0 0.0
    %1116 = vmatprep.subr.mxu0 0.0
    %1117 = vmatpush2.xpose.msra.mxu0 0.0
    %1118 = vmatprep.subr.mxu0 0.0
    %1119 = vmatpush2.xpose.msra.mxu0 0.0
    %1120 = vmatprep.subr.mxu0 0.0
    %1121 = vmatpush2.xpose.msra.mxu0 0.0
    %1122 = vmatprep.subr.mxu0 0.0
    %1123 = vmatpush2.xpose.msra.mxu0 0.0
    %1124 = vmatprep.subr.mxu0 0.0
    %1125 = vmatpush2.xpose.msra.mxu0 0.0
    %1126 = vmatprep.subr.mxu0 0.0
    %1127 = vmatpush2.xpose.msra.mxu0 0.0
    %1128 = vmatprep.mubr.f32.mxu0 %v1018
    %1129 = vmatmul.mubr.f32.gmra.mxu0 %v1017
    %v1130 = vpop.f32.mrf.mxu0
    %v1131 = vadd.f32 %v1062, %v1130
    %v1132 = vpop.f32.mrf.mxu0
    %1133 = vmatprep.mubr.f32.mxu0 %v1020
    %1134 = vmatmul.mubr.f32.gmra.mxu0 %v1019
    %v1135 = vpop.f32.mrf.mxu0
    %v1136 = vadd.f32 %v1062, %v1135
    %v1137 = vpop.f32.mrf.mxu0
    %1138 = vmatprep.mubr.f32.mxu0 %v1022
    %1139 = vmatmul.mubr.f32.gmra.mxu0 %v1021
    %v1140 = vpop.f32.mrf.mxu0
    %v1141 = vadd.f32 %v1062, %v1140
    %v1142 = vpop.f32.mrf.mxu0
    %1143 = vmatprep.mubr.f32.mxu0 %v1024
    %1144 = vmatmul.mubr.f32.gmra.mxu0 %v1023
    %v1145 = vpop.f32.mrf.mxu0
    %v1146 = vadd.f32 %v1062, %v1145
    %v1147 = vpop.f32.mrf.mxu0
    %1148 = vdwg.mxu0
    %v1149 = vadd.f32 %v880, %v1131
    %v1150 = vadd.f32 %v881, %v1136
    %v1151 = vadd.f32 %v882, %v1141
    %v1152 = vadd.f32 %v883, %v1146
    %v1153 = vld [vmem:[%s9] sm:$0x1]
    %v1154 = vld [vmem:[%s10] sm:$0x1]
    %1155 = vadd.xlane.f32.xlu0 %v1149
    %v1156 = vpop.xlane.xlu0 %1155
    %1157 = vadd.xlane.f32.xlu0 %v1150
    %v1158 = vpop.xlane.xlu0 %1157
    %1159 = vadd.xlane.f32.xlu0 %v1151
    %v1160 = vpop.xlane.xlu0 %1159
    %1161 = vadd.xlane.f32.xlu0 %v1152
    %v1162 = vpop.xlane.xlu0 %1161
    %v1163 = vmul.f32 %v1156, %v827
    %v1164 = vmul.f32 %v1158, %v827
    %v1165 = vmul.f32 %v1160, %v827
    %v1166 = vmul.f32 %v1162, %v827
    %v1167 = vsub.f32 %v1149, %v1163
    %v1168 = vsub.f32 %v1150, %v1164
    %v1169 = vsub.f32 %v1151, %v1165
    %v1170 = vsub.f32 %v1152, %v1166
    %v1171 = vmul.f32 %v1167, %v1167
    %v1172 = vmul.f32 %v1168, %v1168
    %v1173 = vmul.f32 %v1169, %v1169
    %v1174 = vmul.f32 %v1170, %v1170
    %1175 = vadd.xlane.f32.xlu0 %v1171
    %v1176 = vpop.xlane.xlu0 %1175
    %1177 = vadd.xlane.f32.xlu0 %v1172
    %v1178 = vpop.xlane.xlu0 %1177
    %1179 = vadd.xlane.f32.xlu0 %v1173
    %v1180 = vpop.xlane.xlu0 %1179
    %1181 = vadd.xlane.f32.xlu0 %v1174
    %v1182 = vpop.xlane.xlu0 %1181
    %v1183 = vmul.f32 %v1176, %v827
    %v1184 = vmul.f32 %v1178, %v827
    %v1185 = vmul.f32 %v1180, %v827
    %v1186 = vmul.f32 %v1182, %v827
    %v1187 = vadd.f32 %v1183, 1e-05
    %v1188 = vadd.f32 %v1184, 1e-05
    %v1189 = vadd.f32 %v1185, 1e-05
    %v1190 = vadd.f32 %v1186, 1e-05
    %v1191 = vrsqrt.pop %v1187
    %v1192 = vrsqrt.pop %v1188
    %v1193 = vrsqrt.pop %v1189
    %v1194 = vrsqrt.pop %v1190
    %v1195 = vmul.f32 %v1167, %v1191
    %v1196 = vmul.f32 %v1168, %v1192
    %v1197 = vmul.f32 %v1169, %v1193
    %v1198 = vmul.f32 %v1170, %v1194
    %v1200 = vlaneseq
    %v1201 = vshrl.u32 %v1200, 7
    %v1202 = vsub.s32 0, %v1201
    %v1203 = vrot.slane %v1153, %v1202
    %v1205 = vmul.f32 %v1195, %v1203
    %v1206 = vmul.f32 %v1196, %v1203
    %v1207 = vmul.f32 %v1197, %v1203
    %v1208 = vmul.f32 %v1198, %v1203
    %v1210 = vlaneseq
    %v1211 = vshrl.u32 %v1210, 7
    %v1212 = vsub.s32 0, %v1211
    %v1213 = vrot.slane %v1154, %v1212
    %v1215 = vadd.f32 %v1205, %v1213
    %v1216 = vadd.f32 %v1206, %v1213
    %v1217 = vadd.f32 %v1207, %v1213
    %v1218 = vadd.f32 %v1208, %v1213
    %s1219 = scalar_lea.vmem [#allocation8], 384
    %v1220 = vld [vmem:[%s1219] sm:$0xff]
    %v1221 = vld [vmem:[%s1219 + $0x8] sm:$0xff]
    %v1222 = vld [vmem:[%s1219 + $0x10] sm:$0xff]
    %v1223 = vld [vmem:[%s1219 + $0x18] sm:$0xff]
    %v1224 = vld [vmem:[%s1219 + $0x20] sm:$0xff]
    %v1225 = vld [vmem:[%s1219 + $0x28] sm:$0xff]
    %v1226 = vld [vmem:[%s1219 + $0x30] sm:$0xff]
    %v1227 = vld [vmem:[%s1219 + $0x38] sm:$0xff]
    %v1228 = vld [vmem:[%s1219 + $0x40] sm:$0xff]
    %v1229 = vld [vmem:[%s1219 + $0x48] sm:$0xff]
    %v1230 = vld [vmem:[%s1219 + $0x50] sm:$0xff]
    %v1231 = vld [vmem:[%s1219 + $0x58] sm:$0xff]
    %v1232 = vld [vmem:[%s1219 + $0x60] sm:$0xff]
    %v1233 = vld [vmem:[%s1219 + $0x68] sm:$0xff]
    %v1234 = vld [vmem:[%s1219 + $0x70] sm:$0xff]
    %v1235 = vld [vmem:[%s1219 + $0x78] sm:$0xff]
    %v1236 = vld [vmem:[%s1219 + $0x80] sm:$0xff]
    %v1237 = vld [vmem:[%s1219 + $0x88] sm:$0xff]
    %v1238 = vld [vmem:[%s1219 + $0x90] sm:$0xff]
    %v1239 = vld [vmem:[%s1219 + $0x98] sm:$0xff]
    %v1240 = vld [vmem:[%s1219 + $0xa0] sm:$0xff]
    %v1241 = vld [vmem:[%s1219 + $0xa8] sm:$0xff]
    %v1242 = vld [vmem:[%s1219 + $0xb0] sm:$0xff]
    %v1243 = vld [vmem:[%s1219 + $0xb8] sm:$0xff]
    %v1244 = vld [vmem:[%s1219 + $0xc0] sm:$0xff]
    %v1245 = vld [vmem:[%s1219 + $0xc8] sm:$0xff]
    %v1246 = vld [vmem:[%s1219 + $0xd0] sm:$0xff]
    %v1247 = vld [vmem:[%s1219 + $0xd8] sm:$0xff]
    %v1248 = vld [vmem:[%s1219 + $0xe0] sm:$0xff]
    %v1249 = vld [vmem:[%s1219 + $0xe8] sm:$0xff]
    %v1250 = vld [vmem:[%s1219 + $0xf0] sm:$0xff]
    %v1251 = vld [vmem:[%s1219 + $0xf8] sm:$0xff]
    %v1252 = vld [vmem:[%s1219 + $0x100] sm:$0xff]
    %v1253 = vld [vmem:[%s1219 + $0x108] sm:$0xff]
    %v1254 = vld [vmem:[%s1219 + $0x110] sm:$0xff]
    %v1255 = vld [vmem:[%s1219 + $0x118] sm:$0xff]
    %v1256 = vld [vmem:[%s1219 + $0x120] sm:$0xff]
    %v1257 = vld [vmem:[%s1219 + $0x128] sm:$0xff]
    %v1258 = vld [vmem:[%s1219 + $0x130] sm:$0xff]
    %v1259 = vld [vmem:[%s1219 + $0x138] sm:$0xff]
    %v1260 = vld [vmem:[%s1219 + $0x140] sm:$0xff]
    %v1261 = vld [vmem:[%s1219 + $0x148] sm:$0xff]
    %v1262 = vld [vmem:[%s1219 + $0x150] sm:$0xff]
    %v1263 = vld [vmem:[%s1219 + $0x158] sm:$0xff]
    %v1264 = vld [vmem:[%s1219 + $0x160] sm:$0xff]
    %v1265 = vld [vmem:[%s1219 + $0x168] sm:$0xff]
    %v1266 = vld [vmem:[%s1219 + $0x170] sm:$0xff]
    %v1267 = vld [vmem:[%s1219 + $0x178] sm:$0xff]
    %s1268 = scalar_lea.vmem %s4, 3
    %v1269 = vld [vmem:[%s1268] sm:$0x7]
    %v1271 = vlaneseq
    %v1272 = vshrl.u32 %v1271, 7
    %v1273 = vsub.s32 0, %v1272
    %v1274 = vrot.slane %v1269, %v1273
    %v1275 = vlaneseq
    %v1276 = vshrl.u32 %v1275, 7
    %v1277 = vsub.s32 1, %v1276
    %v1278 = vrot.slane %v1269, %v1277
    %v1279 = vlaneseq
    %v1280 = vshrl.u32 %v1279, 7
    %v1281 = vsub.s32 2, %v1280
    %v1282 = vrot.slane %v1269, %v1281
    %1286 = vmatprep.subr.mxu0 0.0
    %1287 = vmatpush1.xpose.msra.mxu0 %v1235
    %1288 = vmatprep.subr.mxu0 0.0
    %1289 = vmatpush1.xpose.msra.mxu0 %v1234
    %1290 = vmatprep.subr.mxu0 0.0
    %1291 = vmatpush1.xpose.msra.mxu0 %v1233
    %1292 = vmatprep.subr.mxu0 0.0
    %1293 = vmatpush1.xpose.msra.mxu0 %v1232
    %1294 = vmatprep.subr.mxu0 0.0
    %1295 = vmatpush1.xpose.msra.mxu0 %v1231
    %1296 = vmatprep.subr.mxu0 0.0
    %1297 = vmatpush1.xpose.msra.mxu0 %v1230
    %1298 = vmatprep.subr.mxu0 0.0
    %1299 = vmatpush1.xpose.msra.mxu0 %v1229
    %1300 = vmatprep.subr.mxu0 0.0
    %1301 = vmatpush1.xpose.msra.mxu0 %v1228
    %1302 = vmatprep.subr.mxu0 0.0
    %1303 = vmatpush1.xpose.msra.mxu0 %v1227
    %1304 = vmatprep.subr.mxu0 0.0
    %1305 = vmatpush1.xpose.msra.mxu0 %v1226
    %1306 = vmatprep.subr.mxu0 0.0
    %1307 = vmatpush1.xpose.msra.mxu0 %v1225
    %1308 = vmatprep.subr.mxu0 0.0
    %1309 = vmatpush1.xpose.msra.mxu0 %v1224
    %1310 = vmatprep.subr.mxu0 0.0
    %1311 = vmatpush1.xpose.msra.mxu0 %v1223
    %1312 = vmatprep.subr.mxu0 0.0
    %1313 = vmatpush1.xpose.msra.mxu0 %v1222
    %1314 = vmatprep.subr.mxu0 0.0
    %1315 = vmatpush1.xpose.msra.mxu0 %v1221
    %1316 = vmatprep.subr.mxu0 0.0
    %1317 = vmatpush1.xpose.msra.mxu0 %v1220
    %1318 = vmatprep.subr.mxu0 0.0
    %1319 = vmatpush2.xpose.msra.mxu0 %v1251
    %1320 = vmatprep.subr.mxu0 0.0
    %1321 = vmatpush2.xpose.msra.mxu0 %v1250
    %1322 = vmatprep.subr.mxu0 0.0
    %1323 = vmatpush2.xpose.msra.mxu0 %v1249
    %1324 = vmatprep.subr.mxu0 0.0
    %1325 = vmatpush2.xpose.msra.mxu0 %v1248
    %1326 = vmatprep.subr.mxu0 0.0
    %1327 = vmatpush2.xpose.msra.mxu0 %v1247
    %1328 = vmatprep.subr.mxu0 0.0
    %1329 = vmatpush2.xpose.msra.mxu0 %v1246
    %1330 = vmatprep.subr.mxu0 0.0
    %1331 = vmatpush2.xpose.msra.mxu0 %v1245
    %1332 = vmatprep.subr.mxu0 0.0
    %1333 = vmatpush2.xpose.msra.mxu0 %v1244
    %1334 = vmatprep.subr.mxu0 0.0
    %1335 = vmatpush2.xpose.msra.mxu0 %v1243
    %1336 = vmatprep.subr.mxu0 0.0
    %1337 = vmatpush2.xpose.msra.mxu0 %v1242
    %1338 = vmatprep.subr.mxu0 0.0
    %1339 = vmatpush2.xpose.msra.mxu0 %v1241
    %1340 = vmatprep.subr.mxu0 0.0
    %1341 = vmatpush2.xpose.msra.mxu0 %v1240
    %1342 = vmatprep.subr.mxu0 0.0
    %1343 = vmatpush2.xpose.msra.mxu0 %v1239
    %1344 = vmatprep.subr.mxu0 0.0
    %1345 = vmatpush2.xpose.msra.mxu0 %v1238
    %1346 = vmatprep.subr.mxu0 0.0
    %1347 = vmatpush2.xpose.msra.mxu0 %v1237
    %1348 = vmatprep.subr.mxu0 0.0
    %1349 = vmatpush2.xpose.msra.mxu0 %v1236
    %1350 = vmatprep.mubr.f32.mxu0 0.0
    %1351 = vmatmul.mubr.f32.gmra.mxu0 %v1215
    %v1352 = vpop.f32.mrf.mxu0
    %v1353 = vadd.f32 %v1274, %v1352
    %v1354 = vpop.f32.mrf.mxu0
    %v1355 = vadd.f32 %v1278, %v1354
    %1356 = vmatprep.mubr.f32.mxu0 0.0
    %1357 = vmatmul.mubr.f32.gmra.mxu0 %v1216
    %v1358 = vpop.f32.mrf.mxu0
    %v1359 = vadd.f32 %v1274, %v1358
    %v1360 = vpop.f32.mrf.mxu0
    %v1361 = vadd.f32 %v1278, %v1360
    %1362 = vmatprep.mubr.f32.mxu0 0.0
    %1363 = vmatmul.mubr.f32.gmra.mxu0 %v1217
    %v1364 = vpop.f32.mrf.mxu0
    %v1365 = vadd.f32 %v1274, %v1364
    %v1366 = vpop.f32.mrf.mxu0
    %v1367 = vadd.f32 %v1278, %v1366
    %1368 = vmatprep.mubr.f32.mxu0 0.0
    %1369 = vmatmul.mubr.f32.gmra.mxu0 %v1218
    %v1370 = vpop.f32.mrf.mxu0
    %v1371 = vadd.f32 %v1274, %v1370
    %v1372 = vpop.f32.mrf.mxu0
    %v1373 = vadd.f32 %v1278, %v1372
    %1374 = vdwg.mxu0
    %1375 = vmatprep.subr.mxu0 0.0
    %1376 = vmatpush1.xpose.msra.mxu0 %v1267
    %1377 = vmatprep.subr.mxu0 0.0
    %1378 = vmatpush1.xpose.msra.mxu0 %v1266
    %1379 = vmatprep.subr.mxu0 0.0
    %1380 = vmatpush1.xpose.msra.mxu0 %v1265
    %1381 = vmatprep.subr.mxu0 0.0
    %1382 = vmatpush1.xpose.msra.mxu0 %v1264
    %1383 = vmatprep.subr.mxu0 0.0
    %1384 = vmatpush1.xpose.msra.mxu0 %v1263
    %1385 = vmatprep.subr.mxu0 0.0
    %1386 = vmatpush1.xpose.msra.mxu0 %v1262
    %1387 = vmatprep.subr.mxu0 0.0
    %1388 = vmatpush1.xpose.msra.mxu0 %v1261
    %1389 = vmatprep.subr.mxu0 0.0
    %1390 = vmatpush1.xpose.msra.mxu0 %v1260
    %1391 = vmatprep.subr.mxu0 0.0
    %1392 = vmatpush1.xpose.msra.mxu0 %v1259
    %1393 = vmatprep.subr.mxu0 0.0
    %1394 = vmatpush1.xpose.msra.mxu0 %v1258
    %1395 = vmatprep.subr.mxu0 0.0
    %1396 = vmatpush1.xpose.msra.mxu0 %v1257
    %1397 = vmatprep.subr.mxu0 0.0
    %1398 = vmatpush1.xpose.msra.mxu0 %v1256
    %1399 = vmatprep.subr.mxu0 0.0
    %1400 = vmatpush1.xpose.msra.mxu0 %v1255
    %1401 = vmatprep.subr.mxu0 0.0
    %1402 = vmatpush1.xpose.msra.mxu0 %v1254
    %1403 = vmatprep.subr.mxu0 0.0
    %1404 = vmatpush1.xpose.msra.mxu0 %v1253
    %1405 = vmatprep.subr.mxu0 0.0
    %1406 = vmatpush1.xpose.msra.mxu0 %v1252
    %1407 = vmatprep.subr.mxu0 0.0
    %1408 = vmatpush2.xpose.msra.mxu0 0.0
    %1409 = vmatprep.subr.mxu0 0.0
    %1410 = vmatpush2.xpose.msra.mxu0 0.0
    %1411 = vmatprep.subr.mxu0 0.0
    %1412 = vmatpush2.xpose.msra.mxu0 0.0
    %1413 = vmatprep.subr.mxu0 0.0
    %1414 = vmatpush2.xpose.msra.mxu0 0.0
    %1415 = vmatprep.subr.mxu0 0.0
    %1416 = vmatpush2.xpose.msra.mxu0 0.0
    %1417 = vmatprep.subr.mxu0 0.0
    %1418 = vmatpush2.xpose.msra.mxu0 0.0
    %1419 = vmatprep.subr.mxu0 0.0
    %1420 = vmatpush2.xpose.msra.mxu0 0.0
    %1421 = vmatprep.subr.mxu0 0.0
    %1422 = vmatpush2.xpose.msra.mxu0 0.0
    %1423 = vmatprep.subr.mxu0 0.0
    %1424 = vmatpush2.xpose.msra.mxu0 0.0
    %1425 = vmatprep.subr.mxu0 0.0
    %1426 = vmatpush2.xpose.msra.mxu0 0.0
    %1427 = vmatprep.subr.mxu0 0.0
    %1428 = vmatpush2.xpose.msra.mxu0 0.0
    %1429 = vmatprep.subr.mxu0 0.0
    %1430 = vmatpush2.xpose.msra.mxu0 0.0
    %1431 = vmatprep.subr.mxu0 0.0
    %1432 = vmatpush2.xpose.msra.mxu0 0.0
    %1433 = vmatprep.subr.mxu0 0.0
    %1434 = vmatpush2.xpose.msra.mxu0 0.0
    %1435 = vmatprep.subr.mxu0 0.0
    %1436 = vmatpush2.xpose.msra.mxu0 0.0
    %1437 = vmatprep.subr.mxu0 0.0
    %1438 = vmatpush2.xpose.msra.mxu0 0.0
    %1439 = vmatprep.mubr.f32.mxu0 0.0
    %1440 = vmatmul.mubr.f32.gmra.mxu0 %v1215
    %v1441 = vpop.f32.mrf.mxu0
    %v1442 = vadd.f32 %v1282, %v1441
    %v1443 = vpop.f32.mrf.mxu0
    %1444 = vmatprep.mubr.f32.mxu0 0.0
    %1445 = vmatmul.mubr.f32.gmra.mxu0 %v1216
    %v1446 = vpop.f32.mrf.mxu0
    %v1447 = vadd.f32 %v1282, %v1446
    %v1448 = vpop.f32.mrf.mxu0
    %1449 = vmatprep.mubr.f32.mxu0 0.0
    %1450 = vmatmul.mubr.f32.gmra.mxu0 %v1217
    %v1451 = vpop.f32.mrf.mxu0
    %v1452 = vadd.f32 %v1282, %v1451
    %v1453 = vpop.f32.mrf.mxu0
    %1454 = vmatprep.mubr.f32.mxu0 0.0
    %1455 = vmatmul.mubr.f32.gmra.mxu0 %v1218
    %v1456 = vpop.f32.mrf.mxu0
    %v1457 = vadd.f32 %v1282, %v1456
    %v1458 = vpop.f32.mrf.mxu0
    %1459 = vdwg.mxu0
    %1460 = vmatprep.subr.mxu0 0.0
    %1461 = vmatpush1.xpose.msra.mxu0 0.0
    %1462 = vmatprep.subr.mxu0 0.0
    %1463 = vmatpush1.xpose.msra.mxu0 0.0
    %1464 = vmatprep.subr.mxu0 0.0
    %1465 = vmatpush1.xpose.msra.mxu0 0.0
    %1466 = vmatprep.subr.mxu0 0.0
    %1467 = vmatpush1.xpose.msra.mxu0 0.0
    %1468 = vmatprep.subr.mxu0 0.0
    %1469 = vmatpush1.xpose.msra.mxu0 0.0
    %1470 = vmatprep.subr.mxu0 0.0
    %1471 = vmatpush1.xpose.msra.mxu0 0.0
    %1472 = vmatprep.subr.mxu0 0.0
    %1473 = vmatpush1.xpose.msra.mxu0 0.0
    %1474 = vmatprep.subr.mxu0 0.0
    %1475 = vmatpush1.xpose.msra.mxu0 0.0
    %1476 = vmatprep.subr.mxu0 0.0
    %1477 = vmatpush1.xpose.msra.mxu0 0.0
    %1478 = vmatprep.subr.mxu0 0.0
    %1479 = vmatpush1.xpose.msra.mxu0 0.0
    %1480 = vmatprep.subr.mxu0 0.0
    %1481 = vmatpush1.xpose.msra.mxu0 0.0
    %1482 = vmatprep.subr.mxu0 0.0
    %1483 = vmatpush1.xpose.msra.mxu0 0.0
    %1484 = vmatprep.subr.mxu0 0.0
    %1485 = vmatpush1.xpose.msra.mxu0 %v1373
    %1486 = vmatprep.subr.mxu0 0.0
    %1487 = vmatpush1.xpose.msra.mxu0 %v1367
    %1488 = vmatprep.subr.mxu0 0.0
    %1489 = vmatpush1.xpose.msra.mxu0 %v1361
    %1490 = vmatprep.subr.mxu0 0.0
    %1491 = vmatpush1.xpose.msra.mxu0 %v1355
    %1492 = vmatprep.subr.mxu0 0.0
    %1493 = vmatpush2.xpose.msra.mxu0 0.0
    %1494 = vmatprep.subr.mxu0 0.0
    %1495 = vmatpush2.xpose.msra.mxu0 0.0
    %1496 = vmatprep.subr.mxu0 0.0
    %1497 = vmatpush2.xpose.msra.mxu0 0.0
    %1498 = vmatprep.subr.mxu0 0.0
    %1499 = vmatpush2.xpose.msra.mxu0 0.0
    %1500 = vmatprep.subr.mxu0 0.0
    %1501 = vmatpush2.xpose.msra.mxu0 0.0
    %1502 = vmatprep.subr.mxu0 0.0
    %1503 = vmatpush2.xpose.msra.mxu0 0.0
    %1504 = vmatprep.subr.mxu0 0.0
    %1505 = vmatpush2.xpose.msra.mxu0 0.0
    %1506 = vmatprep.subr.mxu0 0.0
    %1507 = vmatpush2.xpose.msra.mxu0 0.0
    %1508 = vmatprep.subr.mxu0 0.0
    %1509 = vmatpush2.xpose.msra.mxu0 0.0
    %1510 = vmatprep.subr.mxu0 0.0
    %1511 = vmatpush2.xpose.msra.mxu0 0.0
    %1512 = vmatprep.subr.mxu0 0.0
    %1513 = vmatpush2.xpose.msra.mxu0 0.0
    %1514 = vmatprep.subr.mxu0 0.0
    %1515 = vmatpush2.xpose.msra.mxu0 0.0
    %1516 = vmatprep.subr.mxu0 0.0
    %1517 = vmatpush2.xpose.msra.mxu0 0.0
    %1518 = vmatprep.subr.mxu0 0.0
    %1519 = vmatpush2.xpose.msra.mxu0 0.0
    %1520 = vmatprep.subr.mxu0 0.0
    %1521 = vmatpush2.xpose.msra.mxu0 0.0
    %1522 = vmatprep.subr.mxu0 0.0
    %1523 = vmatpush2.xpose.msra.mxu0 0.0
    %1524 = vmatprep.mubr.f32.mxu0 0.0
    %1525 = vmatmul.mubr.f32.gmra.mxu0 %v1353
    %v1526 = vpop.f32.mrf.mxu0
    %v1527 = vadd.f32 %v235, %v1526
    %v1528 = vpop.f32.mrf.mxu0
    %1529 = vmatprep.mubr.f32.mxu0 0.0
    %1530 = vmatmul.mubr.f32.gmra.mxu0 %v1359
    %v1531 = vpop.f32.mrf.mxu0
    %v1532 = vadd.f32 %v236, %v1531
    %v1533 = vpop.f32.mrf.mxu0
    %1534 = vmatprep.mubr.f32.mxu0 0.0
    %1535 = vmatmul.mubr.f32.gmra.mxu0 %v1365
    %v1536 = vpop.f32.mrf.mxu0
    %v1537 = vadd.f32 %v237, %v1536
    %v1538 = vpop.f32.mrf.mxu0
    %1539 = vmatprep.mubr.f32.mxu0 0.0
    %1540 = vmatmul.mubr.f32.gmra.mxu0 %v1371
    %v1541 = vpop.f32.mrf.mxu0
    %v1542 = vadd.f32 %v238, %v1541
    %v1543 = vpop.f32.mrf.mxu0
    %1544 = vdwg.mxu0
    %v1545 = vsel %vm563, %v1527, -inf
    %1546 = vmax.xlane.f32.xlu0 %v1545
    %v1547 = vpop.xlane.xlu0 %1546
    %v1548 = vsel %vm563, %v1532, -inf
    %1549 = vmax.xlane.f32.xlu0 %v1548
    %v1550 = vpop.xlane.xlu0 %1549
    %v1551 = vsel %vm563, %v1537, -inf
    %1552 = vmax.xlane.f32.xlu0 %v1551
    %v1553 = vpop.xlane.xlu0 %1552
    %v1554 = vsel %vm563, %v1542, -inf
    %1555 = vmax.xlane.f32.xlu0 %v1554
    %v1556 = vpop.xlane.xlu0 %1555
    %v1557 = vsub.f32 %v1527, %v1547
    %v1558 = vsub.f32 %v1532, %v1550
    %v1559 = vsub.f32 %v1537, %v1553
    %v1560 = vsub.f32 %v1542, %v1556
    %v1561 = vmul.f32 %v1557, 1.442695
    %v1562 = vpow.pop %v1561
    %v1563 = vmul.f32 %v1558, 1.442695
    %v1564 = vpow.pop %v1563
    %v1565 = vmul.f32 %v1559, 1.442695
    %v1566 = vpow.pop %v1565
    %v1567 = vmul.f32 %v1560, 1.442695
    %v1568 = vpow.pop %v1567
    %v1569 = vsel %vm563, %v1562, 0.0
    %1570 = vadd.xlane.f32.xlu0 %v1569
    %v1571 = vpop.xlane.xlu0 %1570
    %v1572 = vsel %vm563, %v1564, 0.0
    %1573 = vadd.xlane.f32.xlu0 %v1572
    %v1574 = vpop.xlane.xlu0 %1573
    %v1575 = vsel %vm563, %v1566, 0.0
    %1576 = vadd.xlane.f32.xlu0 %v1575
    %v1577 = vpop.xlane.xlu0 %1576
    %v1578 = vsel %vm563, %v1568, 0.0
    %1579 = vadd.xlane.f32.xlu0 %v1578
    %v1580 = vpop.xlane.xlu0 %1579
    %v1581 = vrcp.pop %v1571
    %v1582 = vrcp.pop %v1574
    %v1583 = vrcp.pop %v1577
    %v1584 = vrcp.pop %v1580
    %v1585 = vmul.f32 %v1562, %v1581
    %v1586 = vmul.f32 %v1564, %v1582
    %v1587 = vmul.f32 %v1566, %v1583
    %v1588 = vmul.f32 %v1568, %v1584
    %v1590 = vsel %vm563, %v1585, 0
    %v1593 = vsel %vm563, %v1586, 0
    %v1596 = vsel %vm563, %v1587, 0
    %v1599 = vsel %vm563, %v1588, 0
    %1601 = vmatprep.subr.mxu0 0.0
    %1602 = vmatpush1.msra.mxu0 0.0
    %1603 = vmatprep.subr.mxu0 0.0
    %1604 = vmatpush1.msra.mxu0 0.0
    %1605 = vmatprep.subr.mxu0 0.0
    %1606 = vmatpush1.msra.mxu0 0.0
    %1607 = vmatprep.subr.mxu0 0.0
    %1608 = vmatpush1.msra.mxu0 0.0
    %1609 = vmatprep.subr.mxu0 0.0
    %1610 = vmatpush1.msra.mxu0 0.0
    %1611 = vmatprep.subr.mxu0 0.0
    %1612 = vmatpush1.msra.mxu0 0.0
    %1613 = vmatprep.subr.mxu0 0.0
    %1614 = vmatpush1.msra.mxu0 0.0
    %1615 = vmatprep.subr.mxu0 0.0
    %1616 = vmatpush1.msra.mxu0 0.0
    %1617 = vmatprep.subr.mxu0 0.0
    %1618 = vmatpush1.msra.mxu0 0.0
    %1619 = vmatprep.subr.mxu0 0.0
    %1620 = vmatpush1.msra.mxu0 0.0
    %1621 = vmatprep.subr.mxu0 0.0
    %1622 = vmatpush1.msra.mxu0 0.0
    %1623 = vmatprep.subr.mxu0 0.0
    %1624 = vmatpush1.msra.mxu0 0.0
    %1625 = vmatprep.subr.mxu0 0.0
    %1626 = vmatpush1.msra.mxu0 %v1457
    %1627 = vmatprep.subr.mxu0 0.0
    %1628 = vmatpush1.msra.mxu0 %v1452
    %1629 = vmatprep.subr.mxu0 0.0
    %1630 = vmatpush1.msra.mxu0 %v1447
    %1631 = vmatprep.subr.mxu0 0.0
    %1632 = vmatpush1.msra.mxu0 %v1442
    %1633 = vmatprep.subr.mxu0 0.0
    %1634 = vmatpush2.msra.mxu0 0.0
    %1635 = vmatprep.subr.mxu0 0.0
    %1636 = vmatpush2.msra.mxu0 0.0
    %1637 = vmatprep.subr.mxu0 0.0
    %1638 = vmatpush2.msra.mxu0 0.0
    %1639 = vmatprep.subr.mxu0 0.0
    %1640 = vmatpush2.msra.mxu0 0.0
    %1641 = vmatprep.subr.mxu0 0.0
    %1642 = vmatpush2.msra.mxu0 0.0
    %1643 = vmatprep.subr.mxu0 0.0
    %1644 = vmatpush2.msra.mxu0 0.0
    %1645 = vmatprep.subr.mxu0 0.0
    %1646 = vmatpush2.msra.mxu0 0.0
    %1647 = vmatprep.subr.mxu0 0.0
    %1648 = vmatpush2.msra.mxu0 0.0
    %1649 = vmatprep.subr.mxu0 0.0
    %1650 = vmatpush2.msra.mxu0 0.0
    %1651 = vmatprep.subr.mxu0 0.0
    %1652 = vmatpush2.msra.mxu0 0.0
    %1653 = vmatprep.subr.mxu0 0.0
    %1654 = vmatpush2.msra.mxu0 0.0
    %1655 = vmatprep.subr.mxu0 0.0
    %1656 = vmatpush2.msra.mxu0 0.0
    %1657 = vmatprep.subr.mxu0 0.0
    %1658 = vmatpush2.msra.mxu0 0.0
    %1659 = vmatprep.subr.mxu0 0.0
    %1660 = vmatpush2.msra.mxu0 0.0
    %1661 = vmatprep.subr.mxu0 0.0
    %1662 = vmatpush2.msra.mxu0 0.0
    %1663 = vmatprep.subr.mxu0 0.0
    %1664 = vmatpush2.msra.mxu0 0.0
    %1665 = vmatprep.mubr.f32.mxu0 0.0
    %1666 = vmatmul.mubr.f32.gmra.mxu0 %v1590
    %v1667 = vpop.f32.mrf.mxu0
    %v1668 = vadd.f32 0.0, %v1667
    %v1669 = vpop.f32.mrf.mxu0
    %1670 = vmatprep.mubr.f32.mxu0 0.0
    %1671 = vmatmul.mubr.f32.gmra.mxu0 %v1593
    %v1672 = vpop.f32.mrf.mxu0
    %v1673 = vadd.f32 0.0, %v1672
    %v1674 = vpop.f32.mrf.mxu0
    %1675 = vmatprep.mubr.f32.mxu0 0.0
    %1676 = vmatmul.mubr.f32.gmra.mxu0 %v1596
    %v1677 = vpop.f32.mrf.mxu0
    %v1678 = vadd.f32 0.0, %v1677
    %v1679 = vpop.f32.mrf.mxu0
    %1680 = vmatprep.mubr.f32.mxu0 0.0
    %1681 = vmatmul.mubr.f32.gmra.mxu0 %v1599
    %v1682 = vpop.f32.mrf.mxu0
    %v1683 = vadd.f32 0.0, %v1682
    %v1684 = vpop.f32.mrf.mxu0
    %1685 = vdwg.mxu0
    %s1686 = scalar_lea.vmem [#allocation10], 128
    %v1687 = vld [vmem:[%s1686] sm:$0xff]
    %v1688 = vld [vmem:[%s1686 + $0x8] sm:$0xff]
    %v1689 = vld [vmem:[%s1686 + $0x10] sm:$0xff]
    %v1690 = vld [vmem:[%s1686 + $0x18] sm:$0xff]
    %v1691 = vld [vmem:[%s1686 + $0x20] sm:$0xff]
    %v1692 = vld [vmem:[%s1686 + $0x28] sm:$0xff]
    %v1693 = vld [vmem:[%s1686 + $0x30] sm:$0xff]
    %v1694 = vld [vmem:[%s1686 + $0x38] sm:$0xff]
    %v1695 = vld [vmem:[%s1686 + $0x40] sm:$0xff]
    %v1696 = vld [vmem:[%s1686 + $0x48] sm:$0xff]
    %v1697 = vld [vmem:[%s1686 + $0x50] sm:$0xff]
    %v1698 = vld [vmem:[%s1686 + $0x58] sm:$0xff]
    %v1699 = vld [vmem:[%s1686 + $0x60] sm:$0xff]
    %v1700 = vld [vmem:[%s1686 + $0x68] sm:$0xff]
    %v1701 = vld [vmem:[%s1686 + $0x70] sm:$0xff]
    %v1702 = vld [vmem:[%s1686 + $0x78] sm:$0xff]
    %s1703 = scalar_lea.vmem [#allocation11], 1
    %v1704 = vld [vmem:[%s1703] sm:$0x1]
    %v1706 = vlaneseq
    %v1707 = vshrl.u32 %v1706, 7
    %v1708 = vsub.s32 0, %v1707
    %v1709 = vrot.slane %v1704, %v1708
    %1711 = vmatprep.subr.mxu0 0.0
    %1712 = vmatpush1.xpose.msra.mxu0 %v1702
    %1713 = vmatprep.subr.mxu0 0.0
    %1714 = vmatpush1.xpose.msra.mxu0 %v1701
    %1715 = vmatprep.subr.mxu0 0.0
    %1716 = vmatpush1.xpose.msra.mxu0 %v1700
    %1717 = vmatprep.subr.mxu0 0.0
    %1718 = vmatpush1.xpose.msra.mxu0 %v1699
    %1719 = vmatprep.subr.mxu0 0.0
    %1720 = vmatpush1.xpose.msra.mxu0 %v1698
    %1721 = vmatprep.subr.mxu0 0.0
    %1722 = vmatpush1.xpose.msra.mxu0 %v1697
    %1723 = vmatprep.subr.mxu0 0.0
    %1724 = vmatpush1.xpose.msra.mxu0 %v1696
    %1725 = vmatprep.subr.mxu0 0.0
    %1726 = vmatpush1.xpose.msra.mxu0 %v1695
    %1727 = vmatprep.subr.mxu0 0.0
    %1728 = vmatpush1.xpose.msra.mxu0 %v1694
    %1729 = vmatprep.subr.mxu0 0.0
    %1730 = vmatpush1.xpose.msra.mxu0 %v1693
    %1731 = vmatprep.subr.mxu0 0.0
    %1732 = vmatpush1.xpose.msra.mxu0 %v1692
    %1733 = vmatprep.subr.mxu0 0.0
    %1734 = vmatpush1.xpose.msra.mxu0 %v1691
    %1735 = vmatprep.subr.mxu0 0.0
    %1736 = vmatpush1.xpose.msra.mxu0 %v1690
    %1737 = vmatprep.subr.mxu0 0.0
    %1738 = vmatpush1.xpose.msra.mxu0 %v1689
    %1739 = vmatprep.subr.mxu0 0.0
    %1740 = vmatpush1.xpose.msra.mxu0 %v1688
    %1741 = vmatprep.subr.mxu0 0.0
    %1742 = vmatpush1.xpose.msra.mxu0 %v1687
    %1743 = vmatprep.subr.mxu0 0.0
    %1744 = vmatpush2.xpose.msra.mxu0 0.0
    %1745 = vmatprep.subr.mxu0 0.0
    %1746 = vmatpush2.xpose.msra.mxu0 0.0
    %1747 = vmatprep.subr.mxu0 0.0
    %1748 = vmatpush2.xpose.msra.mxu0 0.0
    %1749 = vmatprep.subr.mxu0 0.0
    %1750 = vmatpush2.xpose.msra.mxu0 0.0
    %1751 = vmatprep.subr.mxu0 0.0
    %1752 = vmatpush2.xpose.msra.mxu0 0.0
    %1753 = vmatprep.subr.mxu0 0.0
    %1754 = vmatpush2.xpose.msra.mxu0 0.0
    %1755 = vmatprep.subr.mxu0 0.0
    %1756 = vmatpush2.xpose.msra.mxu0 0.0
    %1757 = vmatprep.subr.mxu0 0.0
    %1758 = vmatpush2.xpose.msra.mxu0 0.0
    %1759 = vmatprep.subr.mxu0 0.0
    %1760 = vmatpush2.xpose.msra.mxu0 0.0
    %1761 = vmatprep.subr.mxu0 0.0
    %1762 = vmatpush2.xpose.msra.mxu0 0.0
    %1763 = vmatprep.subr.mxu0 0.0
    %1764 = vmatpush2.xpose.msra.mxu0 0.0
    %1765 = vmatprep.subr.mxu0 0.0
    %1766 = vmatpush2.xpose.msra.mxu0 0.0
    %1767 = vmatprep.subr.mxu0 0.0
    %1768 = vmatpush2.xpose.msra.mxu0 0.0
    %1769 = vmatprep.subr.mxu0 0.0
    %1770 = vmatpush2.xpose.msra.mxu0 0.0
    %1771 = vmatprep.subr.mxu0 0.0
    %1772 = vmatpush2.xpose.msra.mxu0 0.0
    %1773 = vmatprep.subr.mxu0 0.0
    %1774 = vmatpush2.xpose.msra.mxu0 0.0
    %1775 = vmatprep.mubr.f32.mxu0 0.0
    %1776 = vmatmul.mubr.f32.gmra.mxu0 %v1668
    %v1777 = vpop.f32.mrf.mxu0
    %v1778 = vadd.f32 %v1709, %v1777
    %v1779 = vpop.f32.mrf.mxu0
    %1780 = vmatprep.mubr.f32.mxu0 0.0
    %1781 = vmatmul.mubr.f32.gmra.mxu0 %v1673
    %v1782 = vpop.f32.mrf.mxu0
    %v1783 = vadd.f32 %v1709, %v1782
    %v1784 = vpop.f32.mrf.mxu0
    %1785 = vmatprep.mubr.f32.mxu0 0.0
    %1786 = vmatmul.mubr.f32.gmra.mxu0 %v1678
    %v1787 = vpop.f32.mrf.mxu0
    %v1788 = vadd.f32 %v1709, %v1787
    %v1789 = vpop.f32.mrf.mxu0
    %1790 = vmatprep.mubr.f32.mxu0 0.0
    %1791 = vmatmul.mubr.f32.gmra.mxu0 %v1683
    %v1792 = vpop.f32.mrf.mxu0
    %v1793 = vadd.f32 %v1709, %v1792
    %v1794 = vpop.f32.mrf.mxu0
    %1795 = vdwg.mxu0
    %v1796 = vadd.f32 %v1215, %v1778
    %v1797 = vadd.f32 %v1216, %v1783
    %v1798 = vadd.f32 %v1217, %v1788
    %v1799 = vadd.f32 %v1218, %v1793
    %s1800 = scalar_lea.vmem %s7, 1
    %v1801 = vld [vmem:[%s1800] sm:$0x1]
    %s1802 = scalar_lea.vmem %s8, 1
    %v1803 = vld [vmem:[%s1802] sm:$0x1]
    %1804 = vadd.xlane.f32.xlu0 %v1796
    %v1805 = vpop.xlane.xlu0 %1804
    %1806 = vadd.xlane.f32.xlu0 %v1797
    %v1807 = vpop.xlane.xlu0 %1806
    %1808 = vadd.xlane.f32.xlu0 %v1798
    %v1809 = vpop.xlane.xlu0 %1808
    %1810 = vadd.xlane.f32.xlu0 %v1799
    %v1811 = vpop.xlane.xlu0 %1810
    %v1812 = vmul.f32 %v1805, %v827
    %v1813 = vmul.f32 %v1807, %v827
    %v1814 = vmul.f32 %v1809, %v827
    %v1815 = vmul.f32 %v1811, %v827
    %v1816 = vsub.f32 %v1796, %v1812
    %v1817 = vsub.f32 %v1797, %v1813
    %v1818 = vsub.f32 %v1798, %v1814
    %v1819 = vsub.f32 %v1799, %v1815
    %v1820 = vmul.f32 %v1816, %v1816
    %v1821 = vmul.f32 %v1817, %v1817
    %v1822 = vmul.f32 %v1818, %v1818
    %v1823 = vmul.f32 %v1819, %v1819
    %1824 = vadd.xlane.f32.xlu0 %v1820
    %v1825 = vpop.xlane.xlu0 %1824
    %1826 = vadd.xlane.f32.xlu0 %v1821
    %v1827 = vpop.xlane.xlu0 %1826
    %1828 = vadd.xlane.f32.xlu0 %v1822
    %v1829 = vpop.xlane.xlu0 %1828
    %1830 = vadd.xlane.f32.xlu0 %v1823
    %v1831 = vpop.xlane.xlu0 %1830
    %v1832 = vmul.f32 %v1825, %v827
    %v1833 = vmul.f32 %v1827, %v827
    %v1834 = vmul.f32 %v1829, %v827
    %v1835 = vmul.f32 %v1831, %v827
    %v1836 = vadd.f32 %v1832, 1e-05
    %v1837 = vadd.f32 %v1833, 1e-05
    %v1838 = vadd.f32 %v1834, 1e-05
    %v1839 = vadd.f32 %v1835, 1e-05
    %v1840 = vrsqrt.pop %v1836
    %v1841 = vrsqrt.pop %v1837
    %v1842 = vrsqrt.pop %v1838
    %v1843 = vrsqrt.pop %v1839
    %v1844 = vmul.f32 %v1816, %v1840
    %v1845 = vmul.f32 %v1817, %v1841
    %v1846 = vmul.f32 %v1818, %v1842
    %v1847 = vmul.f32 %v1819, %v1843
    %v1849 = vlaneseq
    %v1850 = vshrl.u32 %v1849, 7
    %v1851 = vsub.s32 0, %v1850
    %v1852 = vrot.slane %v1801, %v1851
    %v1854 = vmul.f32 %v1844, %v1852
    %v1855 = vmul.f32 %v1845, %v1852
    %v1856 = vmul.f32 %v1846, %v1852
    %v1857 = vmul.f32 %v1847, %v1852
    %v1859 = vlaneseq
    %v1860 = vshrl.u32 %v1859, 7
    %v1861 = vsub.s32 0, %v1860
    %v1862 = vrot.slane %v1803, %v1861
    %v1864 = vadd.f32 %v1854, %v1862
    %v1865 = vadd.f32 %v1855, %v1862
    %v1866 = vadd.f32 %v1856, %v1862
    %v1867 = vadd.f32 %v1857, %v1862
    %s1868 = scalar_lea.vmem [#allocation13], 256
    %v1869 = vld [vmem:[%s1868] sm:$0xff]
    %v1870 = vld [vmem:[%s1868 + $0x8] sm:$0xff]
    %v1871 = vld [vmem:[%s1868 + $0x10] sm:$0xff]
    %v1872 = vld [vmem:[%s1868 + $0x18] sm:$0xff]
    %v1873 = vld [vmem:[%s1868 + $0x20] sm:$0xff]
    %v1874 = vld [vmem:[%s1868 + $0x28] sm:$0xff]
    %v1875 = vld [vmem:[%s1868 + $0x30] sm:$0xff]
    %v1876 = vld [vmem:[%s1868 + $0x38] sm:$0xff]
    %v1877 = vld [vmem:[%s1868 + $0x40] sm:$0xff]
    %v1878 = vld [vmem:[%s1868 + $0x48] sm:$0xff]
    %v1879 = vld [vmem:[%s1868 + $0x50] sm:$0xff]
    %v1880 = vld [vmem:[%s1868 + $0x58] sm:$0xff]
    %v1881 = vld [vmem:[%s1868 + $0x60] sm:$0xff]
    %v1882 = vld [vmem:[%s1868 + $0x68] sm:$0xff]
    %v1883 = vld [vmem:[%s1868 + $0x70] sm:$0xff]
    %v1884 = vld [vmem:[%s1868 + $0x78] sm:$0xff]
    %v1885 = vld [vmem:[%s1868 + $0x80] sm:$0xff]
    %v1886 = vld [vmem:[%s1868 + $0x88] sm:$0xff]
    %v1887 = vld [vmem:[%s1868 + $0x90] sm:$0xff]
    %v1888 = vld [vmem:[%s1868 + $0x98] sm:$0xff]
    %v1889 = vld [vmem:[%s1868 + $0xa0] sm:$0xff]
    %v1890 = vld [vmem:[%s1868 + $0xa8] sm:$0xff]
    %v1891 = vld [vmem:[%s1868 + $0xb0] sm:$0xff]
    %v1892 = vld [vmem:[%s1868 + $0xb8] sm:$0xff]
    %v1893 = vld [vmem:[%s1868 + $0xc0] sm:$0xff]
    %v1894 = vld [vmem:[%s1868 + $0xc8] sm:$0xff]
    %v1895 = vld [vmem:[%s1868 + $0xd0] sm:$0xff]
    %v1896 = vld [vmem:[%s1868 + $0xd8] sm:$0xff]
    %v1897 = vld [vmem:[%s1868 + $0xe0] sm:$0xff]
    %v1898 = vld [vmem:[%s1868 + $0xe8] sm:$0xff]
    %v1899 = vld [vmem:[%s1868 + $0xf0] sm:$0xff]
    %v1900 = vld [vmem:[%s1868 + $0xf8] sm:$0xff]
    %s1901 = scalar_lea.vmem %s12, 2
    %v1902 = vld [vmem:[%s1901] sm:$0x3]
    %v1904 = vlaneseq
    %v1905 = vshrl.u32 %v1904, 7
    %v1906 = vsub.s32 0, %v1905
    %v1907 = vrot.slane %v1902, %v1906
    %v1908 = vlaneseq
    %v1909 = vshrl.u32 %v1908, 7
    %v1910 = vsub.s32 1, %v1909
    %v1911 = vrot.slane %v1902, %v1910
    %1914 = vmatprep.subr.mxu0 0.0
    %1915 = vmatpush1.xpose.msra.mxu0 %v1884
    %1916 = vmatprep.subr.mxu0 0.0
    %1917 = vmatpush1.xpose.msra.mxu0 %v1883
    %1918 = vmatprep.subr.mxu0 0.0
    %1919 = vmatpush1.xpose.msra.mxu0 %v1882
    %1920 = vmatprep.subr.mxu0 0.0
    %1921 = vmatpush1.xpose.msra.mxu0 %v1881
    %1922 = vmatprep.subr.mxu0 0.0
    %1923 = vmatpush1.xpose.msra.mxu0 %v1880
    %1924 = vmatprep.subr.mxu0 0.0
    %1925 = vmatpush1.xpose.msra.mxu0 %v1879
    %1926 = vmatprep.subr.mxu0 0.0
    %1927 = vmatpush1.xpose.msra.mxu0 %v1878
    %1928 = vmatprep.subr.mxu0 0.0
    %1929 = vmatpush1.xpose.msra.mxu0 %v1877
    %1930 = vmatprep.subr.mxu0 0.0
    %1931 = vmatpush1.xpose.msra.mxu0 %v1876
    %1932 = vmatprep.subr.mxu0 0.0
    %1933 = vmatpush1.xpose.msra.mxu0 %v1875
    %1934 = vmatprep.subr.mxu0 0.0
    %1935 = vmatpush1.xpose.msra.mxu0 %v1874
    %1936 = vmatprep.subr.mxu0 0.0
    %1937 = vmatpush1.xpose.msra.mxu0 %v1873
    %1938 = vmatprep.subr.mxu0 0.0
    %1939 = vmatpush1.xpose.msra.mxu0 %v1872
    %1940 = vmatprep.subr.mxu0 0.0
    %1941 = vmatpush1.xpose.msra.mxu0 %v1871
    %1942 = vmatprep.subr.mxu0 0.0
    %1943 = vmatpush1.xpose.msra.mxu0 %v1870
    %1944 = vmatprep.subr.mxu0 0.0
    %1945 = vmatpush1.xpose.msra.mxu0 %v1869
    %1946 = vmatprep.subr.mxu0 0.0
    %1947 = vmatpush2.xpose.msra.mxu0 %v1900
    %1948 = vmatprep.subr.mxu0 0.0
    %1949 = vmatpush2.xpose.msra.mxu0 %v1899
    %1950 = vmatprep.subr.mxu0 0.0
    %1951 = vmatpush2.xpose.msra.mxu0 %v1898
    %1952 = vmatprep.subr.mxu0 0.0
    %1953 = vmatpush2.xpose.msra.mxu0 %v1897
    %1954 = vmatprep.subr.mxu0 0.0
    %1955 = vmatpush2.xpose.msra.mxu0 %v1896
    %1956 = vmatprep.subr.mxu0 0.0
    %1957 = vmatpush2.xpose.msra.mxu0 %v1895
    %1958 = vmatprep.subr.mxu0 0.0
    %1959 = vmatpush2.xpose.msra.mxu0 %v1894
    %1960 = vmatprep.subr.mxu0 0.0
    %1961 = vmatpush2.xpose.msra.mxu0 %v1893
    %1962 = vmatprep.subr.mxu0 0.0
    %1963 = vmatpush2.xpose.msra.mxu0 %v1892
    %1964 = vmatprep.subr.mxu0 0.0
    %1965 = vmatpush2.xpose.msra.mxu0 %v1891
    %1966 = vmatprep.subr.mxu0 0.0
    %1967 = vmatpush2.xpose.msra.mxu0 %v1890
    %1968 = vmatprep.subr.mxu0 0.0
    %1969 = vmatpush2.xpose.msra.mxu0 %v1889
    %1970 = vmatprep.subr.mxu0 0.0
    %1971 = vmatpush2.xpose.msra.mxu0 %v1888
    %1972 = vmatprep.subr.mxu0 0.0
    %1973 = vmatpush2.xpose.msra.mxu0 %v1887
    %1974 = vmatprep.subr.mxu0 0.0
    %1975 = vmatpush2.xpose.msra.mxu0 %v1886
    %1976 = vmatprep.subr.mxu0 0.0
    %1977 = vmatpush2.xpose.msra.mxu0 %v1885
    %1978 = vmatprep.mubr.f32.mxu0 0.0
    %1979 = vmatmul.mubr.f32.gmra.mxu0 %v1864
    %v1980 = vpop.f32.mrf.mxu0
    %v1981 = vadd.f32 %v1907, %v1980
    %v1982 = vpop.f32.mrf.mxu0
    %v1983 = vadd.f32 %v1911, %v1982
    %1984 = vmatprep.mubr.f32.mxu0 0.0
    %1985 = vmatmul.mubr.f32.gmra.mxu0 %v1865
    %v1986 = vpop.f32.mrf.mxu0
    %v1987 = vadd.f32 %v1907, %v1986
    %v1988 = vpop.f32.mrf.mxu0
    %v1989 = vadd.f32 %v1911, %v1988
    %1990 = vmatprep.mubr.f32.mxu0 0.0
    %1991 = vmatmul.mubr.f32.gmra.mxu0 %v1866
    %v1992 = vpop.f32.mrf.mxu0
    %v1993 = vadd.f32 %v1907, %v1992
    %v1994 = vpop.f32.mrf.mxu0
    %v1995 = vadd.f32 %v1911, %v1994
    %1996 = vmatprep.mubr.f32.mxu0 0.0
    %1997 = vmatmul.mubr.f32.gmra.mxu0 %v1867
    %v1998 = vpop.f32.mrf.mxu0
    %v1999 = vadd.f32 %v1907, %v1998
    %v2000 = vpop.f32.mrf.mxu0
    %v2001 = vadd.f32 %v1911, %v2000
    %2002 = vdwg.mxu0
    %v2003 = vmax.f32 %v1981, 0.0
    %v2004 = vmax.f32 %v1983, 0.0
    %v2005 = vmax.f32 %v1987, 0.0
    %v2006 = vmax.f32 %v1989, 0.0
    %v2007 = vmax.f32 %v1993, 0.0
    %v2008 = vmax.f32 %v1995, 0.0
    %v2009 = vmax.f32 %v1999, 0.0
    %v2010 = vmax.f32 %v2001, 0.0
    %s2011 = scalar_lea.vmem [#allocation14], 256
    %v2012 = vld [vmem:[%s2011] sm:$0xff]
    %v2013 = vld [vmem:[%s2011 + $0x8] sm:$0xff]
    %v2014 = vld [vmem:[%s2011 + $0x10] sm:$0xff]
    %v2015 = vld [vmem:[%s2011 + $0x18] sm:$0xff]
    %v2016 = vld [vmem:[%s2011 + $0x20] sm:$0xff]
    %v2017 = vld [vmem:[%s2011 + $0x28] sm:$0xff]
    %v2018 = vld [vmem:[%s2011 + $0x30] sm:$0xff]
    %v2019 = vld [vmem:[%s2011 + $0x38] sm:$0xff]
    %v2020 = vld [vmem:[%s2011 + $0x40] sm:$0xff]
    %v2021 = vld [vmem:[%s2011 + $0x48] sm:$0xff]
    %v2022 = vld [vmem:[%s2011 + $0x50] sm:$0xff]
    %v2023 = vld [vmem:[%s2011 + $0x58] sm:$0xff]
    %v2024 = vld [vmem:[%s2011 + $0x60] sm:$0xff]
    %v2025 = vld [vmem:[%s2011 + $0x68] sm:$0xff]
    %v2026 = vld [vmem:[%s2011 + $0x70] sm:$0xff]
    %v2027 = vld [vmem:[%s2011 + $0x78] sm:$0xff]
    %v2028 = vld [vmem:[%s2011 + $0x80] sm:$0xff]
    %v2029 = vld [vmem:[%s2011 + $0x88] sm:$0xff]
    %v2030 = vld [vmem:[%s2011 + $0x90] sm:$0xff]
    %v2031 = vld [vmem:[%s2011 + $0x98] sm:$0xff]
    %v2032 = vld [vmem:[%s2011 + $0xa0] sm:$0xff]
    %v2033 = vld [vmem:[%s2011 + $0xa8] sm:$0xff]
    %v2034 = vld [vmem:[%s2011 + $0xb0] sm:$0xff]
    %v2035 = vld [vmem:[%s2011 + $0xb8] sm:$0xff]
    %v2036 = vld [vmem:[%s2011 + $0xc0] sm:$0xff]
    %v2037 = vld [vmem:[%s2011 + $0xc8] sm:$0xff]
    %v2038 = vld [vmem:[%s2011 + $0xd0] sm:$0xff]
    %v2039 = vld [vmem:[%s2011 + $0xd8] sm:$0xff]
    %v2040 = vld [vmem:[%s2011 + $0xe0] sm:$0xff]
    %v2041 = vld [vmem:[%s2011 + $0xe8] sm:$0xff]
    %v2042 = vld [vmem:[%s2011 + $0xf0] sm:$0xff]
    %v2043 = vld [vmem:[%s2011 + $0xf8] sm:$0xff]
    %s2044 = scalar_lea.vmem %s14, 1
    %v2045 = vld [vmem:[%s2044] sm:$0x1]
    %v2047 = vlaneseq
    %v2048 = vshrl.u32 %v2047, 7
    %v2049 = vsub.s32 0, %v2048
    %v2050 = vrot.slane %v2045, %v2049
    %2052 = vmatprep.subr.mxu0 %v2043
    %2053 = vmatpush1.xpose.msra.mxu0 %v2042
    %2054 = vmatprep.subr.mxu0 %v2041
    %2055 = vmatpush1.xpose.msra.mxu0 %v2040
    %2056 = vmatprep.subr.mxu0 %v2039
    %2057 = vmatpush1.xpose.msra.mxu0 %v2038
    %2058 = vmatprep.subr.mxu0 %v2037
    %2059 = vmatpush1.xpose.msra.mxu0 %v2036
    %2060 = vmatprep.subr.mxu0 %v2035
    %2061 = vmatpush1.xpose.msra.mxu0 %v2034
    %2062 = vmatprep.subr.mxu0 %v2033
    %2063 = vmatpush1.xpose.msra.mxu0 %v2032
    %2064 = vmatprep.subr.mxu0 %v2031
    %2065 = vmatpush1.xpose.msra.mxu0 %v2030
    %2066 = vmatprep.subr.mxu0 %v2029
    %2067 = vmatpush1.xpose.msra.mxu0 %v2028
    %2068 = vmatprep.subr.mxu0 %v2027
    %2069 = vmatpush1.xpose.msra.mxu0 %v2026
    %2070 = vmatprep.subr.mxu0 %v2025
    %2071 = vmatpush1.xpose.msra.mxu0 %v2024
    %2072 = vmatprep.subr.mxu0 %v2023
    %2073 = vmatpush1.xpose.msra.mxu0 %v2022
    %2074 = vmatprep.subr.mxu0 %v2021
    %2075 = vmatpush1.xpose.msra.mxu0 %v2020
    %2076 = vmatprep.subr.mxu0 %v2019
    %2077 = vmatpush1.xpose.msra.mxu0 %v2018
    %2078 = vmatprep.subr.mxu0 %v2017
    %2079 = vmatpush1.xpose.msra.mxu0 %v2016
    %2080 = vmatprep.subr.mxu0 %v2015
    %2081 = vmatpush1.xpose.msra.mxu0 %v2014
    %2082 = vmatprep.subr.mxu0 %v2013
    %2083 = vmatpush1.xpose.msra.mxu0 %v2012
    %2084 = vmatprep.subr.mxu0 0.0
    %2085 = vmatpush2.xpose.msra.mxu0 0.0
    %2086 = vmatprep.subr.mxu0 0.0
    %2087 = vmatpush2.xpose.msra.mxu0 0.0
    %2088 = vmatprep.subr.mxu0 0.0
    %2089 = vmatpush2.xpose.msra.mxu0 0.0
    %2090 = vmatprep.subr.mxu0 0.0
    %2091 = vmatpush2.xpose.msra.mxu0 0.0
    %2092 = vmatprep.subr.mxu0 0.0
    %2093 = vmatpush2.xpose.msra.mxu0 0.0
    %2094 = vmatprep.subr.mxu0 0.0
    %2095 = vmatpush2.xpose.msra.mxu0 0.0
    %2096 = vmatprep.subr.mxu0 0.0
    %2097 = vmatpush2.xpose.msra.mxu0 0.0
    %2098 = vmatprep.subr.mxu0 0.0
    %2099 = vmatpush2.xpose.msra.mxu0 0.0
    %2100 = vmatprep.subr.mxu0 0.0
    %2101 = vmatpush2.xpose.msra.mxu0 0.0
    %2102 = vmatprep.subr.mxu0 0.0
    %2103 = vmatpush2.xpose.msra.mxu0 0.0
    %2104 = vmatprep.subr.mxu0 0.0
    %2105 = vmatpush2.xpose.msra.mxu0 0.0
    %2106 = vmatprep.subr.mxu0 0.0
    %2107 = vmatpush2.xpose.msra.mxu0 0.0
    %2108 = vmatprep.subr.mxu0 0.0
    %2109 = vmatpush2.xpose.msra.mxu0 0.0
    %2110 = vmatprep.subr.mxu0 0.0
    %2111 = vmatpush2.xpose.msra.mxu0 0.0
    %2112 = vmatprep.subr.mxu0 0.0
    %2113 = vmatpush2.xpose.msra.mxu0 0.0
    %2114 = vmatprep.subr.mxu0 0.0
    %2115 = vmatpush2.xpose.msra.mxu0 0.0
    %2116 = vmatprep.mubr.f32.mxu0 %v2004
    %2117 = vmatmul.mubr.f32.gmra.mxu0 %v2003
    %v2118 = vpop.f32.mrf.mxu0
    %v2119 = vadd.f32 %v2050, %v2118
    %v2120 = vpop.f32.mrf.mxu0
    %2121 = vmatprep.mubr.f32.mxu0 %v2006
    %2122 = vmatmul.mubr.f32.gmra.mxu0 %v2005
    %v2123 = vpop.f32.mrf.mxu0
    %v2124 = vadd.f32 %v2050, %v2123
    %v2125 = vpop.f32.mrf.mxu0
    %2126 = vmatprep.mubr.f32.mxu0 %v2008
    %2127 = vmatmul.mubr.f32.gmra.mxu0 %v2007
    %v2128 = vpop.f32.mrf.mxu0
    %v2129 = vadd.f32 %v2050, %v2128
    %v2130 = vpop.f32.mrf.mxu0
    %2131 = vmatprep.mubr.f32.mxu0 %v2010
    %2132 = vmatmul.mubr.f32.gmra.mxu0 %v2009
    %v2133 = vpop.f32.mrf.mxu0
    %v2134 = vadd.f32 %v2050, %v2133
    %v2135 = vpop.f32.mrf.mxu0
    %2136 = vdwg.mxu0
    %v2137 = vadd.f32 %v1864, %v2119
    %v2138 = vadd.f32 %v1865, %v2124
    %v2139 = vadd.f32 %v1866, %v2129
    %v2140 = vadd.f32 %v1867, %v2134
    %s2141 = scalar_lea.vmem %s9, 1
    %v2142 = vld [vmem:[%s2141] sm:$0x1]
    %s2143 = scalar_lea.vmem %s10, 1
    %v2144 = vld [vmem:[%s2143] sm:$0x1]
    %2145 = vadd.xlane.f32.xlu0 %v2137
    %v2146 = vpop.xlane.xlu0 %2145
    %2147 = vadd.xlane.f32.xlu0 %v2138
    %v2148 = vpop.xlane.xlu0 %2147
    %2149 = vadd.xlane.f32.xlu0 %v2139
    %v2150 = vpop.xlane.xlu0 %2149
    %2151 = vadd.xlane.f32.xlu0 %v2140
    %v2152 = vpop.xlane.xlu0 %2151
    %v2153 = vmul.f32 %v2146, %v827
    %v2154 = vmul.f32 %v2148, %v827
    %v2155 = vmul.f32 %v2150, %v827
    %v2156 = vmul.f32 %v2152, %v827
    %v2157 = vsub.f32 %v2137, %v2153
    %v2158 = vsub.f32 %v2138, %v2154
    %v2159 = vsub.f32 %v2139, %v2155
    %v2160 = vsub.f32 %v2140, %v2156
    %v2161 = vmul.f32 %v2157, %v2157
    %v2162 = vmul.f32 %v2158, %v2158
    %v2163 = vmul.f32 %v2159, %v2159
    %v2164 = vmul.f32 %v2160, %v2160
    %2165 = vadd.xlane.f32.xlu0 %v2161
    %v2166 = vpop.xlane.xlu0 %2165
    %2167 = vadd.xlane.f32.xlu0 %v2162
    %v2168 = vpop.xlane.xlu0 %2167
    %2169 = vadd.xlane.f32.xlu0 %v2163
    %v2170 = vpop.xlane.xlu0 %2169
    %2171 = vadd.xlane.f32.xlu0 %v2164
    %v2172 = vpop.xlane.xlu0 %2171
    %v2173 = vmul.f32 %v2166, %v827
    %v2174 = vmul.f32 %v2168, %v827
    %v2175 = vmul.f32 %v2170, %v827
    %v2176 = vmul.f32 %v2172, %v827
    %v2177 = vadd.f32 %v2173, 1e-05
    %v2178 = vadd.f32 %v2174, 1e-05
    %v2179 = vadd.f32 %v2175, 1e-05
    %v2180 = vadd.f32 %v2176, 1e-05
    %v2181 = vrsqrt.pop %v2177
    %v2182 = vrsqrt.pop %v2178
    %v2183 = vrsqrt.pop %v2179
    %v2184 = vrsqrt.pop %v2180
    %v2185 = vmul.f32 %v2157, %v2181
    %v2186 = vmul.f32 %v2158, %v2182
    %v2187 = vmul.f32 %v2159, %v2183
    %v2188 = vmul.f32 %v2160, %v2184
    %v2190 = vlaneseq
    %v2191 = vshrl.u32 %v2190, 7
    %v2192 = vsub.s32 0, %v2191
    %v2193 = vrot.slane %v2142, %v2192
    %v2195 = vmul.f32 %v2185, %v2193
    %v2196 = vmul.f32 %v2186, %v2193
    %v2197 = vmul.f32 %v2187, %v2193
    %v2198 = vmul.f32 %v2188, %v2193
    %v2200 = vlaneseq
    %v2201 = vshrl.u32 %v2200, 7
    %v2202 = vsub.s32 0, %v2201
    %v2203 = vrot.slane %v2144, %v2202
    %v2205 = vadd.f32 %v2195, %v2203
    %v2206 = vadd.f32 %v2196, %v2203
    %v2207 = vadd.f32 %v2197, %v2203
    %v2208 = vadd.f32 %v2198, %v2203
    %v2209 = vld [vmem:[#allocation16] sm:$0xff]
    %v2210 = vld [vmem:[#allocation16 + $0x8] sm:$0xff]
    %v2211 = vld [vmem:[#allocation16 + $0x10] sm:$0xff]
    %v2212 = vld [vmem:[#allocation16 + $0x18] sm:$0xff]
    %v2213 = vld [vmem:[#allocation16 + $0x20] sm:$0xff]
    %v2214 = vld [vmem:[#allocation16 + $0x28] sm:$0xff]
    %v2215 = vld [vmem:[#allocation16 + $0x30] sm:$0xff]
    %v2216 = vld [vmem:[#allocation16 + $0x38] sm:$0xff]
    %v2217 = vld [vmem:[#allocation16 + $0x40] sm:$0xff]
    %v2218 = vld [vmem:[#allocation16 + $0x48] sm:$0xff]
    %v2219 = vld [vmem:[#allocation16 + $0x50] sm:$0xff]
    %v2220 = vld [vmem:[#allocation16 + $0x58] sm:$0xff]
    %v2221 = vld [vmem:[#allocation16 + $0x60] sm:$0xff]
    %v2222 = vld [vmem:[#allocation16 + $0x68] sm:$0xff]
    %v2223 = vld [vmem:[#allocation16 + $0x70] sm:$0xff]
    %v2224 = vld [vmem:[#allocation16 + $0x78] sm:$0xff]
    %v2225 = vld [vmem:[#allocation16 + $0x80] sm:$0xff]
    %v2226 = vld [vmem:[#allocation16 + $0x88] sm:$0xff]
    %v2227 = vld [vmem:[#allocation16 + $0x90] sm:$0xff]
    %v2228 = vld [vmem:[#allocation16 + $0x98] sm:$0xff]
    %v2229 = vld [vmem:[#allocation16 + $0xa0] sm:$0xff]
    %v2230 = vld [vmem:[#allocation16 + $0xa8] sm:$0xff]
    %v2231 = vld [vmem:[#allocation16 + $0xb0] sm:$0xff]
    %v2232 = vld [vmem:[#allocation16 + $0xb8] sm:$0xff]
    %v2233 = vld [vmem:[#allocation16 + $0xc0] sm:$0xff]
    %v2234 = vld [vmem:[#allocation16 + $0xc8] sm:$0xff]
    %v2235 = vld [vmem:[#allocation16 + $0xd0] sm:$0xff]
    %v2236 = vld [vmem:[#allocation16 + $0xd8] sm:$0xff]
    %v2237 = vld [vmem:[#allocation16 + $0xe0] sm:$0xff]
    %v2238 = vld [vmem:[#allocation16 + $0xe8] sm:$0xff]
    %v2239 = vld [vmem:[#allocation16 + $0xf0] sm:$0xff]
    %v2240 = vld [vmem:[#allocation16 + $0xf8] sm:$0xff]
    %v2241 = vld [vmem:[#allocation16 + $0x100] sm:$0xff]
    %v2242 = vld [vmem:[#allocation16 + $0x108] sm:$0xff]
    %v2243 = vld [vmem:[#allocation16 + $0x110] sm:$0xff]
    %v2244 = vld [vmem:[#allocation16 + $0x118] sm:$0xff]
    %v2245 = vld [vmem:[#allocation16 + $0x120] sm:$0xff]
    %v2246 = vld [vmem:[#allocation16 + $0x128] sm:$0xff]
    %v2247 = vld [vmem:[#allocation16 + $0x130] sm:$0xff]
    %v2248 = vld [vmem:[#allocation16 + $0x138] sm:$0xff]
    %v2249 = vld [vmem:[#allocation16 + $0x140] sm:$0xff]
    %v2250 = vld [vmem:[#allocation16 + $0x148] sm:$0xff]
    %v2251 = vld [vmem:[#allocation16 + $0x150] sm:$0xff]
    %v2252 = vld [vmem:[#allocation16 + $0x158] sm:$0xff]
    %v2253 = vld [vmem:[#allocation16 + $0x160] sm:$0xff]
    %v2254 = vld [vmem:[#allocation16 + $0x168] sm:$0xff]
    %v2255 = vld [vmem:[#allocation16 + $0x170] sm:$0xff]
    %v2256 = vld [vmem:[#allocation16 + $0x178] sm:$0xff]
    %v2257 = vld [vmem:[#allocation16 + $0x180] sm:$0xff]
    %v2258 = vld [vmem:[#allocation16 + $0x188] sm:$0xff]
    %v2259 = vld [vmem:[#allocation16 + $0x190] sm:$0xff]
    %v2260 = vld [vmem:[#allocation16 + $0x198] sm:$0xff]
    %v2261 = vld [vmem:[#allocation16 + $0x1a0] sm:$0xff]
    %v2262 = vld [vmem:[#allocation16 + $0x1a8] sm:$0xff]
    %v2263 = vld [vmem:[#allocation16 + $0x1b0] sm:$0xff]
    %v2264 = vld [vmem:[#allocation16 + $0x1b8] sm:$0xff]
    %v2265 = vld [vmem:[#allocation16 + $0x1c0] sm:$0xff]
    %v2266 = vld [vmem:[#allocation16 + $0x1c8] sm:$0xff]
    %v2267 = vld [vmem:[#allocation16 + $0x1d0] sm:$0xff]
    %v2268 = vld [vmem:[#allocation16 + $0x1d8] sm:$0xff]
    %v2269 = vld [vmem:[#allocation16 + $0x1e0] sm:$0xff]
    %v2270 = vld [vmem:[#allocation16 + $0x1e8] sm:$0xff]
    %v2271 = vld [vmem:[#allocation16 + $0x1f0] sm:$0xff]
    %v2272 = vld [vmem:[#allocation16 + $0x1f8] sm:$0xff]
    %v2273 = vld [vmem:[#allocation16 + $0x200] sm:$0xff]
    %v2274 = vld [vmem:[#allocation16 + $0x208] sm:$0xff]
    %v2275 = vld [vmem:[#allocation16 + $0x210] sm:$0xff]
    %v2276 = vld [vmem:[#allocation16 + $0x218] sm:$0xff]
    %v2277 = vld [vmem:[#allocation16 + $0x220] sm:$0xff]
    %v2278 = vld [vmem:[#allocation16 + $0x228] sm:$0xff]
    %v2279 = vld [vmem:[#allocation16 + $0x230] sm:$0xff]
    %v2280 = vld [vmem:[#allocation16 + $0x238] sm:$0xff]
    %v2281 = vld [vmem:[#allocation16 + $0x240] sm:$0xff]
    %v2282 = vld [vmem:[#allocation16 + $0x248] sm:$0xff]
    %v2283 = vld [vmem:[#allocation16 + $0x250] sm:$0xff]
    %v2284 = vld [vmem:[#allocation16 + $0x258] sm:$0xff]
    %v2285 = vld [vmem:[#allocation16 + $0x260] sm:$0xff]
    %v2286 = vld [vmem:[#allocation16 + $0x268] sm:$0xff]
    %v2287 = vld [vmem:[#allocation16 + $0x270] sm:$0xff]
    %v2288 = vld [vmem:[#allocation16 + $0x278] sm:$0xff]
    %v2289 = vld [vmem:[#allocation16 + $0x280] sm:$0xff]
    %v2290 = vld [vmem:[#allocation16 + $0x288] sm:$0xff]
    %v2291 = vld [vmem:[#allocation16 + $0x290] sm:$0xff]
    %v2292 = vld [vmem:[#allocation16 + $0x298] sm:$0xff]
    %v2293 = vld [vmem:[#allocation16 + $0x2a0] sm:$0xff]
    %v2294 = vld [vmem:[#allocation16 + $0x2a8] sm:$0xff]
    %v2295 = vld [vmem:[#allocation16 + $0x2b0] sm:$0xff]
    %v2296 = vld [vmem:[#allocation16 + $0x2b8] sm:$0xff]
    %v2297 = vld [vmem:[#allocation16 + $0x2c0] sm:$0xff]
    %v2298 = vld [vmem:[#allocation16 + $0x2c8] sm:$0xff]
    %v2299 = vld [vmem:[#allocation16 + $0x2d0] sm:$0xff]
    %v2300 = vld [vmem:[#allocation16 + $0x2d8] sm:$0xff]
    %v2301 = vld [vmem:[#allocation16 + $0x2e0] sm:$0xff]
    %v2302 = vld [vmem:[#allocation16 + $0x2e8] sm:$0xff]
    %v2303 = vld [vmem:[#allocation16 + $0x2f0] sm:$0xff]
    %v2304 = vld [vmem:[#allocation16 + $0x2f8] sm:$0xff]
    %v2305 = vld [vmem:[#allocation16 + $0x300] sm:$0xff]
    %v2306 = vld [vmem:[#allocation16 + $0x308] sm:$0xff]
    %v2307 = vld [vmem:[#allocation16 + $0x310] sm:$0xff]
    %v2308 = vld [vmem:[#allocation16 + $0x318] sm:$0xff]
    %v2309 = vld [vmem:[#allocation16 + $0x320] sm:$0xff]
    %v2310 = vld [vmem:[#allocation16 + $0x328] sm:$0xff]
    %v2311 = vld [vmem:[#allocation16 + $0x330] sm:$0xff]
    %v2312 = vld [vmem:[#allocation16 + $0x338] sm:$0xff]
    %v2313 = vld [vmem:[#allocation16 + $0x340] sm:$0xff]
    %v2314 = vld [vmem:[#allocation16 + $0x348] sm:$0xff]
    %v2315 = vld [vmem:[#allocation16 + $0x350] sm:$0xff]
    %v2316 = vld [vmem:[#allocation16 + $0x358] sm:$0xff]
    %v2317 = vld [vmem:[#allocation16 + $0x360] sm:$0xff]
    %v2318 = vld [vmem:[#allocation16 + $0x368] sm:$0xff]
    %v2319 = vld [vmem:[#allocation16 + $0x370] sm:$0xff]
    %v2320 = vld [vmem:[#allocation16 + $0x378] sm:$0xff]
    %v2321 = vld [vmem:[#allocation16 + $0x380] sm:$0xff]
    %v2322 = vld [vmem:[#allocation16 + $0x388] sm:$0xff]
    %v2323 = vld [vmem:[#allocation16 + $0x390] sm:$0xff]
    %v2324 = vld [vmem:[#allocation16 + $0x398] sm:$0xff]
    %v2325 = vld [vmem:[#allocation16 + $0x3a0] sm:$0xff]
    %v2326 = vld [vmem:[#allocation16 + $0x3a8] sm:$0xff]
    %v2327 = vld [vmem:[#allocation16 + $0x3b0] sm:$0xff]
    %v2328 = vld [vmem:[#allocation16 + $0x3b8] sm:$0xff]
    %v2329 = vld [vmem:[#allocation16 + $0x3c0] sm:$0xff]
    %v2330 = vld [vmem:[#allocation16 + $0x3c8] sm:$0xff]
    %v2331 = vld [vmem:[#allocation16 + $0x3d0] sm:$0xff]
    %v2332 = vld [vmem:[#allocation16 + $0x3d8] sm:$0xff]
    %v2333 = vld [vmem:[#allocation16 + $0x3e0] sm:$0xff]
    %v2334 = vld [vmem:[#allocation16 + $0x3e8] sm:$0xff]
    %v2335 = vld [vmem:[#allocation16 + $0x3f0] sm:$0xff]
    %v2336 = vld [vmem:[#allocation16 + $0x3f8] sm:$0xff]
    %v2337 = vld [vmem:[%s16] sm:$0x3]
    %v2339 = vlaneseq
    %v2340 = vshrl.u32 %v2339, 7
    %v2341 = vsub.s32 0, %v2340
    %v2342 = vrot.slane %v2337, %v2341
    %v2343 = vlaneseq
    %v2344 = vshrl.u32 %v2343, 7
    %v2345 = vsub.s32 1, %v2344
    %v2346 = vrot.slane %v2337, %v2345
    %2349 = vmatprep.subr.mxu0 %v2270
    %2350 = vmatpush1.xpose.msra.mxu0 %v2269
    %2351 = vmatprep.subr.mxu0 %v2266
    %2352 = vmatpush1.xpose.msra.mxu0 %v2265
    %2353 = vmatprep.subr.mxu0 %v2262
    %2354 = vmatpush1.xpose.msra.mxu0 %v2261
    %2355 = vmatprep.subr.mxu0 %v2258
    %2356 = vmatpush1.xpose.msra.mxu0 %v2257
    %2357 = vmatprep.subr.mxu0 %v2254
    %2358 = vmatpush1.xpose.msra.mxu0 %v2253
    %2359 = vmatprep.subr.mxu0 %v2250
    %2360 = vmatpush1.xpose.msra.mxu0 %v2249
    %2361 = vmatprep.subr.mxu0 %v2246
    %2362 = vmatpush1.xpose.msra.mxu0 %v2245
    %2363 = vmatprep.subr.mxu0 %v2242
    %2364 = vmatpush1.xpose.msra.mxu0 %v2241
    %2365 = vmatprep.subr.mxu0 %v2238
    %2366 = vmatpush1.xpose.msra.mxu0 %v2237
    %2367 = vmatprep.subr.mxu0 %v2234
    %2368 = vmatpush1.xpose.msra.mxu0 %v2233
    %2369 = vmatprep.subr.mxu0 %v2230
    %2370 = vmatpush1.xpose.msra.mxu0 %v2229
    %2371 = vmatprep.subr.mxu0 %v2226
    %2372 = vmatpush1.xpose.msra.mxu0 %v2225
    %2373 = vmatprep.subr.mxu0 %v2222
    %2374 = vmatpush1.xpose.msra.mxu0 %v2221
    %2375 = vmatprep.subr.mxu0 %v2218
    %2376 = vmatpush1.xpose.msra.mxu0 %v2217
    %2377 = vmatprep.subr.mxu0 %v2214
    %2378 = vmatpush1.xpose.msra.mxu0 %v2213
    %2379 = vmatprep.subr.mxu0 %v2210
    %2380 = vmatpush1.xpose.msra.mxu0 %v2209
    %2381 = vmatprep.subr.mxu0 %v2334
    %2382 = vmatpush2.xpose.msra.mxu0 %v2333
    %2383 = vmatprep.subr.mxu0 %v2330
    %2384 = vmatpush2.xpose.msra.mxu0 %v2329
    %2385 = vmatprep.subr.mxu0 %v2326
    %2386 = vmatpush2.xpose.msra.mxu0 %v2325
    %2387 = vmatprep.subr.mxu0 %v2322
    %2388 = vmatpush2.xpose.msra.mxu0 %v2321
    %2389 = vmatprep.subr.mxu0 %v2318
    %2390 = vmatpush2.xpose.msra.mxu0 %v2317
    %2391 = vmatprep.subr.mxu0 %v2314
    %2392 = vmatpush2.xpose.msra.mxu0 %v2313
    %2393 = vmatprep.subr.mxu0 %v2310
    %2394 = vmatpush2.xpose.msra.mxu0 %v2309
    %2395 = vmatprep.subr.mxu0 %v2306
    %2396 = vmatpush2.xpose.msra.mxu0 %v2305
    %2397 = vmatprep.subr.mxu0 %v2302
    %2398 = vmatpush2.xpose.msra.mxu0 %v2301
    %2399 = vmatprep.subr.mxu0 %v2298
    %2400 = vmatpush2.xpose.msra.mxu0 %v2297
    %2401 = vmatprep.subr.mxu0 %v2294
    %2402 = vmatpush2.xpose.msra.mxu0 %v2293
    %2403 = vmatprep.subr.mxu0 %v2290
    %2404 = vmatpush2.xpose.msra.mxu0 %v2289
    %2405 = vmatprep.subr.mxu0 %v2286
    %2406 = vmatpush2.xpose.msra.mxu0 %v2285
    %2407 = vmatprep.subr.mxu0 %v2282
    %2408 = vmatpush2.xpose.msra.mxu0 %v2281
    %2409 = vmatprep.subr.mxu0 %v2278
    %2410 = vmatpush2.xpose.msra.mxu0 %v2277
    %2411 = vmatprep.subr.mxu0 %v2274
    %2412 = vmatpush2.xpose.msra.mxu0 %v2273
    %2413 = vmatprep.mubr.f32.mxu0 %v2206
    %2414 = vmatmul.mubr.f32.gmra.mxu0 %v2205
    %v2415 = vpop.f32.mrf.mxu0
    %v2416 = vadd.f32 %v2342, %v2415
    %v2417 = vpop.f32.mrf.mxu0
    %v2418 = vadd.f32 %v2346, %v2417
    %2419 = vdwg.mxu0
    %2420 = vmatprep.subr.mxu0 %v2272
    %2421 = vmatpush1.xpose.msra.mxu0 %v2271
    %2422 = vmatprep.subr.mxu0 %v2268
    %2423 = vmatpush1.xpose.msra.mxu0 %v2267
    %2424 = vmatprep.subr.mxu0 %v2264
    %2425 = vmatpush1.xpose.msra.mxu0 %v2263
    %2426 = vmatprep.subr.mxu0 %v2260
    %2427 = vmatpush1.xpose.msra.mxu0 %v2259
    %2428 = vmatprep.subr.mxu0 %v2256
    %2429 = vmatpush1.xpose.msra.mxu0 %v2255
    %2430 = vmatprep.subr.mxu0 %v2252
    %2431 = vmatpush1.xpose.msra.mxu0 %v2251
    %2432 = vmatprep.subr.mxu0 %v2248
    %2433 = vmatpush1.xpose.msra.mxu0 %v2247
    %2434 = vmatprep.subr.mxu0 %v2244
    %2435 = vmatpush1.xpose.msra.mxu0 %v2243
    %2436 = vmatprep.subr.mxu0 %v2240
    %2437 = vmatpush1.xpose.msra.mxu0 %v2239
    %2438 = vmatprep.subr.mxu0 %v2236
    %2439 = vmatpush1.xpose.msra.mxu0 %v2235
    %2440 = vmatprep.subr.mxu0 %v2232
    %2441 = vmatpush1.xpose.msra.mxu0 %v2231
    %2442 = vmatprep.subr.mxu0 %v2228
    %2443 = vmatpush1.xpose.msra.mxu0 %v2227
    %2444 = vmatprep.subr.mxu0 %v2224
    %2445 = vmatpush1.xpose.msra.mxu0 %v2223
    %2446 = vmatprep.subr.mxu0 %v2220
    %2447 = vmatpush1.xpose.msra.mxu0 %v2219
    %2448 = vmatprep.subr.mxu0 %v2216
    %2449 = vmatpush1.xpose.msra.mxu0 %v2215
    %2450 = vmatprep.subr.mxu0 %v2212
    %2451 = vmatpush1.xpose.msra.mxu0 %v2211
    %2452 = vmatprep.subr.mxu0 %v2336
    %2453 = vmatpush2.xpose.msra.mxu0 %v2335
    %2454 = vmatprep.subr.mxu0 %v2332
    %2455 = vmatpush2.xpose.msra.mxu0 %v2331
    %2456 = vmatprep.subr.mxu0 %v2328
    %2457 = vmatpush2.xpose.msra.mxu0 %v2327
    %2458 = vmatprep.subr.mxu0 %v2324
    %2459 = vmatpush2.xpose.msra.mxu0 %v2323
    %2460 = vmatprep.subr.mxu0 %v2320
    %2461 = vmatpush2.xpose.msra.mxu0 %v2319
    %2462 = vmatprep.subr.mxu0 %v2316
    %2463 = vmatpush2.xpose.msra.mxu0 %v2315
    %2464 = vmatprep.subr.mxu0 %v2312
    %2465 = vmatpush2.xpose.msra.mxu0 %v2311
    %2466 = vmatprep.subr.mxu0 %v2308
    %2467 = vmatpush2.xpose.msra.mxu0 %v2307
    %2468 = vmatprep.subr.mxu0 %v2304
    %2469 = vmatpush2.xpose.msra.mxu0 %v2303
    %2470 = vmatprep.subr.mxu0 %v2300
    %2471 = vmatpush2.xpose.msra.mxu0 %v2299
    %2472 = vmatprep.subr.mxu0 %v2296
    %2473 = vmatpush2.xpose.msra.mxu0 %v2295
    %2474 = vmatprep.subr.mxu0 %v2292
    %2475 = vmatpush2.xpose.msra.mxu0 %v2291
    %2476 = vmatprep.subr.mxu0 %v2288
    %2477 = vmatpush2.xpose.msra.mxu0 %v2287
    %2478 = vmatprep.subr.mxu0 %v2284
    %2479 = vmatpush2.xpose.msra.mxu0 %v2283
    %2480 = vmatprep.subr.mxu0 %v2280
    %2481 = vmatpush2.xpose.msra.mxu0 %v2279
    %2482 = vmatprep.subr.mxu0 %v2276
    %2483 = vmatpush2.xpose.msra.mxu0 %v2275
    %2484 = vmatprep.mubr.f32.mxu0 %v2208
    %2485 = vmatmul.mubr.f32.gmra.mxu0 %v2207
    %v2486 = vpop.f32.mrf.mxu0
    %v2487 = vadd.f32 %v2416, %v2486
    %v2488 = vpop.f32.mrf.mxu0
    %v2489 = vadd.f32 %v2418, %v2488
    %2490 = vdwg.mxu0
    %v2491 = vmax.f32 %v2487, 0.0
    %v2492 = vmax.f32 %v2489, 0.0
    %v2493 = vld [vmem:[#allocation17] sm:$0xff]
    %v2494 = vld [vmem:[#allocation17 + $0x8] sm:$0xff]
    %v2495 = vld [vmem:[#allocation17 + $0x10] sm:$0xff]
    %v2496 = vld [vmem:[#allocation17 + $0x18] sm:$0xff]
    %v2497 = vld [vmem:[#allocation17 + $0x20] sm:$0xff]
    %v2498 = vld [vmem:[#allocation17 + $0x28] sm:$0xff]
    %v2499 = vld [vmem:[#allocation17 + $0x30] sm:$0xff]
    %v2500 = vld [vmem:[#allocation17 + $0x38] sm:$0xff]
    %v2501 = vld [vmem:[#allocation17 + $0x40] sm:$0xff]
    %v2502 = vld [vmem:[#allocation17 + $0x48] sm:$0xff]
    %v2503 = vld [vmem:[#allocation17 + $0x50] sm:$0xff]
    %v2504 = vld [vmem:[#allocation17 + $0x58] sm:$0xff]
    %v2505 = vld [vmem:[#allocation17 + $0x60] sm:$0xff]
    %v2506 = vld [vmem:[#allocation17 + $0x68] sm:$0xff]
    %v2507 = vld [vmem:[#allocation17 + $0x70] sm:$0xff]
    %v2508 = vld [vmem:[#allocation17 + $0x78] sm:$0xff]
    %v2509 = vld [vmem:[#allocation17 + $0x80] sm:$0xff]
    %v2510 = vld [vmem:[#allocation17 + $0x88] sm:$0xff]
    %v2511 = vld [vmem:[#allocation17 + $0x90] sm:$0xff]
    %v2512 = vld [vmem:[#allocation17 + $0x98] sm:$0xff]
    %v2513 = vld [vmem:[#allocation17 + $0xa0] sm:$0xff]
    %v2514 = vld [vmem:[#allocation17 + $0xa8] sm:$0xff]
    %v2515 = vld [vmem:[#allocation17 + $0xb0] sm:$0xff]
    %v2516 = vld [vmem:[#allocation17 + $0xb8] sm:$0xff]
    %v2517 = vld [vmem:[#allocation17 + $0xc0] sm:$0xff]
    %v2518 = vld [vmem:[#allocation17 + $0xc8] sm:$0xff]
    %v2519 = vld [vmem:[#allocation17 + $0xd0] sm:$0xff]
    %v2520 = vld [vmem:[#allocation17 + $0xd8] sm:$0xff]
    %v2521 = vld [vmem:[#allocation17 + $0xe0] sm:$0xff]
    %v2522 = vld [vmem:[#allocation17 + $0xe8] sm:$0xff]
    %v2523 = vld [vmem:[#allocation17 + $0xf0] sm:$0xff]
    %v2524 = vld [vmem:[#allocation17 + $0xf8] sm:$0xff]
    %v2525 = vld [vmem:[%s18] sm:$0x1]
    %v2527 = vlaneseq
    %v2528 = vshrl.u32 %v2527, 7
    %v2529 = vsub.s32 0, %v2528
    %v2530 = vrot.slane %v2525, %v2529
    %2532 = vmatprep.subr.mxu0 %v2524
    %2533 = vmatpush1.xpose.msra.mxu0 %v2523
    %2534 = vmatprep.subr.mxu0 %v2522
    %2535 = vmatpush1.xpose.msra.mxu0 %v2521
    %2536 = vmatprep.subr.mxu0 %v2520
    %2537 = vmatpush1.xpose.msra.mxu0 %v2519
    %2538 = vmatprep.subr.mxu0 %v2518
    %2539 = vmatpush1.xpose.msra.mxu0 %v2517
    %2540 = vmatprep.subr.mxu0 %v2516
    %2541 = vmatpush1.xpose.msra.mxu0 %v2515
    %2542 = vmatprep.subr.mxu0 %v2514
    %2543 = vmatpush1.xpose.msra.mxu0 %v2513
    %2544 = vmatprep.subr.mxu0 %v2512
    %2545 = vmatpush1.xpose.msra.mxu0 %v2511
    %2546 = vmatprep.subr.mxu0 %v2510
    %2547 = vmatpush1.xpose.msra.mxu0 %v2509
    %2548 = vmatprep.subr.mxu0 %v2508
    %2549 = vmatpush1.xpose.msra.mxu0 %v2507
    %2550 = vmatprep.subr.mxu0 %v2506
    %2551 = vmatpush1.xpose.msra.mxu0 %v2505
    %2552 = vmatprep.subr.mxu0 %v2504
    %2553 = vmatpush1.xpose.msra.mxu0 %v2503
    %2554 = vmatprep.subr.mxu0 %v2502
    %2555 = vmatpush1.xpose.msra.mxu0 %v2501
    %2556 = vmatprep.subr.mxu0 %v2500
    %2557 = vmatpush1.xpose.msra.mxu0 %v2499
    %2558 = vmatprep.subr.mxu0 %v2498
    %2559 = vmatpush1.xpose.msra.mxu0 %v2497
    %2560 = vmatprep.subr.mxu0 %v2496
    %2561 = vmatpush1.xpose.msra.mxu0 %v2495
    %2562 = vmatprep.subr.mxu0 %v2494
    %2563 = vmatpush1.xpose.msra.mxu0 %v2493
    %2564 = vmatprep.subr.mxu0 0.0
    %2565 = vmatpush2.xpose.msra.mxu0 0.0
    %2566 = vmatprep.subr.mxu0 0.0
    %2567 = vmatpush2.xpose.msra.mxu0 0.0
    %2568 = vmatprep.subr.mxu0 0.0
    %2569 = vmatpush2.xpose.msra.mxu0 0.0
    %2570 = vmatprep.subr.mxu0 0.0
    %2571 = vmatpush2.xpose.msra.mxu0 0.0
    %2572 = vmatprep.subr.mxu0 0.0
    %2573 = vmatpush2.xpose.msra.mxu0 0.0
    %2574 = vmatprep.subr.mxu0 0.0
    %2575 = vmatpush2.xpose.msra.mxu0 0.0
    %2576 = vmatprep.subr.mxu0 0.0
    %2577 = vmatpush2.xpose.msra.mxu0 0.0
    %2578 = vmatprep.subr.mxu0 0.0
    %2579 = vmatpush2.xpose.msra.mxu0 0.0
    %2580 = vmatprep.subr.mxu0 0.0
    %2581 = vmatpush2.xpose.msra.mxu0 0.0
    %2582 = vmatprep.subr.mxu0 0.0
    %2583 = vmatpush2.xpose.msra.mxu0 0.0
    %2584 = vmatprep.subr.mxu0 0.0
    %2585 = vmatpush2.xpose.msra.mxu0 0.0
    %2586 = vmatprep.subr.mxu0 0.0
    %2587 = vmatpush2.xpose.msra.mxu0 0.0
    %2588 = vmatprep.subr.mxu0 0.0
    %2589 = vmatpush2.xpose.msra.mxu0 0.0
    %2590 = vmatprep.subr.mxu0 0.0
    %2591 = vmatpush2.xpose.msra.mxu0 0.0
    %2592 = vmatprep.subr.mxu0 0.0
    %2593 = vmatpush2.xpose.msra.mxu0 0.0
    %2594 = vmatprep.subr.mxu0 0.0
    %2595 = vmatpush2.xpose.msra.mxu0 0.0
    %2596 = vmatprep.mubr.f32.mxu0 %v2492
    %2597 = vmatmul.mubr.f32.gmra.mxu0 %v2491
    %v2598 = vpop.f32.mrf.mxu0
    %v2599 = vadd.f32 %v2530, %v2598
    %v2600 = vpop.f32.mrf.mxu0
    %2601 = vdwg.mxu0
    %2602 = vst [vmem:[#allocation19] sm:$0xff] %v2599
    // Predicated region
    $region118: #{tpu_custom_call.1} parent=1 // pred_check
      _
    $region119: #{tpu_custom_call.1} parent=1 // pred_check_branch
      %2604 = sbr.rel (0) target = $region121
    $region120: #{tpu_custom_call.1} parent=1 // pred_region
      %s2606 = ssub.s32 128, 128
      %2607 = vsyncadd [#allocation4], %s2606
      %s2609 = sshll.u32 [#allocation19], 4
      %s2610 = int_to_ptr.vmem [resolvable:$true] %s2609
      %2612 = dma.vmem_to_hbm [thread:$0]  %s2610, 128, %s19, [#allocation4]
    $region121: #{tpu_custom_call.1} parent=1 // pred_fallthru
      _
    // Predicated region
    $region122: #{tpu_custom_call.1} parent=1 // pred_check
      _
    $region123: #{tpu_custom_call.1} parent=1 // pred_check_branch
      %2614 = sbr.rel (0) target = $region125
    $region124: #{tpu_custom_call.1} parent=1 // pred_region
      %2615 = dma.done [#allocation4], 128
    $region125: #{tpu_custom_call.1} parent=1 // pred_fallthru
      _
    %2616 = vsyncpa [#allocation3], 1
    %2617 = vsyncpa [#allocation6], 1
    %2618 = vsyncpa [#allocation9], 1
    %2619 = vsyncpa [#allocation12], 1
    %2620 = vsyncpa [#allocation15], 1
    %2621 = vsyncpa [#allocation18], 1
    %2622 = vsyncpa [#allocation4], 1

</llo_original>
